<compile_context>
chip_gen: v6e
topology: v6e:2x2x1
jax: 0.10.0
libtpu: 0.0.40
codegen_flags: <defaults>
</compile_context>

<pallas_src>
import jax
import jax.numpy as jnp
from jax.experimental import pallas as pl
from jax.experimental.pallas import tpu as pltpu

NEG_SLOPE = 0.01   # nn.LeakyReLU default
BN_EPS = 1e-5      # nn.BatchNorm2d default

_CPARAMS = pltpu.CompilerParams(dimension_semantics=("arbitrary",))


def _full_spec(shape):
    return pl.BlockSpec(shape, lambda i: tuple(0 for _ in shape))


def _round_up(n, m):
    return ((n + m - 1) // m) * m


# ---------------------------------------------------------------------------
# Pallas kernels
# ---------------------------------------------------------------------------
def _conv_bn_lrelu_pool_kernel(x_ref, w_ref, gb_ref, o_ref):
    """Fused conv stage.

    x_ref:  (4*Mp, Kp) bf16 im2col patches, row order (pool_pos, b, ho, wo)
    w_ref:  (Kp, C)    bf16 conv weight as matmul (zero-padded K rows)
    gb_ref: (2, C)     f32  rows = [bn gamma, bn beta]
    o_ref:  (Mp, C)    bf16 pooled activation, row order (b, ho, wo)

    Conv2d bias is intentionally folded out: with batch-statistics BatchNorm,
    (conv + bias) - mean(conv + bias) == conv - mean(conv), so the bias has no
    effect on the forward output.
    """
    # MXU: bf16 operands, f32 accumulation.
    y = jnp.dot(x_ref[...], w_ref[...], preferred_element_type=jnp.float32)
    # BatchNorm2d (training-mode batch stats): per-channel over all rows.
    mean = jnp.mean(y, axis=0, keepdims=True)
    d = y - mean
    var = jnp.mean(d * d, axis=0, keepdims=True)
    scale = gb_ref[0:1, :] * jax.lax.rsqrt(var + BN_EPS)      # gamma / sqrt(var+eps)
    y = d * scale + gb_ref[1:2, :]                            # + beta
    # LeakyReLU (f32 VPU math).
    y = jnp.where(y > 0, y, NEG_SLOPE * y)
    # MaxPool2d(2): rows are pre-ordered so the 4 window taps are the 4
    # contiguous leading row groups -> max of 4 static slices (all in VMEM).
    mp = y.shape[0] // 4
    pooled = jnp.maximum(jnp.maximum(y[0 * mp:1 * mp, :], y[1 * mp:2 * mp, :]),
                         jnp.maximum(y[2 * mp:3 * mp, :], y[3 * mp:4 * mp, :]))
    o_ref[...] = pooled.astype(o_ref.dtype)


def _heads_kernel(f_ref, w1_ref, b1_ref, w2_ref, b2_ref, o_ref):
    """Both classifier heads fused (GRL is identity in forward).

    f_ref:  (B, 1024) bf16 shared feature (NHWC flatten order)
    w1_ref: (1024, 512) bf16  = [wl1 | wd1] (rows permuted for NHWC flatten)
    b1_ref: (1, 512) f32      = [bl1 | bd1]
    w2_ref: (512, 11) bf16    block-diagonal: [:256,:10]=wl2, [256:,10:]=wd2
    b2_ref: (1, 11) f32       = [bl2 | bd2]
    o_ref:  (B, 11) f32       [:, :10]=label logits, [:, 10:11]=domain logit
    """
    h = jnp.dot(f_ref[...], w1_ref[...], preferred_element_type=jnp.float32)
    h = h + b1_ref[...]
    h = jnp.where(h > 0, h, NEG_SLOPE * h)                    # LeakyReLU
    out = jnp.dot(h.astype(jnp.bfloat16), w2_ref[...],
                  preferred_element_type=jnp.float32)
    o_ref[...] = out + b2_ref[...]


# ---------------------------------------------------------------------------
# pallas_call wrappers (single full-array block; shapes are tiny)
# ---------------------------------------------------------------------------
def conv_stage(x_nhwc, w, gb, k=5):
    """Conv2d(k) + BatchNorm + LeakyReLU + MaxPool2d(2) as one pallas_call."""
    patches, (B, Hp, Wp) = _im2col_pool_ordered(x_nhwc, k)
    M4, Kp = patches.shape
    C = w.shape[1]
    Mp = M4 // 4
    out = pl.pallas_call(
        _conv_bn_lrelu_pool_kernel,
        out_shape=jax.ShapeDtypeStruct((Mp, C), jnp.bfloat16),
        grid=(1,),
        in_specs=[_full_spec((M4, Kp)), _full_spec((Kp, C)), _full_spec((2, C))],
        out_specs=_full_spec((Mp, C)),
        compiler_params=_CPARAMS,
    )(patches, w, gb)
    return out.reshape(B, Hp, Wp, C)                          # NHWC (free reshape)


def classifier_heads(feature, w1cat, b1cat, w2cat, b2cat):
    B = feature.shape[0]
    N1 = w1cat.shape[1]
    N2 = w2cat.shape[1]
    out = pl.pallas_call(
        _heads_kernel,
        out_shape=jax.ShapeDtypeStruct((B, N2), jnp.float32),
        grid=(1,),
        in_specs=[_full_spec(feature.shape), _full_spec(w1cat.shape),
                  _full_spec((1, N1)), _full_spec(w2cat.shape),
                  _full_spec((1, N2))],
        out_specs=_full_spec((B, N2)),
        compiler_params=_CPARAMS,
    )(feature, w1cat, b1cat.reshape(1, N1), w2cat, b2cat.reshape(1, N2))
    return out[:, :10], out[:, 10:11]                         # label, domain


# ---------------------------------------------------------------------------
# Glue: pool-ordered im2col, parameter preprocessing, full forward
# ---------------------------------------------------------------------------
def _im2col_pool_ordered(x_nhwc, k):
    """(B,H,W,C) -> (4*B*Hp*Wp, Kpad) bf16 patches with row order
    (pool_i*2+pool_j, b, ho, wo); valid conv, stride 1; K zero-padded to 128x."""
    B, H, W, C = x_nhwc.shape
    Ho, Wo = H - k + 1, W - k + 1
    Hp, Wp = Ho // 2, Wo // 2
    K = k * k * C
    pats = jnp.stack([x_nhwc[:, di:di + Ho, dj:dj + Wo, :]
                      for di in range(k) for dj in range(k)], axis=3)
    pats = pats.reshape(B, Ho, Wo, K)                         # (b, ho, wo, K)
    pats = pats.reshape(B, Hp, 2, Wp, 2, K)                   # split pool window
    pats = jnp.transpose(pats, (2, 4, 0, 1, 3, 5))            # (i, j, b, hp, wp, K)
    pats = pats.reshape(4 * B * Hp * Wp, K)
    Kpad = _round_up(K, 128)
    if Kpad != K:
        pats = jnp.pad(pats, ((0, 0), (0, Kpad - K)))
    return pats.astype(jnp.bfloat16), (B, Hp, Wp)


def _conv_weight_to_matmul(w_oikk):
    """torch (Cout, Cin, kh, kw) -> (Kpad, Cout) bf16 matching im2col order."""
    Cout, Cin, kh, kw = w_oikk.shape
    w = jnp.transpose(w_oikk, (2, 3, 1, 0)).reshape(kh * kw * Cin, Cout)
    Kpad = _round_up(w.shape[0], 128)
    w = jnp.pad(w, ((0, Kpad - w.shape[0]), (0, 0)))
    return w.astype(jnp.bfloat16)


def _fc_rows_nchw_to_nhwc(w_in_out, C, H, W):
    """(C*H*W, out) rows ordered (c,h,w) [torch NCHW flatten]
    -> rows ordered (h,w,c) so no feature transpose is needed at runtime."""
    out = w_in_out.shape[1]
    return (w_in_out.reshape(C, H, W, out)
            .transpose(1, 2, 0, 3).reshape(C * H * W, out))


def init_params(key):
    ks = jax.random.split(key, 8)
    kd = jax.random.split(jax.random.fold_in(key, 123), 4)
    s = 0.05
    f32 = jnp.float32

    # ---- feature extractor (torch-style weights, preprocessed once) ----
    w1 = jax.random.normal(ks[0], (32, 3, 5, 5)) * s
    _b1 = jax.random.normal(ks[1], (32,)) * s   # conv bias: folded out (batch-stat BN cancels it)
    w2 = jax.random.normal(ks[2], (64, 32, 5, 5)) * s
    _b2 = jax.random.normal(ks[3], (64,)) * s   # conv bias: folded out (batch-stat BN cancels it)
    p = {
        "w1": _conv_weight_to_matmul(w1),
        "gb1": jnp.stack([jnp.ones((32,)), jnp.zeros((32,))]).astype(f32),
        "w2": _conv_weight_to_matmul(w2),
        "gb2": jnp.stack([jnp.ones((64,)), jnp.zeros((64,))]).astype(f32),
    }

    # ---- classifier heads (torch Linear stores (out, in); transpose) ----
    wl1 = (jax.random.normal(ks[4], (256, 1024)) * s).T       # (1024, 256)
    bl1 = jax.random.normal(ks[5], (256,)) * s
    wl2 = (jax.random.normal(ks[6], (10, 256)) * s).T         # (256, 10)
    bl2 = jax.random.normal(ks[7], (10,)) * s
    wd1 = (jax.random.normal(kd[0], (256, 1024)) * s).T
    bd1 = jax.random.normal(kd[1], (256,)) * s
    wd2 = (jax.random.normal(kd[2], (1, 256)) * s).T          # (256, 1)
    bd2 = jax.random.normal(kd[3], (1,)) * s

    # permute FC rows from NCHW-flatten to NHWC-flatten order (C=64,H=W=4)
    wl1 = _fc_rows_nchw_to_nhwc(wl1, 64, 4, 4)
    wd1 = _fc_rows_nchw_to_nhwc(wd1, 64, 4, 4)

    p["w1cat"] = jnp.concatenate([wl1, wd1], axis=1).astype(jnp.bfloat16)  # (1024,512)
    p["b1cat"] = jnp.concatenate([bl1, bd1]).astype(f32)                   # (512,)
    w2cat = jnp.zeros((512, 11), f32)
    w2cat = w2cat.at[:256, :10].set(wl2)
    w2cat = w2cat.at[256:, 10:].set(wd2)
    p["w2cat"] = w2cat.astype(jnp.bfloat16)                                # (512,11)
    p["b2cat"] = jnp.concatenate([bl2, bd2]).astype(f32)                   # (11,)
    return p


def dann_forward(x_nchw, params, lambda_domain, draw=False):
    # NCHW in (PyTorch convention) -> NHWC internally (channels on lanes).
    x = jnp.transpose(x_nchw, (0, 2, 3, 1)).astype(jnp.bfloat16)
    B = x.shape[0]

    y = conv_stage(x, params["w1"], params["gb1"])            # (B, 12, 12, 32)
    y = conv_stage(y, params["w2"], params["gb2"])            # (B, 4, 4, 64)

    if draw:
        # Match torch's NCHW flatten order when returning the raw feature.
        return jnp.transpose(y, (0, 3, 1, 2)).reshape(B, -1).astype(jnp.float32)

    # NHWC flatten (head weight rows were permuted at init to match).
    feature = y.reshape(B, -1)                                # (B, 1024) bf16

    # GRL: identity in the forward pass (lambda_domain only scales the backward grad).
    # TODO(synk): gradient reversal has no forward-pass effect, so it is not emitted.
    label, domain = classifier_heads(feature, params["w1cat"], params["b1cat"],
                                     params["w2cat"], params["b2cat"])
    return label, domain


if __name__ == "__main__":
    key = jax.random.PRNGKey(0)
    k_x, k_p = jax.random.split(key)
    # Input implied by the module: flatten size 1024 = 64*4*4 -> 28x28 RGB images.
    x = jax.random.normal(k_x, (2, 3, 28, 28), dtype=jnp.float32)
    params = init_params(k_p)
    lambda_domain = 0.5

    label, domain = jax.jit(dann_forward, static_argnames="draw")(
        x, params, lambda_domain)
    jax.block_until_ready((label, domain))

    assert label.shape == (2, 10), label.shape
    assert domain.shape == (2, 1), domain.shape
    print("KERNEL_OK")
</pallas_src>

<mosaic_0001>
module attributes {stable_mosaic.version = 11 : i64} {
  func.func @_conv_bn_lrelu_pool_kernel(%arg0: i32, %arg1: memref<1152x128xbf16, #tpu.memory_space<vmem>>, %arg2: memref<128x32xbf16, #tpu.memory_space<vmem>>, %arg3: memref<2x32xf32, #tpu.memory_space<vmem>>, %arg4: memref<288x32xbf16, #tpu.memory_space<vmem>>) attributes {dimension_semantics = [#tpu.dimension_semantics<arbitrary>], iteration_bounds = array<i64: 1>, scalar_prefetch = 0 : i64, scratch_operands = 0 : i64, tpu.core_type = #tpu.core_type<tc>, window_params = [{pipeline_mode = #tpu.pipeline_mode<synchronous>, transform_indices = @transform_0, window_bounds = array<i64: 1152, 128>}, {pipeline_mode = #tpu.pipeline_mode<synchronous>, transform_indices = @transform_1, window_bounds = array<i64: 128, 32>}, {pipeline_mode = #tpu.pipeline_mode<synchronous>, transform_indices = @transform_2, window_bounds = array<i64: 2, 32>}, {pipeline_mode = #tpu.pipeline_mode<synchronous>, transform_indices = @transform_3, window_bounds = array<i64: 288, 32>}]} {
    %c0 = arith.constant 0 : index
    %c0_0 = arith.constant 0 : index
    %0 = vector.load %arg1[%c0, %c0_0] : memref<1152x128xbf16, #tpu.memory_space<vmem>>, vector<1152x128xbf16>
    %c0_1 = arith.constant 0 : index
    %c0_2 = arith.constant 0 : index
    %1 = vector.load %arg2[%c0_1, %c0_2] : memref<128x32xbf16, #tpu.memory_space<vmem>>, vector<128x32xbf16>
    %cst = arith.constant dense<0.000000e+00> : vector<1152x32xf32>
    %2 = tpu.matmul %0, %1, %cst {dimension_numbers = #tpu.dot_dimension_numbers<[1], [0], [0], [1], [0, 0, 1, 1], [], []>} : vector<1152x128xbf16>, vector<128x32xbf16>, vector<1152x32xf32> -> vector<1152x32xf32>
    %cst_3 = arith.constant dense<0.000000e+00> : vector<32xf32>
    %3 = vector.multi_reduction <add>, %2, %cst_3 [0] : vector<1152x32xf32> to vector<32xf32>
    %4 = vector.shape_cast %3 : vector<32xf32> to vector<1x32xf32>
    %cst_4 = arith.constant 1.152000e+03 : f32
    %5 = vector.broadcast %cst_4 : f32 to vector<1x32xf32>
    %6 = arith.divf %4, %5 : vector<1x32xf32>
    %7 = vector.broadcast %6 : vector<1x32xf32> to vector<1152x32xf32>
    %8 = arith.subf %2, %7 : vector<1152x32xf32>
    %9 = arith.mulf %8, %8 : vector<1152x32xf32>
    %cst_5 = arith.constant dense<0.000000e+00> : vector<32xf32>
    %10 = vector.multi_reduction <add>, %9, %cst_5 [0] : vector<1152x32xf32> to vector<32xf32>
    %11 = vector.shape_cast %10 : vector<32xf32> to vector<1x32xf32>
    %cst_6 = arith.constant 1.152000e+03 : f32
    %12 = vector.broadcast %cst_6 : f32 to vector<1x32xf32>
    %13 = arith.divf %11, %12 : vector<1x32xf32>
    %c0_7 = arith.constant 0 : index
    %c0_8 = arith.constant 0 : index
    %14 = vector.load %arg3[%c0_7, %c0_8] : memref<2x32xf32, #tpu.memory_space<vmem>>, vector<1x32xf32>
    %cst_9 = arith.constant 9.99999974E-6 : f32
    %15 = vector.broadcast %cst_9 : f32 to vector<1x32xf32>
    %16 = arith.addf %13, %15 : vector<1x32xf32>
    %17 = math.rsqrt %16 : vector<1x32xf32>
    %18 = arith.mulf %14, %17 : vector<1x32xf32>
    %19 = vector.broadcast %18 : vector<1x32xf32> to vector<1152x32xf32>
    %20 = arith.mulf %8, %19 : vector<1152x32xf32>
    %c1 = arith.constant 1 : index
    %c0_10 = arith.constant 0 : index
    %21 = vector.load %arg3[%c1, %c0_10] : memref<2x32xf32, #tpu.memory_space<vmem>>, vector<1x32xf32>
    %22 = vector.broadcast %21 : vector<1x32xf32> to vector<1152x32xf32>
    %23 = arith.addf %20, %22 : vector<1152x32xf32>
    %cst_11 = arith.constant 0.000000e+00 : f32
    %24 = vector.broadcast %cst_11 : f32 to vector<1152x32xf32>
    %25 = arith.cmpf ogt, %23, %24 : vector<1152x32xf32>
    %cst_12 = arith.constant 0.00999999977 : f32
    %26 = vector.broadcast %cst_12 : f32 to vector<1152x32xf32>
    %27 = arith.mulf %26, %23 : vector<1152x32xf32>
    %28 = arith.select %25, %23, %27 : vector<1152x32xi1>, vector<1152x32xf32>
    %29 = vector.extract_strided_slice %28 {offsets = [0, 0], sizes = [288, 32], strides = [1, 1]} : vector<1152x32xf32> to vector<288x32xf32>
    %30 = vector.extract_strided_slice %28 {offsets = [288, 0], sizes = [288, 32], strides = [1, 1]} : vector<1152x32xf32> to vector<288x32xf32>
    %31 = arith.maximumf %29, %30 : vector<288x32xf32>
    %32 = vector.extract_strided_slice %28 {offsets = [576, 0], sizes = [288, 32], strides = [1, 1]} : vector<1152x32xf32> to vector<288x32xf32>
    %33 = vector.extract_strided_slice %28 {offsets = [864, 0], sizes = [288, 32], strides = [1, 1]} : vector<1152x32xf32> to vector<288x32xf32>
    %34 = arith.maximumf %32, %33 : vector<288x32xf32>
    %35 = arith.maximumf %31, %34 : vector<288x32xf32>
    %36 = arith.truncf %35 : vector<288x32xf32> to vector<288x32xbf16>
    %c0_13 = arith.constant 0 : index
    %c0_14 = arith.constant 0 : index
    %37 = vector.load %arg4[%c0_13, %c0_14] : memref<288x32xbf16, #tpu.memory_space<vmem>>, vector<288x32xbf16>
    tpu.vector_store %arg4[%c0_13, %c0_14], %36 {strides = array<i32>} : memref<288x32xbf16, #tpu.memory_space<vmem>>, vector<288x32xbf16>,
    return
  }
  func.func @transform_0(%arg0: i32) -> (i32, i32) {
    %c0_i32 = arith.constant 0 : i32
    %c0_i32_0 = arith.constant 0 : i32
    %c0_i32_1 = arith.constant 0 : i32
    return %c0_i32, %c0_i32_0 : i32, i32
  }
  func.func @transform_1(%arg0: i32) -> (i32, i32) {
    %c0_i32 = arith.constant 0 : i32
    %c0_i32_0 = arith.constant 0 : i32
    %c0_i32_1 = arith.constant 0 : i32
    return %c0_i32, %c0_i32_0 : i32, i32
  }
  func.func @transform_2(%arg0: i32) -> (i32, i32) {
    %c0_i32 = arith.constant 0 : i32
    %c0_i32_0 = arith.constant 0 : i32
    %c0_i32_1 = arith.constant 0 : i32
    return %c0_i32, %c0_i32_0 : i32, i32
  }
  func.func @transform_3(%arg0: i32) -> (i32, i32) {
    %c0_i32 = arith.constant 0 : i32
    %c0_i32_0 = arith.constant 0 : i32
    %c0_i32_1 = arith.constant 0 : i32
    return %c0_i32, %c0_i32_0 : i32, i32
  }
}

module attributes {stable_mosaic.version = 11 : i64} {
  func.func @_conv_bn_lrelu_pool_kernel(%arg0: i32, %arg1: memref<128x896xbf16, #tpu.memory_space<vmem>>, %arg2: memref<896x64xbf16, #tpu.memory_space<vmem>>, %arg3: memref<2x64xf32, #tpu.memory_space<vmem>>, %arg4: memref<32x64xbf16, #tpu.memory_space<vmem>>) attributes {dimension_semantics = [#tpu.dimension_semantics<arbitrary>], iteration_bounds = array<i64: 1>, scalar_prefetch = 0 : i64, scratch_operands = 0 : i64, tpu.core_type = #tpu.core_type<tc>, window_params = [{pipeline_mode = #tpu.pipeline_mode<synchronous>, transform_indices = @transform_0, window_bounds = array<i64: 128, 896>}, {pipeline_mode = #tpu.pipeline_mode<synchronous>, transform_indices = @transform_1, window_bounds = array<i64: 896, 64>}, {pipeline_mode = #tpu.pipeline_mode<synchronous>, transform_indices = @transform_2, window_bounds = array<i64: 2, 64>}, {pipeline_mode = #tpu.pipeline_mode<synchronous>, transform_indices = @transform_3, window_bounds = array<i64: 32, 64>}]} {
    %c0 = arith.constant 0 : index
    %c0_0 = arith.constant 0 : index
    %0 = vector.load %arg1[%c0, %c0_0] : memref<128x896xbf16, #tpu.memory_space<vmem>>, vector<128x896xbf16>
    %c0_1 = arith.constant 0 : index
    %c0_2 = arith.constant 0 : index
    %1 = vector.load %arg2[%c0_1, %c0_2] : memref<896x64xbf16, #tpu.memory_space<vmem>>, vector<896x64xbf16>
    %cst = arith.constant dense<0.000000e+00> : vector<128x64xf32>
    %2 = tpu.matmul %0, %1, %cst {dimension_numbers = #tpu.dot_dimension_numbers<[1], [0], [0], [1], [0, 0, 1, 1], [], []>} : vector<128x896xbf16>, vector<896x64xbf16>, vector<128x64xf32> -> vector<128x64xf32>
    %cst_3 = arith.constant dense<0.000000e+00> : vector<64xf32>
    %3 = vector.multi_reduction <add>, %2, %cst_3 [0] : vector<128x64xf32> to vector<64xf32>
    %4 = vector.shape_cast %3 : vector<64xf32> to vector<1x64xf32>
    %cst_4 = arith.constant 1.280000e+02 : f32
    %5 = vector.broadcast %cst_4 : f32 to vector<1x64xf32>
    %6 = arith.divf %4, %5 : vector<1x64xf32>
    %7 = vector.broadcast %6 : vector<1x64xf32> to vector<128x64xf32>
    %8 = arith.subf %2, %7 : vector<128x64xf32>
    %9 = arith.mulf %8, %8 : vector<128x64xf32>
    %cst_5 = arith.constant dense<0.000000e+00> : vector<64xf32>
    %10 = vector.multi_reduction <add>, %9, %cst_5 [0] : vector<128x64xf32> to vector<64xf32>
    %11 = vector.shape_cast %10 : vector<64xf32> to vector<1x64xf32>
    %cst_6 = arith.constant 1.280000e+02 : f32
    %12 = vector.broadcast %cst_6 : f32 to vector<1x64xf32>
    %13 = arith.divf %11, %12 : vector<1x64xf32>
    %c0_7 = arith.constant 0 : index
    %c0_8 = arith.constant 0 : index
    %14 = vector.load %arg3[%c0_7, %c0_8] : memref<2x64xf32, #tpu.memory_space<vmem>>, vector<1x64xf32>
    %cst_9 = arith.constant 9.99999974E-6 : f32
    %15 = vector.broadcast %cst_9 : f32 to vector<1x64xf32>
    %16 = arith.addf %13, %15 : vector<1x64xf32>
    %17 = math.rsqrt %16 : vector<1x64xf32>
    %18 = arith.mulf %14, %17 : vector<1x64xf32>
    %19 = vector.broadcast %18 : vector<1x64xf32> to vector<128x64xf32>
    %20 = arith.mulf %8, %19 : vector<128x64xf32>
    %c1 = arith.constant 1 : index
    %c0_10 = arith.constant 0 : index
    %21 = vector.load %arg3[%c1, %c0_10] : memref<2x64xf32, #tpu.memory_space<vmem>>, vector<1x64xf32>
    %22 = vector.broadcast %21 : vector<1x64xf32> to vector<128x64xf32>
    %23 = arith.addf %20, %22 : vector<128x64xf32>
    %cst_11 = arith.constant 0.000000e+00 : f32
    %24 = vector.broadcast %cst_11 : f32 to vector<128x64xf32>
    %25 = arith.cmpf ogt, %23, %24 : vector<128x64xf32>
    %cst_12 = arith.constant 0.00999999977 : f32
    %26 = vector.broadcast %cst_12 : f32 to vector<128x64xf32>
    %27 = arith.mulf %26, %23 : vector<128x64xf32>
    %28 = arith.select %25, %23, %27 : vector<128x64xi1>, vector<128x64xf32>
    %29 = vector.extract_strided_slice %28 {offsets = [0, 0], sizes = [32, 64], strides = [1, 1]} : vector<128x64xf32> to vector<32x64xf32>
    %30 = vector.extract_strided_slice %28 {offsets = [32, 0], sizes = [32, 64], strides = [1, 1]} : vector<128x64xf32> to vector<32x64xf32>
    %31 = arith.maximumf %29, %30 : vector<32x64xf32>
    %32 = vector.extract_strided_slice %28 {offsets = [64, 0], sizes = [32, 64], strides = [1, 1]} : vector<128x64xf32> to vector<32x64xf32>
    %33 = vector.extract_strided_slice %28 {offsets = [96, 0], sizes = [32, 64], strides = [1, 1]} : vector<128x64xf32> to vector<32x64xf32>
    %34 = arith.maximumf %32, %33 : vector<32x64xf32>
    %35 = arith.maximumf %31, %34 : vector<32x64xf32>
    %36 = arith.truncf %35 : vector<32x64xf32> to vector<32x64xbf16>
    %c0_13 = arith.constant 0 : index
    %c0_14 = arith.constant 0 : index
    %37 = vector.load %arg4[%c0_13, %c0_14] : memref<32x64xbf16, #tpu.memory_space<vmem>>, vector<32x64xbf16>
    tpu.vector_store %arg4[%c0_13, %c0_14], %36 {strides = array<i32>} : memref<32x64xbf16, #tpu.memory_space<vmem>>, vector<32x64xbf16>,
    return
  }
  func.func @transform_0(%arg0: i32) -> (i32, i32) {
    %c0_i32 = arith.constant 0 : i32
    %c0_i32_0 = arith.constant 0 : i32
    %c0_i32_1 = arith.constant 0 : i32
    return %c0_i32, %c0_i32_0 : i32, i32
  }
  func.func @transform_1(%arg0: i32) -> (i32, i32) {
    %c0_i32 = arith.constant 0 : i32
    %c0_i32_0 = arith.constant 0 : i32
    %c0_i32_1 = arith.constant 0 : i32
    return %c0_i32, %c0_i32_0 : i32, i32
  }
  func.func @transform_2(%arg0: i32) -> (i32, i32) {
    %c0_i32 = arith.constant 0 : i32
    %c0_i32_0 = arith.constant 0 : i32
    %c0_i32_1 = arith.constant 0 : i32
    return %c0_i32, %c0_i32_0 : i32, i32
  }
  func.func @transform_3(%arg0: i32) -> (i32, i32) {
    %c0_i32 = arith.constant 0 : i32
    %c0_i32_0 = arith.constant 0 : i32
    %c0_i32_1 = arith.constant 0 : i32
    return %c0_i32, %c0_i32_0 : i32, i32
  }
}

module attributes {stable_mosaic.version = 11 : i64} {
  func.func @_heads_kernel(%arg0: i32, %arg1: memref<2x1024xbf16, #tpu.memory_space<vmem>>, %arg2: memref<1024x512xbf16, #tpu.memory_space<vmem>>, %arg3: memref<1x512xf32, #tpu.memory_space<vmem>>, %arg4: memref<512x11xbf16, #tpu.memory_space<vmem>>, %arg5: memref<1x11xf32, #tpu.memory_space<vmem>>, %arg6: memref<2x11xf32, #tpu.memory_space<vmem>>) attributes {dimension_semantics = [#tpu.dimension_semantics<arbitrary>], iteration_bounds = array<i64: 1>, scalar_prefetch = 0 : i64, scratch_operands = 0 : i64, tpu.core_type = #tpu.core_type<tc>, window_params = [{pipeline_mode = #tpu.pipeline_mode<synchronous>, transform_indices = @transform_0, window_bounds = array<i64: 2, 1024>}, {pipeline_mode = #tpu.pipeline_mode<synchronous>, transform_indices = @transform_1, window_bounds = array<i64: 1024, 512>}, {pipeline_mode = #tpu.pipeline_mode<synchronous>, transform_indices = @transform_2, window_bounds = array<i64: 1, 512>}, {pipeline_mode = #tpu.pipeline_mode<synchronous>, transform_indices = @transform_3, window_bounds = array<i64: 512, 11>}, {pipeline_mode = #tpu.pipeline_mode<synchronous>, transform_indices = @transform_4, window_bounds = array<i64: 1, 11>}, {pipeline_mode = #tpu.pipeline_mode<synchronous>, transform_indices = @transform_5, window_bounds = array<i64: 2, 11>}]} {
    %c0 = arith.constant 0 : index
    %c0_0 = arith.constant 0 : index
    %0 = vector.load %arg1[%c0, %c0_0] : memref<2x1024xbf16, #tpu.memory_space<vmem>>, vector<2x1024xbf16>
    %c0_1 = arith.constant 0 : index
    %c0_2 = arith.constant 0 : index
    %1 = vector.load %arg2[%c0_1, %c0_2] : memref<1024x512xbf16, #tpu.memory_space<vmem>>, vector<1024x512xbf16>
    %cst = arith.constant dense<0.000000e+00> : vector<2x512xf32>
    %2 = tpu.matmul %0, %1, %cst {dimension_numbers = #tpu.dot_dimension_numbers<[1], [0], [0], [1], [0, 0, 1, 1], [], []>} : vector<2x1024xbf16>, vector<1024x512xbf16>, vector<2x512xf32> -> vector<2x512xf32>
    %c0_3 = arith.constant 0 : index
    %c0_4 = arith.constant 0 : index
    %3 = vector.load %arg3[%c0_3, %c0_4] : memref<1x512xf32, #tpu.memory_space<vmem>>, vector<1x512xf32>
    %4 = vector.broadcast %3 : vector<1x512xf32> to vector<2x512xf32>
    %5 = arith.addf %2, %4 : vector<2x512xf32>
    %cst_5 = arith.constant 0.000000e+00 : f32
    %6 = vector.broadcast %cst_5 : f32 to vector<2x512xf32>
    %7 = arith.cmpf ogt, %5, %6 : vector<2x512xf32>
    %cst_6 = arith.constant 0.00999999977 : f32
    %8 = vector.broadcast %cst_6 : f32 to vector<2x512xf32>
    %9 = arith.mulf %8, %5 : vector<2x512xf32>
    %10 = arith.select %7, %5, %9 : vector<2x512xi1>, vector<2x512xf32>
    %11 = arith.truncf %10 : vector<2x512xf32> to vector<2x512xbf16>
    %c0_7 = arith.constant 0 : index
    %c0_8 = arith.constant 0 : index
    %12 = vector.load %arg4[%c0_7, %c0_8] : memref<512x11xbf16, #tpu.memory_space<vmem>>, vector<512x11xbf16>
    %cst_9 = arith.constant dense<0.000000e+00> : vector<2x11xf32>
    %13 = tpu.matmul %11, %12, %cst_9 {dimension_numbers = #tpu.dot_dimension_numbers<[1], [0], [0], [1], [0, 0, 1, 1], [], []>} : vector<2x512xbf16>, vector<512x11xbf16>, vector<2x11xf32> -> vector<2x11xf32>
    %c0_10 = arith.constant 0 : index
    %c0_11 = arith.constant 0 : index
    %14 = vector.load %arg5[%c0_10, %c0_11] : memref<1x11xf32, #tpu.memory_space<vmem>>, vector<1x11xf32>
    %15 = vector.broadcast %14 : vector<1x11xf32> to vector<2x11xf32>
    %16 = arith.addf %13, %15 : vector<2x11xf32>
    %c0_12 = arith.constant 0 : index
    %c0_13 = arith.constant 0 : index
    %17 = vector.load %arg6[%c0_12, %c0_13] : memref<2x11xf32, #tpu.memory_space<vmem>>, vector<2x11xf32>
    tpu.vector_store %arg6[%c0_12, %c0_13], %16 {strides = array<i32>} : memref<2x11xf32, #tpu.memory_space<vmem>>, vector<2x11xf32>,
    return
  }
  func.func @transform_0(%arg0: i32) -> (i32, i32) {
    %c0_i32 = arith.constant 0 : i32
    %c0_i32_0 = arith.constant 0 : i32
    %c0_i32_1 = arith.constant 0 : i32
    return %c0_i32, %c0_i32_0 : i32, i32
  }
  func.func @transform_1(%arg0: i32) -> (i32, i32) {
    %c0_i32 = arith.constant 0 : i32
    %c0_i32_0 = arith.constant 0 : i32
    %c0_i32_1 = arith.constant 0 : i32
    return %c0_i32, %c0_i32_0 : i32, i32
  }
  func.func @transform_2(%arg0: i32) -> (i32, i32) {
    %c0_i32 = arith.constant 0 : i32
    %c0_i32_0 = arith.constant 0 : i32
    %c0_i32_1 = arith.constant 0 : i32
    return %c0_i32, %c0_i32_0 : i32, i32
  }
  func.func @transform_3(%arg0: i32) -> (i32, i32) {
    %c0_i32 = arith.constant 0 : i32
    %c0_i32_0 = arith.constant 0 : i32
    %c0_i32_1 = arith.constant 0 : i32
    return %c0_i32, %c0_i32_0 : i32, i32
  }
  func.func @transform_4(%arg0: i32) -> (i32, i32) {
    %c0_i32 = arith.constant 0 : i32
    %c0_i32_0 = arith.constant 0 : i32
    %c0_i32_1 = arith.constant 0 : i32
    return %c0_i32, %c0_i32_0 : i32, i32
  }
  func.func @transform_5(%arg0: i32) -> (i32, i32) {
    %c0_i32 = arith.constant 0 : i32
    %c0_i32_0 = arith.constant 0 : i32
    %c0_i32_1 = arith.constant 0 : i32
    return %c0_i32, %c0_i32_0 : i32, i32
  }
}

</mosaic_0001>

<llo_original>
// kernel: dann_forward.3
$region0: #{dann_forward.3}
  #allocation0 [shape = 'u32[]', space=smem, size = 0x4, offset = 0x4, fixed_abs, tag = 'smem constant byte address 0x4 - core index']
  #allocation1 [shape = 'u32[144,128]{1,0:T(1,128)}', space=vmem, size = 0x12000, scoped, tag = 'internal scratch']
  %s0 = inlined_call_operand.vmem [shape: bf16[1152,128], index: 0, kind: input, shape index: {}]
  %s1 = inlined_call_operand.vmem [shape: bf16[128,32], index: 1, kind: input, shape index: {}]
  %s2 = inlined_call_operand.vmem [shape: f32[2,32], index: 2, kind: input, shape index: {}]
  %s3 = inlined_call_operand.vmem [shape: bf16[288,32], index: 3, kind: output, shape index: {}]
  %s4 = sld [smem:[#allocation0]]
  $region22: #{dann_forward.3} parent=0
    _
  %s6 = ssub.s32 1, %s4
  %s7 = scalar_select 0, %s6, %s4
  // Predicated region
  $region2: #{dann_forward.3} parent=0 // pred_check
    _
  $region3: #{dann_forward.3} parent=0 // pred_check_branch
    %9 = sbr.rel (0) target = $region5
  $region4: #{dann_forward.3} parent=0 // pred_region
    _
  $region5: #{dann_forward.3} parent=0 // pred_fallthru
    _
  // Predicated region
  $region6: #{dann_forward.3} parent=0 // pred_check
    _
  $region7: #{dann_forward.3} parent=0 // pred_check_branch
    %11 = sbr.rel (0) target = $region9
  $region8: #{dann_forward.3} parent=0 // pred_region
    _
  $region9: #{dann_forward.3} parent=0 // pred_fallthru
    _
  // Predicated region
  $region10: #{dann_forward.3} parent=0 // pred_check
    _
  $region11: #{dann_forward.3} parent=0 // pred_check_branch
    %13 = sbr.rel (0) target = $region13
  $region12: #{dann_forward.3} parent=0 // pred_region
    _
  $region13: #{dann_forward.3} parent=0 // pred_fallthru
    _
  %v15 = vld [vmem:[%s0] sm:$0xf]
  %v16 = vld [vmem:[%s0 + $0x4] sm:$0xf]
  %v17 = vld [vmem:[%s0 + $0x8] sm:$0xf]
  %v18 = vld [vmem:[%s0 + $0xc] sm:$0xf]
  %v19 = vld [vmem:[%s0 + $0x10] sm:$0xf]
  %v20 = vld [vmem:[%s0 + $0x14] sm:$0xf]
  %v21 = vld [vmem:[%s0 + $0x18] sm:$0xf]
  %v22 = vld [vmem:[%s0 + $0x1c] sm:$0xf]
  %v23 = vld [vmem:[%s0 + $0x20] sm:$0xf]
  %v24 = vld [vmem:[%s0 + $0x24] sm:$0xf]
  %v25 = vld [vmem:[%s0 + $0x28] sm:$0xf]
  %v26 = vld [vmem:[%s0 + $0x2c] sm:$0xf]
  %v27 = vld [vmem:[%s0 + $0x30] sm:$0xf]
  %v28 = vld [vmem:[%s0 + $0x34] sm:$0xf]
  %v29 = vld [vmem:[%s0 + $0x38] sm:$0xf]
  %v30 = vld [vmem:[%s0 + $0x3c] sm:$0xf]
  %v31 = vld [vmem:[%s0 + $0x40] sm:$0xf]
  %v32 = vld [vmem:[%s0 + $0x44] sm:$0xf]
  %v33 = vld [vmem:[%s0 + $0x48] sm:$0xf]
  %v34 = vld [vmem:[%s0 + $0x4c] sm:$0xf]
  %v35 = vld [vmem:[%s0 + $0x50] sm:$0xf]
  %v36 = vld [vmem:[%s0 + $0x54] sm:$0xf]
  %v37 = vld [vmem:[%s0 + $0x58] sm:$0xf]
  %v38 = vld [vmem:[%s0 + $0x5c] sm:$0xf]
  %v39 = vld [vmem:[%s0 + $0x60] sm:$0xf]
  %v40 = vld [vmem:[%s0 + $0x64] sm:$0xf]
  %v41 = vld [vmem:[%s0 + $0x68] sm:$0xf]
  %v42 = vld [vmem:[%s0 + $0x6c] sm:$0xf]
  %v43 = vld [vmem:[%s0 + $0x70] sm:$0xf]
  %v44 = vld [vmem:[%s0 + $0x74] sm:$0xf]
  %v45 = vld [vmem:[%s0 + $0x78] sm:$0xf]
  %v46 = vld [vmem:[%s0 + $0x7c] sm:$0xf]
  %v47 = vld [vmem:[%s0 + $0x80] sm:$0xf]
  %v48 = vld [vmem:[%s0 + $0x84] sm:$0xf]
  %v49 = vld [vmem:[%s0 + $0x88] sm:$0xf]
  %v50 = vld [vmem:[%s0 + $0x8c] sm:$0xf]
  %v51 = vld [vmem:[%s0 + $0x90] sm:$0xf]
  %v52 = vld [vmem:[%s0 + $0x94] sm:$0xf]
  %v53 = vld [vmem:[%s0 + $0x98] sm:$0xf]
  %v54 = vld [vmem:[%s0 + $0x9c] sm:$0xf]
  %v55 = vld [vmem:[%s0 + $0xa0] sm:$0xf]
  %v56 = vld [vmem:[%s0 + $0xa4] sm:$0xf]
  %v57 = vld [vmem:[%s0 + $0xa8] sm:$0xf]
  %v58 = vld [vmem:[%s0 + $0xac] sm:$0xf]
  %v59 = vld [vmem:[%s0 + $0xb0] sm:$0xf]
  %v60 = vld [vmem:[%s0 + $0xb4] sm:$0xf]
  %v61 = vld [vmem:[%s0 + $0xb8] sm:$0xf]
  %v62 = vld [vmem:[%s0 + $0xbc] sm:$0xf]
  %v63 = vld [vmem:[%s0 + $0xc0] sm:$0xf]
  %v64 = vld [vmem:[%s0 + $0xc4] sm:$0xf]
  %v65 = vld [vmem:[%s0 + $0xc8] sm:$0xf]
  %v66 = vld [vmem:[%s0 + $0xcc] sm:$0xf]
  %v67 = vld [vmem:[%s0 + $0xd0] sm:$0xf]
  %v68 = vld [vmem:[%s0 + $0xd4] sm:$0xf]
  %v69 = vld [vmem:[%s0 + $0xd8] sm:$0xf]
  %v70 = vld [vmem:[%s0 + $0xdc] sm:$0xf]
  %v71 = vld [vmem:[%s0 + $0xe0] sm:$0xf]
  %v72 = vld [vmem:[%s0 + $0xe4] sm:$0xf]
  %v73 = vld [vmem:[%s0 + $0xe8] sm:$0xf]
  %v74 = vld [vmem:[%s0 + $0xec] sm:$0xf]
  %v75 = vld [vmem:[%s0 + $0xf0] sm:$0xf]
  %v76 = vld [vmem:[%s0 + $0xf4] sm:$0xf]
  %v77 = vld [vmem:[%s0 + $0xf8] sm:$0xf]
  %v78 = vld [vmem:[%s0 + $0xfc] sm:$0xf]
  %v79 = vld [vmem:[%s0 + $0x100] sm:$0xf]
  %v80 = vld [vmem:[%s0 + $0x104] sm:$0xf]
  %v81 = vld [vmem:[%s0 + $0x108] sm:$0xf]
  %v82 = vld [vmem:[%s0 + $0x10c] sm:$0xf]
  %v83 = vld [vmem:[%s0 + $0x110] sm:$0xf]
  %v84 = vld [vmem:[%s0 + $0x114] sm:$0xf]
  %v85 = vld [vmem:[%s0 + $0x118] sm:$0xf]
  %v86 = vld [vmem:[%s0 + $0x11c] sm:$0xf]
  %v87 = vld [vmem:[%s0 + $0x120] sm:$0xf]
  %v88 = vld [vmem:[%s0 + $0x124] sm:$0xf]
  %v89 = vld [vmem:[%s0 + $0x128] sm:$0xf]
  %v90 = vld [vmem:[%s0 + $0x12c] sm:$0xf]
  %v91 = vld [vmem:[%s0 + $0x130] sm:$0xf]
  %v92 = vld [vmem:[%s0 + $0x134] sm:$0xf]
  %v93 = vld [vmem:[%s0 + $0x138] sm:$0xf]
  %v94 = vld [vmem:[%s0 + $0x13c] sm:$0xf]
  %v95 = vld [vmem:[%s0 + $0x140] sm:$0xf]
  %v96 = vld [vmem:[%s0 + $0x144] sm:$0xf]
  %v97 = vld [vmem:[%s0 + $0x148] sm:$0xf]
  %v98 = vld [vmem:[%s0 + $0x14c] sm:$0xf]
  %v99 = vld [vmem:[%s0 + $0x150] sm:$0xf]
  %v100 = vld [vmem:[%s0 + $0x154] sm:$0xf]
  %v101 = vld [vmem:[%s0 + $0x158] sm:$0xf]
  %v102 = vld [vmem:[%s0 + $0x15c] sm:$0xf]
  %v103 = vld [vmem:[%s0 + $0x160] sm:$0xf]
  %v104 = vld [vmem:[%s0 + $0x164] sm:$0xf]
  %v105 = vld [vmem:[%s0 + $0x168] sm:$0xf]
  %v106 = vld [vmem:[%s0 + $0x16c] sm:$0xf]
  %v107 = vld [vmem:[%s0 + $0x170] sm:$0xf]
  %v108 = vld [vmem:[%s0 + $0x174] sm:$0xf]
  %v109 = vld [vmem:[%s0 + $0x178] sm:$0xf]
  %v110 = vld [vmem:[%s0 + $0x17c] sm:$0xf]
  %v111 = vld [vmem:[%s0 + $0x180] sm:$0xf]
  %v112 = vld [vmem:[%s0 + $0x184] sm:$0xf]
  %v113 = vld [vmem:[%s0 + $0x188] sm:$0xf]
  %v114 = vld [vmem:[%s0 + $0x18c] sm:$0xf]
  %v115 = vld [vmem:[%s0 + $0x190] sm:$0xf]
  %v116 = vld [vmem:[%s0 + $0x194] sm:$0xf]
  %v117 = vld [vmem:[%s0 + $0x198] sm:$0xf]
  %v118 = vld [vmem:[%s0 + $0x19c] sm:$0xf]
  %v119 = vld [vmem:[%s0 + $0x1a0] sm:$0xf]
  %v120 = vld [vmem:[%s0 + $0x1a4] sm:$0xf]
  %v121 = vld [vmem:[%s0 + $0x1a8] sm:$0xf]
  %v122 = vld [vmem:[%s0 + $0x1ac] sm:$0xf]
  %v123 = vld [vmem:[%s0 + $0x1b0] sm:$0xf]
  %v124 = vld [vmem:[%s0 + $0x1b4] sm:$0xf]
  %v125 = vld [vmem:[%s0 + $0x1b8] sm:$0xf]
  %v126 = vld [vmem:[%s0 + $0x1bc] sm:$0xf]
  %v127 = vld [vmem:[%s0 + $0x1c0] sm:$0xf]
  %v128 = vld [vmem:[%s0 + $0x1c4] sm:$0xf]
  %v129 = vld [vmem:[%s0 + $0x1c8] sm:$0xf]
  %v130 = vld [vmem:[%s0 + $0x1cc] sm:$0xf]
  %v131 = vld [vmem:[%s0 + $0x1d0] sm:$0xf]
  %v132 = vld [vmem:[%s0 + $0x1d4] sm:$0xf]
  %v133 = vld [vmem:[%s0 + $0x1d8] sm:$0xf]
  %v134 = vld [vmem:[%s0 + $0x1dc] sm:$0xf]
  %v135 = vld [vmem:[%s0 + $0x1e0] sm:$0xf]
  %v136 = vld [vmem:[%s0 + $0x1e4] sm:$0xf]
  %v137 = vld [vmem:[%s0 + $0x1e8] sm:$0xf]
  %v138 = vld [vmem:[%s0 + $0x1ec] sm:$0xf]
  %v139 = vld [vmem:[%s0 + $0x1f0] sm:$0xf]
  %v140 = vld [vmem:[%s0 + $0x1f4] sm:$0xf]
  %v141 = vld [vmem:[%s0 + $0x1f8] sm:$0xf]
  %v142 = vld [vmem:[%s0 + $0x1fc] sm:$0xf]
  %v143 = vld [vmem:[%s0 + $0x200] sm:$0xf]
  %v144 = vld [vmem:[%s0 + $0x204] sm:$0xf]
  %v145 = vld [vmem:[%s0 + $0x208] sm:$0xf]
  %v146 = vld [vmem:[%s0 + $0x20c] sm:$0xf]
  %v147 = vld [vmem:[%s0 + $0x210] sm:$0xf]
  %v148 = vld [vmem:[%s0 + $0x214] sm:$0xf]
  %v149 = vld [vmem:[%s0 + $0x218] sm:$0xf]
  %v150 = vld [vmem:[%s0 + $0x21c] sm:$0xf]
  %v151 = vld [vmem:[%s0 + $0x220] sm:$0xf]
  %v152 = vld [vmem:[%s0 + $0x224] sm:$0xf]
  %v153 = vld [vmem:[%s0 + $0x228] sm:$0xf]
  %v154 = vld [vmem:[%s0 + $0x22c] sm:$0xf]
  %v155 = vld [vmem:[%s0 + $0x230] sm:$0xf]
  %v156 = vld [vmem:[%s0 + $0x234] sm:$0xf]
  %v157 = vld [vmem:[%s0 + $0x238] sm:$0xf]
  %v158 = vld [vmem:[%s0 + $0x23c] sm:$0xf]
  %v159 = vld [vmem:[%s1] sm:$0xf]
  %v160 = vld [vmem:[%s1 + $0x4] sm:$0xf]
  %v161 = vld [vmem:[%s1 + $0x8] sm:$0xf]
  %v162 = vld [vmem:[%s1 + $0xc] sm:$0xf]
  %v163 = vld [vmem:[%s1 + $0x10] sm:$0xf]
  %v164 = vld [vmem:[%s1 + $0x14] sm:$0xf]
  %v165 = vld [vmem:[%s1 + $0x18] sm:$0xf]
  %v166 = vld [vmem:[%s1 + $0x1c] sm:$0xf]
  %v167 = vld [vmem:[%s1 + $0x20] sm:$0xf]
  %v168 = vld [vmem:[%s1 + $0x24] sm:$0xf]
  %v169 = vld [vmem:[%s1 + $0x28] sm:$0xf]
  %v170 = vld [vmem:[%s1 + $0x2c] sm:$0xf]
  %v171 = vld [vmem:[%s1 + $0x30] sm:$0xf]
  %v172 = vld [vmem:[%s1 + $0x34] sm:$0xf]
  %v173 = vld [vmem:[%s1 + $0x38] sm:$0xf]
  %v174 = vld [vmem:[%s1 + $0x3c] sm:$0xf]
  %v319 = vunpack.c.l.b16 %v15
  %v320 = vunpack.c.l.b16 %v16
  %v321 = vunpack.c.l.b16 %v17
  %v322 = vunpack.c.l.b16 %v18
  %v323 = vunpack.c.l.b16 %v19
  %v324 = vunpack.c.l.b16 %v20
  %v325 = vunpack.c.l.b16 %v21
  %v326 = vunpack.c.l.b16 %v22
  %v327 = vunpack.c.l.b16 %v23
  %v328 = vunpack.c.l.b16 %v24
  %v329 = vunpack.c.l.b16 %v25
  %v330 = vunpack.c.l.b16 %v26
  %v331 = vunpack.c.l.b16 %v27
  %v332 = vunpack.c.l.b16 %v28
  %v333 = vunpack.c.l.b16 %v29
  %v334 = vunpack.c.l.b16 %v30
  %v335 = vunpack.c.l.b16 %v31
  %v336 = vunpack.c.l.b16 %v32
  %v337 = vunpack.c.l.b16 %v33
  %v338 = vunpack.c.l.b16 %v34
  %v339 = vunpack.c.l.b16 %v35
  %v340 = vunpack.c.l.b16 %v36
  %v341 = vunpack.c.l.b16 %v37
  %v342 = vunpack.c.l.b16 %v38
  %v343 = vunpack.c.l.b16 %v39
  %v344 = vunpack.c.l.b16 %v40
  %v345 = vunpack.c.l.b16 %v41
  %v346 = vunpack.c.l.b16 %v42
  %v347 = vunpack.c.l.b16 %v43
  %v348 = vunpack.c.l.b16 %v44
  %v349 = vunpack.c.l.b16 %v45
  %v350 = vunpack.c.l.b16 %v46
  %v351 = vunpack.c.l.b16 %v47
  %v352 = vunpack.c.l.b16 %v48
  %v353 = vunpack.c.l.b16 %v49
  %v354 = vunpack.c.l.b16 %v50
  %v355 = vunpack.c.l.b16 %v51
  %v356 = vunpack.c.l.b16 %v52
  %v357 = vunpack.c.l.b16 %v53
  %v358 = vunpack.c.l.b16 %v54
  %v359 = vunpack.c.l.b16 %v55
  %v360 = vunpack.c.l.b16 %v56
  %v361 = vunpack.c.l.b16 %v57
  %v362 = vunpack.c.l.b16 %v58
  %v363 = vunpack.c.l.b16 %v59
  %v364 = vunpack.c.l.b16 %v60
  %v365 = vunpack.c.l.b16 %v61
  %v366 = vunpack.c.l.b16 %v62
  %v367 = vunpack.c.l.b16 %v63
  %v368 = vunpack.c.l.b16 %v64
  %v369 = vunpack.c.l.b16 %v65
  %v370 = vunpack.c.l.b16 %v66
  %v371 = vunpack.c.l.b16 %v67
  %v372 = vunpack.c.l.b16 %v68
  %v373 = vunpack.c.l.b16 %v69
  %v374 = vunpack.c.l.b16 %v70
  %v375 = vunpack.c.l.b16 %v71
  %v376 = vunpack.c.l.b16 %v72
  %v377 = vunpack.c.l.b16 %v73
  %v378 = vunpack.c.l.b16 %v74
  %v379 = vunpack.c.l.b16 %v75
  %v380 = vunpack.c.l.b16 %v76
  %v381 = vunpack.c.l.b16 %v77
  %v382 = vunpack.c.l.b16 %v78
  %v383 = vunpack.c.l.b16 %v79
  %v384 = vunpack.c.l.b16 %v80
  %v385 = vunpack.c.l.b16 %v81
  %v386 = vunpack.c.l.b16 %v82
  %v387 = vunpack.c.l.b16 %v83
  %v388 = vunpack.c.l.b16 %v84
  %v389 = vunpack.c.l.b16 %v85
  %v390 = vunpack.c.l.b16 %v86
  %v391 = vunpack.c.l.b16 %v87
  %v392 = vunpack.c.l.b16 %v88
  %v393 = vunpack.c.l.b16 %v89
  %v394 = vunpack.c.l.b16 %v90
  %v395 = vunpack.c.l.b16 %v91
  %v396 = vunpack.c.l.b16 %v92
  %v397 = vunpack.c.l.b16 %v93
  %v398 = vunpack.c.l.b16 %v94
  %v399 = vunpack.c.l.b16 %v95
  %v400 = vunpack.c.l.b16 %v96
  %v401 = vunpack.c.l.b16 %v97
  %v402 = vunpack.c.l.b16 %v98
  %v403 = vunpack.c.l.b16 %v99
  %v404 = vunpack.c.l.b16 %v100
  %v405 = vunpack.c.l.b16 %v101
  %v406 = vunpack.c.l.b16 %v102
  %v407 = vunpack.c.l.b16 %v103
  %v408 = vunpack.c.l.b16 %v104
  %v409 = vunpack.c.l.b16 %v105
  %v410 = vunpack.c.l.b16 %v106
  %v411 = vunpack.c.l.b16 %v107
  %v412 = vunpack.c.l.b16 %v108
  %v413 = vunpack.c.l.b16 %v109
  %v414 = vunpack.c.l.b16 %v110
  %v415 = vunpack.c.l.b16 %v111
  %v416 = vunpack.c.l.b16 %v112
  %v417 = vunpack.c.l.b16 %v113
  %v418 = vunpack.c.l.b16 %v114
  %v419 = vunpack.c.l.b16 %v115
  %v420 = vunpack.c.l.b16 %v116
  %v421 = vunpack.c.l.b16 %v117
  %v422 = vunpack.c.l.b16 %v118
  %v423 = vunpack.c.l.b16 %v119
  %v424 = vunpack.c.l.b16 %v120
  %v425 = vunpack.c.l.b16 %v121
  %v426 = vunpack.c.l.b16 %v122
  %v427 = vunpack.c.l.b16 %v123
  %v428 = vunpack.c.l.b16 %v124
  %v429 = vunpack.c.l.b16 %v125
  %v430 = vunpack.c.l.b16 %v126
  %v431 = vunpack.c.l.b16 %v127
  %v432 = vunpack.c.l.b16 %v128
  %v433 = vunpack.c.l.b16 %v129
  %v434 = vunpack.c.l.b16 %v130
  %v435 = vunpack.c.l.b16 %v131
  %v436 = vunpack.c.l.b16 %v132
  %v437 = vunpack.c.l.b16 %v133
  %v438 = vunpack.c.l.b16 %v134
  %v439 = vunpack.c.l.b16 %v135
  %v440 = vunpack.c.l.b16 %v136
  %v441 = vunpack.c.l.b16 %v137
  %v442 = vunpack.c.l.b16 %v138
  %v443 = vunpack.c.l.b16 %v139
  %v444 = vunpack.c.l.b16 %v140
  %v445 = vunpack.c.l.b16 %v141
  %v446 = vunpack.c.l.b16 %v142
  %v447 = vunpack.c.l.b16 %v143
  %v448 = vunpack.c.l.b16 %v144
  %v449 = vunpack.c.l.b16 %v145
  %v450 = vunpack.c.l.b16 %v146
  %v451 = vunpack.c.l.b16 %v147
  %v452 = vunpack.c.l.b16 %v148
  %v453 = vunpack.c.l.b16 %v149
  %v454 = vunpack.c.l.b16 %v150
  %v455 = vunpack.c.l.b16 %v151
  %v456 = vunpack.c.l.b16 %v152
  %v457 = vunpack.c.l.b16 %v153
  %v458 = vunpack.c.l.b16 %v154
  %v459 = vunpack.c.l.b16 %v155
  %v460 = vunpack.c.l.b16 %v156
  %v461 = vunpack.c.l.b16 %v157
  %v462 = vunpack.c.l.b16 %v158
  %v463 = vpack.c.b16 %v320, %v319
  %v464 = vpack.c.b16 %v322, %v321
  %v465 = vpack.c.b16 %v324, %v323
  %v466 = vpack.c.b16 %v326, %v325
  %v467 = vpack.c.b16 %v328, %v327
  %v468 = vpack.c.b16 %v330, %v329
  %v469 = vpack.c.b16 %v332, %v331
  %v470 = vpack.c.b16 %v334, %v333
  %v471 = vpack.c.b16 %v336, %v335
  %v472 = vpack.c.b16 %v338, %v337
  %v473 = vpack.c.b16 %v340, %v339
  %v474 = vpack.c.b16 %v342, %v341
  %v475 = vpack.c.b16 %v344, %v343
  %v476 = vpack.c.b16 %v346, %v345
  %v477 = vpack.c.b16 %v348, %v347
  %v478 = vpack.c.b16 %v350, %v349
  %v479 = vpack.c.b16 %v352, %v351
  %v480 = vpack.c.b16 %v354, %v353
  %v481 = vpack.c.b16 %v356, %v355
  %v482 = vpack.c.b16 %v358, %v357
  %v483 = vpack.c.b16 %v360, %v359
  %v484 = vpack.c.b16 %v362, %v361
  %v485 = vpack.c.b16 %v364, %v363
  %v486 = vpack.c.b16 %v366, %v365
  %v487 = vpack.c.b16 %v368, %v367
  %v488 = vpack.c.b16 %v370, %v369
  %v489 = vpack.c.b16 %v372, %v371
  %v490 = vpack.c.b16 %v374, %v373
  %v491 = vpack.c.b16 %v376, %v375
  %v492 = vpack.c.b16 %v378, %v377
  %v493 = vpack.c.b16 %v380, %v379
  %v494 = vpack.c.b16 %v382, %v381
  %v495 = vpack.c.b16 %v384, %v383
  %v496 = vpack.c.b16 %v386, %v385
  %v497 = vpack.c.b16 %v388, %v387
  %v498 = vpack.c.b16 %v390, %v389
  %v499 = vpack.c.b16 %v392, %v391
  %v500 = vpack.c.b16 %v394, %v393
  %v501 = vpack.c.b16 %v396, %v395
  %v502 = vpack.c.b16 %v398, %v397
  %v503 = vpack.c.b16 %v400, %v399
  %v504 = vpack.c.b16 %v402, %v401
  %v505 = vpack.c.b16 %v404, %v403
  %v506 = vpack.c.b16 %v406, %v405
  %v507 = vpack.c.b16 %v408, %v407
  %v508 = vpack.c.b16 %v410, %v409
  %v509 = vpack.c.b16 %v412, %v411
  %v510 = vpack.c.b16 %v414, %v413
  %v511 = vpack.c.b16 %v416, %v415
  %v512 = vpack.c.b16 %v418, %v417
  %v513 = vpack.c.b16 %v420, %v419
  %v514 = vpack.c.b16 %v422, %v421
  %v515 = vpack.c.b16 %v424, %v423
  %v516 = vpack.c.b16 %v426, %v425
  %v517 = vpack.c.b16 %v428, %v427
  %v518 = vpack.c.b16 %v430, %v429
  %v519 = vpack.c.b16 %v432, %v431
  %v520 = vpack.c.b16 %v434, %v433
  %v521 = vpack.c.b16 %v436, %v435
  %v522 = vpack.c.b16 %v438, %v437
  %v523 = vpack.c.b16 %v440, %v439
  %v524 = vpack.c.b16 %v442, %v441
  %v525 = vpack.c.b16 %v444, %v443
  %v526 = vpack.c.b16 %v446, %v445
  %v527 = vpack.c.b16 %v448, %v447
  %v528 = vpack.c.b16 %v450, %v449
  %v529 = vpack.c.b16 %v452, %v451
  %v530 = vpack.c.b16 %v454, %v453
  %v531 = vpack.c.b16 %v456, %v455
  %v532 = vpack.c.b16 %v458, %v457
  %v533 = vpack.c.b16 %v460, %v459
  %v534 = vpack.c.b16 %v462, %v461
  %v623 = vunpack.c.l.b16 %v159
  %v624 = vunpack.c.l.b16 %v160
  %v625 = vunpack.c.l.b16 %v161
  %v626 = vunpack.c.l.b16 %v162
  %v627 = vunpack.c.l.b16 %v163
  %v628 = vunpack.c.l.b16 %v164
  %v629 = vunpack.c.l.b16 %v165
  %v630 = vunpack.c.l.b16 %v166
  %v631 = vunpack.c.l.b16 %v167
  %v632 = vunpack.c.l.b16 %v168
  %v633 = vunpack.c.l.b16 %v169
  %v634 = vunpack.c.l.b16 %v170
  %v635 = vunpack.c.l.b16 %v171
  %v636 = vunpack.c.l.b16 %v172
  %v637 = vunpack.c.l.b16 %v173
  %v638 = vunpack.c.l.b16 %v174
  %v639 = vpack.c.b16 %v624, %v623
  %v640 = vpack.c.b16 %v626, %v625
  %v641 = vpack.c.b16 %v628, %v627
  %v642 = vpack.c.b16 %v630, %v629
  %v643 = vpack.c.b16 %v632, %v631
  %v644 = vpack.c.b16 %v634, %v633
  %v645 = vpack.c.b16 %v636, %v635
  %v646 = vpack.c.b16 %v638, %v637
  %655 = vmatprep.subr.bf16.mxu0 0
  %656 = vmatpush1.bf16.msra.mxu0 %v646
  %657 = vmatprep.subr.bf16.mxu0 0
  %658 = vmatpush1.bf16.msra.mxu0 %v645
  %659 = vmatprep.subr.bf16.mxu0 0
  %660 = vmatpush1.bf16.msra.mxu0 %v644
  %661 = vmatprep.subr.bf16.mxu0 0
  %662 = vmatpush1.bf16.msra.mxu0 %v643
  %663 = vmatprep.subr.bf16.mxu0 0
  %664 = vmatpush1.bf16.msra.mxu0 %v642
  %665 = vmatprep.subr.bf16.mxu0 0
  %666 = vmatpush1.bf16.msra.mxu0 %v641
  %667 = vmatprep.subr.bf16.mxu0 0
  %668 = vmatpush1.bf16.msra.mxu0 %v640
  %669 = vmatprep.subr.bf16.mxu0 0
  %670 = vmatpush1.bf16.msra.mxu0 %v639
  %671 = vmatprep.subr.bf16.mxu0 0
  %672 = vmatpush2.bf16.msra.mxu0 0
  %673 = vmatprep.subr.bf16.mxu0 0
  %674 = vmatpush2.bf16.msra.mxu0 0
  %675 = vmatprep.subr.bf16.mxu0 0
  %676 = vmatpush2.bf16.msra.mxu0 0
  %677 = vmatprep.subr.bf16.mxu0 0
  %678 = vmatpush2.bf16.msra.mxu0 0
  %679 = vmatprep.subr.bf16.mxu0 0
  %680 = vmatpush2.bf16.msra.mxu0 0
  %681 = vmatprep.subr.bf16.mxu0 0
  %682 = vmatpush2.bf16.msra.mxu0 0
  %683 = vmatprep.subr.bf16.mxu0 0
  %684 = vmatpush2.bf16.msra.mxu0 0
  %685 = vmatprep.subr.bf16.mxu0 0
  %686 = vmatpush2.bf16.msra.mxu0 0
  %687 = vmatprep.mubr.bf16.mxu0 0
  %688 = vmatmul.mubr.bf16.gmra.mxu0 %v463
  %v689 = vpop.f32.mrf.mxu0
  %v690 = vadd.f32 0.0, %v689
  %v691 = vpop.f32.mrf.mxu0
  %v692 = vpop.f32.mrf.mxu0
  %v693 = vadd.f32 0.0, %v692
  %v694 = vpop.f32.mrf.mxu0
  %695 = vmatprep.mubr.bf16.mxu0 0
  %696 = vmatmul.mubr.bf16.gmra.mxu0 %v464
  %v697 = vpop.f32.mrf.mxu0
  %v698 = vadd.f32 0.0, %v697
  %v699 = vpop.f32.mrf.mxu0
  %v700 = vpop.f32.mrf.mxu0
  %v701 = vadd.f32 0.0, %v700
  %v702 = vpop.f32.mrf.mxu0
  %703 = vmatprep.mubr.bf16.mxu0 0
  %704 = vmatmul.mubr.bf16.gmra.mxu0 %v465
  %v705 = vpop.f32.mrf.mxu0
  %v706 = vadd.f32 0.0, %v705
  %v707 = vpop.f32.mrf.mxu0
  %v708 = vpop.f32.mrf.mxu0
  %v709 = vadd.f32 0.0, %v708
  %v710 = vpop.f32.mrf.mxu0
  %711 = vmatprep.mubr.bf16.mxu0 0
  %712 = vmatmul.mubr.bf16.gmra.mxu0 %v466
  %v713 = vpop.f32.mrf.mxu0
  %v714 = vadd.f32 0.0, %v713
  %v715 = vpop.f32.mrf.mxu0
  %v716 = vpop.f32.mrf.mxu0
  %v717 = vadd.f32 0.0, %v716
  %v718 = vpop.f32.mrf.mxu0
  %719 = vmatprep.mubr.bf16.mxu0 0
  %720 = vmatmul.mubr.bf16.gmra.mxu0 %v467
  %v721 = vpop.f32.mrf.mxu0
  %v722 = vadd.f32 0.0, %v721
  %v723 = vpop.f32.mrf.mxu0
  %v724 = vpop.f32.mrf.mxu0
  %v725 = vadd.f32 0.0, %v724
  %v726 = vpop.f32.mrf.mxu0
  %727 = vmatprep.mubr.bf16.mxu0 0
  %728 = vmatmul.mubr.bf16.gmra.mxu0 %v468
  %v729 = vpop.f32.mrf.mxu0
  %v730 = vadd.f32 0.0, %v729
  %v731 = vpop.f32.mrf.mxu0
  %v732 = vpop.f32.mrf.mxu0
  %v733 = vadd.f32 0.0, %v732
  %v734 = vpop.f32.mrf.mxu0
  %735 = vmatprep.mubr.bf16.mxu0 0
  %736 = vmatmul.mubr.bf16.gmra.mxu0 %v469
  %v737 = vpop.f32.mrf.mxu0
  %v738 = vadd.f32 0.0, %v737
  %v739 = vpop.f32.mrf.mxu0
  %v740 = vpop.f32.mrf.mxu0
  %v741 = vadd.f32 0.0, %v740
  %v742 = vpop.f32.mrf.mxu0
  %743 = vmatprep.mubr.bf16.mxu0 0
  %744 = vmatmul.mubr.bf16.gmra.mxu0 %v470
  %v745 = vpop.f32.mrf.mxu0
  %v746 = vadd.f32 0.0, %v745
  %v747 = vpop.f32.mrf.mxu0
  %v748 = vpop.f32.mrf.mxu0
  %v749 = vadd.f32 0.0, %v748
  %v750 = vpop.f32.mrf.mxu0
  %751 = vmatprep.mubr.bf16.mxu0 0
  %752 = vmatmul.mubr.bf16.gmra.mxu0 %v471
  %v753 = vpop.f32.mrf.mxu0
  %v754 = vadd.f32 0.0, %v753
  %v755 = vpop.f32.mrf.mxu0
  %v756 = vpop.f32.mrf.mxu0
  %v757 = vadd.f32 0.0, %v756
  %v758 = vpop.f32.mrf.mxu0
  %759 = vmatprep.mubr.bf16.mxu0 0
  %760 = vmatmul.mubr.bf16.gmra.mxu0 %v472
  %v761 = vpop.f32.mrf.mxu0
  %v762 = vadd.f32 0.0, %v761
  %v763 = vpop.f32.mrf.mxu0
  %v764 = vpop.f32.mrf.mxu0
  %v765 = vadd.f32 0.0, %v764
  %v766 = vpop.f32.mrf.mxu0
  %767 = vmatprep.mubr.bf16.mxu0 0
  %768 = vmatmul.mubr.bf16.gmra.mxu0 %v473
  %v769 = vpop.f32.mrf.mxu0
  %v770 = vadd.f32 0.0, %v769
  %v771 = vpop.f32.mrf.mxu0
  %v772 = vpop.f32.mrf.mxu0
  %v773 = vadd.f32 0.0, %v772
  %v774 = vpop.f32.mrf.mxu0
  %775 = vmatprep.mubr.bf16.mxu0 0
  %776 = vmatmul.mubr.bf16.gmra.mxu0 %v474
  %v777 = vpop.f32.mrf.mxu0
  %v778 = vadd.f32 0.0, %v777
  %v779 = vpop.f32.mrf.mxu0
  %v780 = vpop.f32.mrf.mxu0
  %v781 = vadd.f32 0.0, %v780
  %v782 = vpop.f32.mrf.mxu0
  %783 = vmatprep.mubr.bf16.mxu0 0
  %784 = vmatmul.mubr.bf16.gmra.mxu0 %v475
  %v785 = vpop.f32.mrf.mxu0
  %v786 = vadd.f32 0.0, %v785
  %v787 = vpop.f32.mrf.mxu0
  %v788 = vpop.f32.mrf.mxu0
  %v789 = vadd.f32 0.0, %v788
  %v790 = vpop.f32.mrf.mxu0
  %791 = vmatprep.mubr.bf16.mxu0 0
  %792 = vmatmul.mubr.bf16.gmra.mxu0 %v476
  %v793 = vpop.f32.mrf.mxu0
  %v794 = vadd.f32 0.0, %v793
  %v795 = vpop.f32.mrf.mxu0
  %v796 = vpop.f32.mrf.mxu0
  %v797 = vadd.f32 0.0, %v796
  %v798 = vpop.f32.mrf.mxu0
  %799 = vmatprep.mubr.bf16.mxu0 0
  %800 = vmatmul.mubr.bf16.gmra.mxu0 %v477
  %v801 = vpop.f32.mrf.mxu0
  %v802 = vadd.f32 0.0, %v801
  %v803 = vpop.f32.mrf.mxu0
  %v804 = vpop.f32.mrf.mxu0
  %v805 = vadd.f32 0.0, %v804
  %v806 = vpop.f32.mrf.mxu0
  %807 = vmatprep.mubr.bf16.mxu0 0
  %808 = vmatmul.mubr.bf16.gmra.mxu0 %v478
  %v809 = vpop.f32.mrf.mxu0
  %v810 = vadd.f32 0.0, %v809
  %v811 = vpop.f32.mrf.mxu0
  %v812 = vpop.f32.mrf.mxu0
  %v813 = vadd.f32 0.0, %v812
  %v814 = vpop.f32.mrf.mxu0
  %815 = vmatprep.mubr.bf16.mxu0 0
  %816 = vmatmul.mubr.bf16.gmra.mxu0 %v479
  %v817 = vpop.f32.mrf.mxu0
  %v818 = vadd.f32 0.0, %v817
  %v819 = vpop.f32.mrf.mxu0
  %v820 = vpop.f32.mrf.mxu0
  %v821 = vadd.f32 0.0, %v820
  %v822 = vpop.f32.mrf.mxu0
  %823 = vmatprep.mubr.bf16.mxu0 0
  %824 = vmatmul.mubr.bf16.gmra.mxu0 %v480
  %v825 = vpop.f32.mrf.mxu0
  %v826 = vadd.f32 0.0, %v825
  %v827 = vpop.f32.mrf.mxu0
  %v828 = vpop.f32.mrf.mxu0
  %v829 = vadd.f32 0.0, %v828
  %v830 = vpop.f32.mrf.mxu0
  %831 = vmatprep.mubr.bf16.mxu0 0
  %832 = vmatmul.mubr.bf16.gmra.mxu0 %v481
  %v833 = vpop.f32.mrf.mxu0
  %v834 = vadd.f32 0.0, %v833
  %v835 = vpop.f32.mrf.mxu0
  %v836 = vpop.f32.mrf.mxu0
  %v837 = vadd.f32 0.0, %v836
  %v838 = vpop.f32.mrf.mxu0
  %839 = vmatprep.mubr.bf16.mxu0 0
  %840 = vmatmul.mubr.bf16.gmra.mxu0 %v482
  %v841 = vpop.f32.mrf.mxu0
  %v842 = vadd.f32 0.0, %v841
  %v843 = vpop.f32.mrf.mxu0
  %v844 = vpop.f32.mrf.mxu0
  %v845 = vadd.f32 0.0, %v844
  %v846 = vpop.f32.mrf.mxu0
  %847 = vmatprep.mubr.bf16.mxu0 0
  %848 = vmatmul.mubr.bf16.gmra.mxu0 %v483
  %v849 = vpop.f32.mrf.mxu0
  %v850 = vadd.f32 0.0, %v849
  %v851 = vpop.f32.mrf.mxu0
  %v852 = vpop.f32.mrf.mxu0
  %v853 = vadd.f32 0.0, %v852
  %v854 = vpop.f32.mrf.mxu0
  %855 = vmatprep.mubr.bf16.mxu0 0
  %856 = vmatmul.mubr.bf16.gmra.mxu0 %v484
  %v857 = vpop.f32.mrf.mxu0
  %v858 = vadd.f32 0.0, %v857
  %v859 = vpop.f32.mrf.mxu0
  %v860 = vpop.f32.mrf.mxu0
  %v861 = vadd.f32 0.0, %v860
  %v862 = vpop.f32.mrf.mxu0
  %863 = vmatprep.mubr.bf16.mxu0 0
  %864 = vmatmul.mubr.bf16.gmra.mxu0 %v485
  %v865 = vpop.f32.mrf.mxu0
  %v866 = vadd.f32 0.0, %v865
  %v867 = vpop.f32.mrf.mxu0
  %v868 = vpop.f32.mrf.mxu0
  %v869 = vadd.f32 0.0, %v868
  %v870 = vpop.f32.mrf.mxu0
  %871 = vmatprep.mubr.bf16.mxu0 0
  %872 = vmatmul.mubr.bf16.gmra.mxu0 %v486
  %v873 = vpop.f32.mrf.mxu0
  %v874 = vadd.f32 0.0, %v873
  %v875 = vpop.f32.mrf.mxu0
  %v876 = vpop.f32.mrf.mxu0
  %v877 = vadd.f32 0.0, %v876
  %v878 = vpop.f32.mrf.mxu0
  %879 = vmatprep.mubr.bf16.mxu0 0
  %880 = vmatmul.mubr.bf16.gmra.mxu0 %v487
  %v881 = vpop.f32.mrf.mxu0
  %v882 = vadd.f32 0.0, %v881
  %v883 = vpop.f32.mrf.mxu0
  %v884 = vpop.f32.mrf.mxu0
  %v885 = vadd.f32 0.0, %v884
  %v886 = vpop.f32.mrf.mxu0
  %887 = vmatprep.mubr.bf16.mxu0 0
  %888 = vmatmul.mubr.bf16.gmra.mxu0 %v488
  %v889 = vpop.f32.mrf.mxu0
  %v890 = vadd.f32 0.0, %v889
  %v891 = vpop.f32.mrf.mxu0
  %v892 = vpop.f32.mrf.mxu0
  %v893 = vadd.f32 0.0, %v892
  %v894 = vpop.f32.mrf.mxu0
  %895 = vmatprep.mubr.bf16.mxu0 0
  %896 = vmatmul.mubr.bf16.gmra.mxu0 %v489
  %v897 = vpop.f32.mrf.mxu0
  %v898 = vadd.f32 0.0, %v897
  %v899 = vpop.f32.mrf.mxu0
  %v900 = vpop.f32.mrf.mxu0
  %v901 = vadd.f32 0.0, %v900
  %v902 = vpop.f32.mrf.mxu0
  %903 = vmatprep.mubr.bf16.mxu0 0
  %904 = vmatmul.mubr.bf16.gmra.mxu0 %v490
  %v905 = vpop.f32.mrf.mxu0
  %v906 = vadd.f32 0.0, %v905
  %v907 = vpop.f32.mrf.mxu0
  %v908 = vpop.f32.mrf.mxu0
  %v909 = vadd.f32 0.0, %v908
  %v910 = vpop.f32.mrf.mxu0
  %911 = vmatprep.mubr.bf16.mxu0 0
  %912 = vmatmul.mubr.bf16.gmra.mxu0 %v491
  %v913 = vpop.f32.mrf.mxu0
  %v914 = vadd.f32 0.0, %v913
  %v915 = vpop.f32.mrf.mxu0
  %v916 = vpop.f32.mrf.mxu0
  %v917 = vadd.f32 0.0, %v916
  %v918 = vpop.f32.mrf.mxu0
  %919 = vmatprep.mubr.bf16.mxu0 0
  %920 = vmatmul.mubr.bf16.gmra.mxu0 %v492
  %v921 = vpop.f32.mrf.mxu0
  %v922 = vadd.f32 0.0, %v921
  %v923 = vpop.f32.mrf.mxu0
  %v924 = vpop.f32.mrf.mxu0
  %v925 = vadd.f32 0.0, %v924
  %v926 = vpop.f32.mrf.mxu0
  %927 = vmatprep.mubr.bf16.mxu0 0
  %928 = vmatmul.mubr.bf16.gmra.mxu0 %v493
  %v929 = vpop.f32.mrf.mxu0
  %v930 = vadd.f32 0.0, %v929
  %v931 = vpop.f32.mrf.mxu0
  %v932 = vpop.f32.mrf.mxu0
  %v933 = vadd.f32 0.0, %v932
  %v934 = vpop.f32.mrf.mxu0
  %935 = vmatprep.mubr.bf16.mxu0 0
  %936 = vmatmul.mubr.bf16.gmra.mxu0 %v494
  %v937 = vpop.f32.mrf.mxu0
  %v938 = vadd.f32 0.0, %v937
  %v939 = vpop.f32.mrf.mxu0
  %v940 = vpop.f32.mrf.mxu0
  %v941 = vadd.f32 0.0, %v940
  %v942 = vpop.f32.mrf.mxu0
  %943 = vmatprep.mubr.bf16.mxu0 0
  %944 = vmatmul.mubr.bf16.gmra.mxu0 %v495
  %v945 = vpop.f32.mrf.mxu0
  %v946 = vadd.f32 0.0, %v945
  %v947 = vpop.f32.mrf.mxu0
  %v948 = vpop.f32.mrf.mxu0
  %v949 = vadd.f32 0.0, %v948
  %v950 = vpop.f32.mrf.mxu0
  %951 = vmatprep.mubr.bf16.mxu0 0
  %952 = vmatmul.mubr.bf16.gmra.mxu0 %v496
  %v953 = vpop.f32.mrf.mxu0
  %v954 = vadd.f32 0.0, %v953
  %v955 = vpop.f32.mrf.mxu0
  %v956 = vpop.f32.mrf.mxu0
  %v957 = vadd.f32 0.0, %v956
  %v958 = vpop.f32.mrf.mxu0
  %959 = vmatprep.mubr.bf16.mxu0 0
  %960 = vmatmul.mubr.bf16.gmra.mxu0 %v497
  %v961 = vpop.f32.mrf.mxu0
  %v962 = vadd.f32 0.0, %v961
  %v963 = vpop.f32.mrf.mxu0
  %v964 = vpop.f32.mrf.mxu0
  %v965 = vadd.f32 0.0, %v964
  %v966 = vpop.f32.mrf.mxu0
  %967 = vmatprep.mubr.bf16.mxu0 0
  %968 = vmatmul.mubr.bf16.gmra.mxu0 %v498
  %v969 = vpop.f32.mrf.mxu0
  %v970 = vadd.f32 0.0, %v969
  %v971 = vpop.f32.mrf.mxu0
  %v972 = vpop.f32.mrf.mxu0
  %v973 = vadd.f32 0.0, %v972
  %v974 = vpop.f32.mrf.mxu0
  %975 = vmatprep.mubr.bf16.mxu0 0
  %976 = vmatmul.mubr.bf16.gmra.mxu0 %v499
  %v977 = vpop.f32.mrf.mxu0
  %v978 = vadd.f32 0.0, %v977
  %v979 = vpop.f32.mrf.mxu0
  %v980 = vpop.f32.mrf.mxu0
  %v981 = vadd.f32 0.0, %v980
  %v982 = vpop.f32.mrf.mxu0
  %983 = vmatprep.mubr.bf16.mxu0 0
  %984 = vmatmul.mubr.bf16.gmra.mxu0 %v500
  %v985 = vpop.f32.mrf.mxu0
  %v986 = vadd.f32 0.0, %v985
  %v987 = vpop.f32.mrf.mxu0
  %v988 = vpop.f32.mrf.mxu0
  %v989 = vadd.f32 0.0, %v988
  %v990 = vpop.f32.mrf.mxu0
  %991 = vmatprep.mubr.bf16.mxu0 0
  %992 = vmatmul.mubr.bf16.gmra.mxu0 %v501
  %v993 = vpop.f32.mrf.mxu0
  %v994 = vadd.f32 0.0, %v993
  %v995 = vpop.f32.mrf.mxu0
  %v996 = vpop.f32.mrf.mxu0
  %v997 = vadd.f32 0.0, %v996
  %v998 = vpop.f32.mrf.mxu0
  %999 = vmatprep.mubr.bf16.mxu0 0
  %1000 = vmatmul.mubr.bf16.gmra.mxu0 %v502
  %v1001 = vpop.f32.mrf.mxu0
  %v1002 = vadd.f32 0.0, %v1001
  %v1003 = vpop.f32.mrf.mxu0
  %v1004 = vpop.f32.mrf.mxu0
  %v1005 = vadd.f32 0.0, %v1004
  %v1006 = vpop.f32.mrf.mxu0
  %1007 = vmatprep.mubr.bf16.mxu0 0
  %1008 = vmatmul.mubr.bf16.gmra.mxu0 %v503
  %v1009 = vpop.f32.mrf.mxu0
  %v1010 = vadd.f32 0.0, %v1009
  %v1011 = vpop.f32.mrf.mxu0
  %v1012 = vpop.f32.mrf.mxu0
  %v1013 = vadd.f32 0.0, %v1012
  %v1014 = vpop.f32.mrf.mxu0
  %1015 = vmatprep.mubr.bf16.mxu0 0
  %1016 = vmatmul.mubr.bf16.gmra.mxu0 %v504
  %v1017 = vpop.f32.mrf.mxu0
  %v1018 = vadd.f32 0.0, %v1017
  %v1019 = vpop.f32.mrf.mxu0
  %v1020 = vpop.f32.mrf.mxu0
  %v1021 = vadd.f32 0.0, %v1020
  %v1022 = vpop.f32.mrf.mxu0
  %1023 = vmatprep.mubr.bf16.mxu0 0
  %1024 = vmatmul.mubr.bf16.gmra.mxu0 %v505
  %v1025 = vpop.f32.mrf.mxu0
  %v1026 = vadd.f32 0.0, %v1025
  %v1027 = vpop.f32.mrf.mxu0
  %v1028 = vpop.f32.mrf.mxu0
  %v1029 = vadd.f32 0.0, %v1028
  %v1030 = vpop.f32.mrf.mxu0
  %1031 = vmatprep.mubr.bf16.mxu0 0
  %1032 = vmatmul.mubr.bf16.gmra.mxu0 %v506
  %v1033 = vpop.f32.mrf.mxu0
  %v1034 = vadd.f32 0.0, %v1033
  %v1035 = vpop.f32.mrf.mxu0
  %v1036 = vpop.f32.mrf.mxu0
  %v1037 = vadd.f32 0.0, %v1036
  %v1038 = vpop.f32.mrf.mxu0
  %1039 = vmatprep.mubr.bf16.mxu0 0
  %1040 = vmatmul.mubr.bf16.gmra.mxu0 %v507
  %v1041 = vpop.f32.mrf.mxu0
  %v1042 = vadd.f32 0.0, %v1041
  %v1043 = vpop.f32.mrf.mxu0
  %v1044 = vpop.f32.mrf.mxu0
  %v1045 = vadd.f32 0.0, %v1044
  %v1046 = vpop.f32.mrf.mxu0
  %1047 = vmatprep.mubr.bf16.mxu0 0
  %1048 = vmatmul.mubr.bf16.gmra.mxu0 %v508
  %v1049 = vpop.f32.mrf.mxu0
  %v1050 = vadd.f32 0.0, %v1049
  %v1051 = vpop.f32.mrf.mxu0
  %v1052 = vpop.f32.mrf.mxu0
  %v1053 = vadd.f32 0.0, %v1052
  %v1054 = vpop.f32.mrf.mxu0
  %1055 = vmatprep.mubr.bf16.mxu0 0
  %1056 = vmatmul.mubr.bf16.gmra.mxu0 %v509
  %v1057 = vpop.f32.mrf.mxu0
  %v1058 = vadd.f32 0.0, %v1057
  %v1059 = vpop.f32.mrf.mxu0
  %v1060 = vpop.f32.mrf.mxu0
  %v1061 = vadd.f32 0.0, %v1060
  %v1062 = vpop.f32.mrf.mxu0
  %1063 = vmatprep.mubr.bf16.mxu0 0
  %1064 = vmatmul.mubr.bf16.gmra.mxu0 %v510
  %v1065 = vpop.f32.mrf.mxu0
  %v1066 = vadd.f32 0.0, %v1065
  %v1067 = vpop.f32.mrf.mxu0
  %v1068 = vpop.f32.mrf.mxu0
  %v1069 = vadd.f32 0.0, %v1068
  %v1070 = vpop.f32.mrf.mxu0
  %1071 = vmatprep.mubr.bf16.mxu0 0
  %1072 = vmatmul.mubr.bf16.gmra.mxu0 %v511
  %v1073 = vpop.f32.mrf.mxu0
  %v1074 = vadd.f32 0.0, %v1073
  %v1075 = vpop.f32.mrf.mxu0
  %v1076 = vpop.f32.mrf.mxu0
  %v1077 = vadd.f32 0.0, %v1076
  %v1078 = vpop.f32.mrf.mxu0
  %1079 = vmatprep.mubr.bf16.mxu0 0
  %1080 = vmatmul.mubr.bf16.gmra.mxu0 %v512
  %v1081 = vpop.f32.mrf.mxu0
  %v1082 = vadd.f32 0.0, %v1081
  %v1083 = vpop.f32.mrf.mxu0
  %v1084 = vpop.f32.mrf.mxu0
  %v1085 = vadd.f32 0.0, %v1084
  %v1086 = vpop.f32.mrf.mxu0
  %1087 = vmatprep.mubr.bf16.mxu0 0
  %1088 = vmatmul.mubr.bf16.gmra.mxu0 %v513
  %v1089 = vpop.f32.mrf.mxu0
  %v1090 = vadd.f32 0.0, %v1089
  %v1091 = vpop.f32.mrf.mxu0
  %v1092 = vpop.f32.mrf.mxu0
  %v1093 = vadd.f32 0.0, %v1092
  %v1094 = vpop.f32.mrf.mxu0
  %1095 = vmatprep.mubr.bf16.mxu0 0
  %1096 = vmatmul.mubr.bf16.gmra.mxu0 %v514
  %v1097 = vpop.f32.mrf.mxu0
  %v1098 = vadd.f32 0.0, %v1097
  %v1099 = vpop.f32.mrf.mxu0
  %v1100 = vpop.f32.mrf.mxu0
  %v1101 = vadd.f32 0.0, %v1100
  %v1102 = vpop.f32.mrf.mxu0
  %1103 = vmatprep.mubr.bf16.mxu0 0
  %1104 = vmatmul.mubr.bf16.gmra.mxu0 %v515
  %v1105 = vpop.f32.mrf.mxu0
  %v1106 = vadd.f32 0.0, %v1105
  %v1107 = vpop.f32.mrf.mxu0
  %v1108 = vpop.f32.mrf.mxu0
  %v1109 = vadd.f32 0.0, %v1108
  %v1110 = vpop.f32.mrf.mxu0
  %1111 = vmatprep.mubr.bf16.mxu0 0
  %1112 = vmatmul.mubr.bf16.gmra.mxu0 %v516
  %v1113 = vpop.f32.mrf.mxu0
  %v1114 = vadd.f32 0.0, %v1113
  %v1115 = vpop.f32.mrf.mxu0
  %v1116 = vpop.f32.mrf.mxu0
  %v1117 = vadd.f32 0.0, %v1116
  %v1118 = vpop.f32.mrf.mxu0
  %1119 = vmatprep.mubr.bf16.mxu0 0
  %1120 = vmatmul.mubr.bf16.gmra.mxu0 %v517
  %v1121 = vpop.f32.mrf.mxu0
  %v1122 = vadd.f32 0.0, %v1121
  %v1123 = vpop.f32.mrf.mxu0
  %v1124 = vpop.f32.mrf.mxu0
  %v1125 = vadd.f32 0.0, %v1124
  %v1126 = vpop.f32.mrf.mxu0
  %1127 = vmatprep.mubr.bf16.mxu0 0
  %1128 = vmatmul.mubr.bf16.gmra.mxu0 %v518
  %v1129 = vpop.f32.mrf.mxu0
  %v1130 = vadd.f32 0.0, %v1129
  %v1131 = vpop.f32.mrf.mxu0
  %v1132 = vpop.f32.mrf.mxu0
  %v1133 = vadd.f32 0.0, %v1132
  %v1134 = vpop.f32.mrf.mxu0
  %1135 = vmatprep.mubr.bf16.mxu0 0
  %1136 = vmatmul.mubr.bf16.gmra.mxu0 %v519
  %v1137 = vpop.f32.mrf.mxu0
  %v1138 = vadd.f32 0.0, %v1137
  %v1139 = vpop.f32.mrf.mxu0
  %v1140 = vpop.f32.mrf.mxu0
  %v1141 = vadd.f32 0.0, %v1140
  %v1142 = vpop.f32.mrf.mxu0
  %1143 = vmatprep.mubr.bf16.mxu0 0
  %1144 = vmatmul.mubr.bf16.gmra.mxu0 %v520
  %v1145 = vpop.f32.mrf.mxu0
  %v1146 = vadd.f32 0.0, %v1145
  %v1147 = vpop.f32.mrf.mxu0
  %v1148 = vpop.f32.mrf.mxu0
  %v1149 = vadd.f32 0.0, %v1148
  %v1150 = vpop.f32.mrf.mxu0
  %1151 = vmatprep.mubr.bf16.mxu0 0
  %1152 = vmatmul.mubr.bf16.gmra.mxu0 %v521
  %v1153 = vpop.f32.mrf.mxu0
  %v1154 = vadd.f32 0.0, %v1153
  %v1155 = vpop.f32.mrf.mxu0
  %v1156 = vpop.f32.mrf.mxu0
  %v1157 = vadd.f32 0.0, %v1156
  %v1158 = vpop.f32.mrf.mxu0
  %1159 = vmatprep.mubr.bf16.mxu0 0
  %1160 = vmatmul.mubr.bf16.gmra.mxu0 %v522
  %v1161 = vpop.f32.mrf.mxu0
  %v1162 = vadd.f32 0.0, %v1161
  %v1163 = vpop.f32.mrf.mxu0
  %v1164 = vpop.f32.mrf.mxu0
  %v1165 = vadd.f32 0.0, %v1164
  %v1166 = vpop.f32.mrf.mxu0
  %1167 = vmatprep.mubr.bf16.mxu0 0
  %1168 = vmatmul.mubr.bf16.gmra.mxu0 %v523
  %v1169 = vpop.f32.mrf.mxu0
  %v1170 = vadd.f32 0.0, %v1169
  %v1171 = vpop.f32.mrf.mxu0
  %v1172 = vpop.f32.mrf.mxu0
  %v1173 = vadd.f32 0.0, %v1172
  %v1174 = vpop.f32.mrf.mxu0
  %1175 = vmatprep.mubr.bf16.mxu0 0
  %1176 = vmatmul.mubr.bf16.gmra.mxu0 %v524
  %v1177 = vpop.f32.mrf.mxu0
  %v1178 = vadd.f32 0.0, %v1177
  %v1179 = vpop.f32.mrf.mxu0
  %v1180 = vpop.f32.mrf.mxu0
  %v1181 = vadd.f32 0.0, %v1180
  %v1182 = vpop.f32.mrf.mxu0
  %1183 = vmatprep.mubr.bf16.mxu0 0
  %1184 = vmatmul.mubr.bf16.gmra.mxu0 %v525
  %v1185 = vpop.f32.mrf.mxu0
  %v1186 = vadd.f32 0.0, %v1185
  %v1187 = vpop.f32.mrf.mxu0
  %v1188 = vpop.f32.mrf.mxu0
  %v1189 = vadd.f32 0.0, %v1188
  %v1190 = vpop.f32.mrf.mxu0
  %1191 = vmatprep.mubr.bf16.mxu0 0
  %1192 = vmatmul.mubr.bf16.gmra.mxu0 %v526
  %v1193 = vpop.f32.mrf.mxu0
  %v1194 = vadd.f32 0.0, %v1193
  %v1195 = vpop.f32.mrf.mxu0
  %v1196 = vpop.f32.mrf.mxu0
  %v1197 = vadd.f32 0.0, %v1196
  %v1198 = vpop.f32.mrf.mxu0
  %1199 = vmatprep.mubr.bf16.mxu0 0
  %1200 = vmatmul.mubr.bf16.gmra.mxu0 %v527
  %v1201 = vpop.f32.mrf.mxu0
  %v1202 = vadd.f32 0.0, %v1201
  %v1203 = vpop.f32.mrf.mxu0
  %v1204 = vpop.f32.mrf.mxu0
  %v1205 = vadd.f32 0.0, %v1204
  %v1206 = vpop.f32.mrf.mxu0
  %1207 = vmatprep.mubr.bf16.mxu0 0
  %1208 = vmatmul.mubr.bf16.gmra.mxu0 %v528
  %v1209 = vpop.f32.mrf.mxu0
  %v1210 = vadd.f32 0.0, %v1209
  %v1211 = vpop.f32.mrf.mxu0
  %v1212 = vpop.f32.mrf.mxu0
  %v1213 = vadd.f32 0.0, %v1212
  %v1214 = vpop.f32.mrf.mxu0
  %1215 = vmatprep.mubr.bf16.mxu0 0
  %1216 = vmatmul.mubr.bf16.gmra.mxu0 %v529
  %v1217 = vpop.f32.mrf.mxu0
  %v1218 = vadd.f32 0.0, %v1217
  %v1219 = vpop.f32.mrf.mxu0
  %v1220 = vpop.f32.mrf.mxu0
  %v1221 = vadd.f32 0.0, %v1220
  %v1222 = vpop.f32.mrf.mxu0
  %1223 = vmatprep.mubr.bf16.mxu0 0
  %1224 = vmatmul.mubr.bf16.gmra.mxu0 %v530
  %v1225 = vpop.f32.mrf.mxu0
  %v1226 = vadd.f32 0.0, %v1225
  %v1227 = vpop.f32.mrf.mxu0
  %v1228 = vpop.f32.mrf.mxu0
  %v1229 = vadd.f32 0.0, %v1228
  %v1230 = vpop.f32.mrf.mxu0
  %1231 = vmatprep.mubr.bf16.mxu0 0
  %1232 = vmatmul.mubr.bf16.gmra.mxu0 %v531
  %v1233 = vpop.f32.mrf.mxu0
  %v1234 = vadd.f32 0.0, %v1233
  %v1235 = vpop.f32.mrf.mxu0
  %v1236 = vpop.f32.mrf.mxu0
  %v1237 = vadd.f32 0.0, %v1236
  %v1238 = vpop.f32.mrf.mxu0
  %1239 = vmatprep.mubr.bf16.mxu0 0
  %1240 = vmatmul.mubr.bf16.gmra.mxu0 %v532
  %v1241 = vpop.f32.mrf.mxu0
  %v1242 = vadd.f32 0.0, %v1241
  %v1243 = vpop.f32.mrf.mxu0
  %v1244 = vpop.f32.mrf.mxu0
  %v1245 = vadd.f32 0.0, %v1244
  %v1246 = vpop.f32.mrf.mxu0
  %1247 = vmatprep.mubr.bf16.mxu0 0
  %1248 = vmatmul.mubr.bf16.gmra.mxu0 %v533
  %v1249 = vpop.f32.mrf.mxu0
  %v1250 = vadd.f32 0.0, %v1249
  %v1251 = vpop.f32.mrf.mxu0
  %v1252 = vpop.f32.mrf.mxu0
  %v1253 = vadd.f32 0.0, %v1252
  %v1254 = vpop.f32.mrf.mxu0
  %1255 = vmatprep.mubr.bf16.mxu0 0
  %1256 = vmatmul.mubr.bf16.gmra.mxu0 %v534
  %v1257 = vpop.f32.mrf.mxu0
  %v1258 = vadd.f32 0.0, %v1257
  %v1259 = vpop.f32.mrf.mxu0
  %v1260 = vpop.f32.mrf.mxu0
  %v1261 = vadd.f32 0.0, %v1260
  %v1262 = vpop.f32.mrf.mxu0
  %1263 = vdwg.mxu0
  %vm1264 = vcmask 261120
  %v1265 = vsel %vm1264, %v690, 0.0
  %v1266 = vsel %vm1264, %v693, 0.0
  %v1267 = vadd.f32 %v1265, %v1266
  %v1268 = vsel %vm1264, %v698, 0.0
  %v1269 = vadd.f32 %v1267, %v1268
  %v1270 = vsel %vm1264, %v701, 0.0
  %v1271 = vadd.f32 %v1269, %v1270
  %v1272 = vsel %vm1264, %v706, 0.0
  %v1273 = vadd.f32 %v1271, %v1272
  %v1274 = vsel %vm1264, %v709, 0.0
  %v1275 = vadd.f32 %v1273, %v1274
  %v1276 = vsel %vm1264, %v714, 0.0
  %v1277 = vadd.f32 %v1275, %v1276
  %v1278 = vsel %vm1264, %v717, 0.0
  %v1279 = vadd.f32 %v1277, %v1278
  %v1280 = vsel %vm1264, %v722, 0.0
  %v1281 = vadd.f32 %v1279, %v1280
  %v1282 = vsel %vm1264, %v725, 0.0
  %v1283 = vadd.f32 %v1281, %v1282
  %v1284 = vsel %vm1264, %v730, 0.0
  %v1285 = vadd.f32 %v1283, %v1284
  %v1286 = vsel %vm1264, %v733, 0.0
  %v1287 = vadd.f32 %v1285, %v1286
  %v1288 = vsel %vm1264, %v738, 0.0
  %v1289 = vadd.f32 %v1287, %v1288
  %v1290 = vsel %vm1264, %v741, 0.0
  %v1291 = vadd.f32 %v1289, %v1290
  %v1292 = vsel %vm1264, %v746, 0.0
  %v1293 = vadd.f32 %v1291, %v1292
  %v1294 = vsel %vm1264, %v749, 0.0
  %v1295 = vadd.f32 %v1293, %v1294
  %v1296 = vsel %vm1264, %v754, 0.0
  %v1297 = vadd.f32 %v1295, %v1296
  %v1298 = vsel %vm1264, %v757, 0.0
  %v1299 = vadd.f32 %v1297, %v1298
  %v1300 = vsel %vm1264, %v762, 0.0
  %v1301 = vadd.f32 %v1299, %v1300
  %v1302 = vsel %vm1264, %v765, 0.0
  %v1303 = vadd.f32 %v1301, %v1302
  %v1304 = vsel %vm1264, %v770, 0.0
  %v1305 = vadd.f32 %v1303, %v1304
  %v1306 = vsel %vm1264, %v773, 0.0
  %v1307 = vadd.f32 %v1305, %v1306
  %v1308 = vsel %vm1264, %v778, 0.0
  %v1309 = vadd.f32 %v1307, %v1308
  %v1310 = vsel %vm1264, %v781, 0.0
  %v1311 = vadd.f32 %v1309, %v1310
  %v1312 = vsel %vm1264, %v786, 0.0
  %v1313 = vadd.f32 %v1311, %v1312
  %v1314 = vsel %vm1264, %v789, 0.0
  %v1315 = vadd.f32 %v1313, %v1314
  %v1316 = vsel %vm1264, %v794, 0.0
  %v1317 = vadd.f32 %v1315, %v1316
  %v1318 = vsel %vm1264, %v797, 0.0
  %v1319 = vadd.f32 %v1317, %v1318
  %v1320 = vsel %vm1264, %v802, 0.0
  %v1321 = vadd.f32 %v1319, %v1320
  %v1322 = vsel %vm1264, %v805, 0.0
  %v1323 = vadd.f32 %v1321, %v1322
  %v1324 = vsel %vm1264, %v810, 0.0
  %v1325 = vadd.f32 %v1323, %v1324
  %v1326 = vsel %vm1264, %v813, 0.0
  %v1327 = vadd.f32 %v1325, %v1326
  %v1328 = vsel %vm1264, %v818, 0.0
  %v1329 = vadd.f32 %v1327, %v1328
  %v1330 = vsel %vm1264, %v821, 0.0
  %v1331 = vadd.f32 %v1329, %v1330
  %v1332 = vsel %vm1264, %v826, 0.0
  %v1333 = vadd.f32 %v1331, %v1332
  %v1334 = vsel %vm1264, %v829, 0.0
  %v1335 = vadd.f32 %v1333, %v1334
  %v1336 = vsel %vm1264, %v834, 0.0
  %v1337 = vadd.f32 %v1335, %v1336
  %v1338 = vsel %vm1264, %v837, 0.0
  %v1339 = vadd.f32 %v1337, %v1338
  %v1340 = vsel %vm1264, %v842, 0.0
  %v1341 = vadd.f32 %v1339, %v1340
  %v1342 = vsel %vm1264, %v845, 0.0
  %v1343 = vadd.f32 %v1341, %v1342
  %v1344 = vsel %vm1264, %v850, 0.0
  %v1345 = vadd.f32 %v1343, %v1344
  %v1346 = vsel %vm1264, %v853, 0.0
  %v1347 = vadd.f32 %v1345, %v1346
  %v1348 = vsel %vm1264, %v858, 0.0
  %v1349 = vadd.f32 %v1347, %v1348
  %v1350 = vsel %vm1264, %v861, 0.0
  %v1351 = vadd.f32 %v1349, %v1350
  %v1352 = vsel %vm1264, %v866, 0.0
  %v1353 = vadd.f32 %v1351, %v1352
  %v1354 = vsel %vm1264, %v869, 0.0
  %v1355 = vadd.f32 %v1353, %v1354
  %v1356 = vsel %vm1264, %v874, 0.0
  %v1357 = vadd.f32 %v1355, %v1356
  %v1358 = vsel %vm1264, %v877, 0.0
  %v1359 = vadd.f32 %v1357, %v1358
  %v1360 = vsel %vm1264, %v882, 0.0
  %v1361 = vadd.f32 %v1359, %v1360
  %v1362 = vsel %vm1264, %v885, 0.0
  %v1363 = vadd.f32 %v1361, %v1362
  %v1364 = vsel %vm1264, %v890, 0.0
  %v1365 = vadd.f32 %v1363, %v1364
  %v1366 = vsel %vm1264, %v893, 0.0
  %v1367 = vadd.f32 %v1365, %v1366
  %v1368 = vsel %vm1264, %v898, 0.0
  %v1369 = vadd.f32 %v1367, %v1368
  %v1370 = vsel %vm1264, %v901, 0.0
  %v1371 = vadd.f32 %v1369, %v1370
  %v1372 = vsel %vm1264, %v906, 0.0
  %v1373 = vadd.f32 %v1371, %v1372
  %v1374 = vsel %vm1264, %v909, 0.0
  %v1375 = vadd.f32 %v1373, %v1374
  %v1376 = vsel %vm1264, %v914, 0.0
  %v1377 = vadd.f32 %v1375, %v1376
  %v1378 = vsel %vm1264, %v917, 0.0
  %v1379 = vadd.f32 %v1377, %v1378
  %v1380 = vsel %vm1264, %v922, 0.0
  %v1381 = vadd.f32 %v1379, %v1380
  %v1382 = vsel %vm1264, %v925, 0.0
  %v1383 = vadd.f32 %v1381, %v1382
  %v1384 = vsel %vm1264, %v930, 0.0
  %v1385 = vadd.f32 %v1383, %v1384
  %v1386 = vsel %vm1264, %v933, 0.0
  %v1387 = vadd.f32 %v1385, %v1386
  %v1388 = vsel %vm1264, %v938, 0.0
  %v1389 = vadd.f32 %v1387, %v1388
  %v1390 = vsel %vm1264, %v941, 0.0
  %v1391 = vadd.f32 %v1389, %v1390
  %v1392 = vsel %vm1264, %v946, 0.0
  %v1393 = vadd.f32 %v1391, %v1392
  %v1394 = vsel %vm1264, %v949, 0.0
  %v1395 = vadd.f32 %v1393, %v1394
  %v1396 = vsel %vm1264, %v954, 0.0
  %v1397 = vadd.f32 %v1395, %v1396
  %v1398 = vsel %vm1264, %v957, 0.0
  %v1399 = vadd.f32 %v1397, %v1398
  %v1400 = vsel %vm1264, %v962, 0.0
  %v1401 = vadd.f32 %v1399, %v1400
  %v1402 = vsel %vm1264, %v965, 0.0
  %v1403 = vadd.f32 %v1401, %v1402
  %v1404 = vsel %vm1264, %v970, 0.0
  %v1405 = vadd.f32 %v1403, %v1404
  %v1406 = vsel %vm1264, %v973, 0.0
  %v1407 = vadd.f32 %v1405, %v1406
  %v1408 = vsel %vm1264, %v978, 0.0
  %v1409 = vadd.f32 %v1407, %v1408
  %v1410 = vsel %vm1264, %v981, 0.0
  %v1411 = vadd.f32 %v1409, %v1410
  %v1412 = vsel %vm1264, %v986, 0.0
  %v1413 = vadd.f32 %v1411, %v1412
  %v1414 = vsel %vm1264, %v989, 0.0
  %v1415 = vadd.f32 %v1413, %v1414
  %v1416 = vsel %vm1264, %v994, 0.0
  %v1417 = vadd.f32 %v1415, %v1416
  %v1418 = vsel %vm1264, %v997, 0.0
  %v1419 = vadd.f32 %v1417, %v1418
  %v1420 = vsel %vm1264, %v1002, 0.0
  %v1421 = vadd.f32 %v1419, %v1420
  %v1422 = vsel %vm1264, %v1005, 0.0
  %v1423 = vadd.f32 %v1421, %v1422
  %v1424 = vsel %vm1264, %v1010, 0.0
  %v1425 = vadd.f32 %v1423, %v1424
  %v1426 = vsel %vm1264, %v1013, 0.0
  %v1427 = vadd.f32 %v1425, %v1426
  %v1428 = vsel %vm1264, %v1018, 0.0
  %v1429 = vadd.f32 %v1427, %v1428
  %v1430 = vsel %vm1264, %v1021, 0.0
  %v1431 = vadd.f32 %v1429, %v1430
  %v1432 = vsel %vm1264, %v1026, 0.0
  %v1433 = vadd.f32 %v1431, %v1432
  %v1434 = vsel %vm1264, %v1029, 0.0
  %v1435 = vadd.f32 %v1433, %v1434
  %v1436 = vsel %vm1264, %v1034, 0.0
  %v1437 = vadd.f32 %v1435, %v1436
  %v1438 = vsel %vm1264, %v1037, 0.0
  %v1439 = vadd.f32 %v1437, %v1438
  %v1440 = vsel %vm1264, %v1042, 0.0
  %v1441 = vadd.f32 %v1439, %v1440
  %v1442 = vsel %vm1264, %v1045, 0.0
  %v1443 = vadd.f32 %v1441, %v1442
  %v1444 = vsel %vm1264, %v1050, 0.0
  %v1445 = vadd.f32 %v1443, %v1444
  %v1446 = vsel %vm1264, %v1053, 0.0
  %v1447 = vadd.f32 %v1445, %v1446
  %v1448 = vsel %vm1264, %v1058, 0.0
  %v1449 = vadd.f32 %v1447, %v1448
  %v1450 = vsel %vm1264, %v1061, 0.0
  %v1451 = vadd.f32 %v1449, %v1450
  %v1452 = vsel %vm1264, %v1066, 0.0
  %v1453 = vadd.f32 %v1451, %v1452
  %v1454 = vsel %vm1264, %v1069, 0.0
  %v1455 = vadd.f32 %v1453, %v1454
  %v1456 = vsel %vm1264, %v1074, 0.0
  %v1457 = vadd.f32 %v1455, %v1456
  %v1458 = vsel %vm1264, %v1077, 0.0
  %v1459 = vadd.f32 %v1457, %v1458
  %v1460 = vsel %vm1264, %v1082, 0.0
  %v1461 = vadd.f32 %v1459, %v1460
  %v1462 = vsel %vm1264, %v1085, 0.0
  %v1463 = vadd.f32 %v1461, %v1462
  %v1464 = vsel %vm1264, %v1090, 0.0
  %v1465 = vadd.f32 %v1463, %v1464
  %v1466 = vsel %vm1264, %v1093, 0.0
  %v1467 = vadd.f32 %v1465, %v1466
  %v1468 = vsel %vm1264, %v1098, 0.0
  %v1469 = vadd.f32 %v1467, %v1468
  %v1470 = vsel %vm1264, %v1101, 0.0
  %v1471 = vadd.f32 %v1469, %v1470
  %v1472 = vsel %vm1264, %v1106, 0.0
  %v1473 = vadd.f32 %v1471, %v1472
  %v1474 = vsel %vm1264, %v1109, 0.0
  %v1475 = vadd.f32 %v1473, %v1474
  %v1476 = vsel %vm1264, %v1114, 0.0
  %v1477 = vadd.f32 %v1475, %v1476
  %v1478 = vsel %vm1264, %v1117, 0.0
  %v1479 = vadd.f32 %v1477, %v1478
  %v1480 = vsel %vm1264, %v1122, 0.0
  %v1481 = vadd.f32 %v1479, %v1480
  %v1482 = vsel %vm1264, %v1125, 0.0
  %v1483 = vadd.f32 %v1481, %v1482
  %v1484 = vsel %vm1264, %v1130, 0.0
  %v1485 = vadd.f32 %v1483, %v1484
  %v1486 = vsel %vm1264, %v1133, 0.0
  %v1487 = vadd.f32 %v1485, %v1486
  %v1488 = vsel %vm1264, %v1138, 0.0
  %v1489 = vadd.f32 %v1487, %v1488
  %v1490 = vsel %vm1264, %v1141, 0.0
  %v1491 = vadd.f32 %v1489, %v1490
  %v1492 = vsel %vm1264, %v1146, 0.0
  %v1493 = vadd.f32 %v1491, %v1492
  %v1494 = vsel %vm1264, %v1149, 0.0
  %v1495 = vadd.f32 %v1493, %v1494
  %v1496 = vsel %vm1264, %v1154, 0.0
  %v1497 = vadd.f32 %v1495, %v1496
  %v1498 = vsel %vm1264, %v1157, 0.0
  %v1499 = vadd.f32 %v1497, %v1498
  %v1500 = vsel %vm1264, %v1162, 0.0
  %v1501 = vadd.f32 %v1499, %v1500
  %v1502 = vsel %vm1264, %v1165, 0.0
  %v1503 = vadd.f32 %v1501, %v1502
  %v1504 = vsel %vm1264, %v1170, 0.0
  %v1505 = vadd.f32 %v1503, %v1504
  %v1506 = vsel %vm1264, %v1173, 0.0
  %v1507 = vadd.f32 %v1505, %v1506
  %v1508 = vsel %vm1264, %v1178, 0.0
  %v1509 = vadd.f32 %v1507, %v1508
  %v1510 = vsel %vm1264, %v1181, 0.0
  %v1511 = vadd.f32 %v1509, %v1510
  %v1512 = vsel %vm1264, %v1186, 0.0
  %v1513 = vadd.f32 %v1511, %v1512
  %v1514 = vsel %vm1264, %v1189, 0.0
  %v1515 = vadd.f32 %v1513, %v1514
  %v1516 = vsel %vm1264, %v1194, 0.0
  %v1517 = vadd.f32 %v1515, %v1516
  %v1518 = vsel %vm1264, %v1197, 0.0
  %v1519 = vadd.f32 %v1517, %v1518
  %v1520 = vsel %vm1264, %v1202, 0.0
  %v1521 = vadd.f32 %v1519, %v1520
  %v1522 = vsel %vm1264, %v1205, 0.0
  %v1523 = vadd.f32 %v1521, %v1522
  %v1524 = vsel %vm1264, %v1210, 0.0
  %v1525 = vadd.f32 %v1523, %v1524
  %v1526 = vsel %vm1264, %v1213, 0.0
  %v1527 = vadd.f32 %v1525, %v1526
  %v1528 = vsel %vm1264, %v1218, 0.0
  %v1529 = vadd.f32 %v1527, %v1528
  %v1530 = vsel %vm1264, %v1221, 0.0
  %v1531 = vadd.f32 %v1529, %v1530
  %v1532 = vsel %vm1264, %v1226, 0.0
  %v1533 = vadd.f32 %v1531, %v1532
  %v1534 = vsel %vm1264, %v1229, 0.0
  %v1535 = vadd.f32 %v1533, %v1534
  %v1536 = vsel %vm1264, %v1234, 0.0
  %v1537 = vadd.f32 %v1535, %v1536
  %v1538 = vsel %vm1264, %v1237, 0.0
  %v1539 = vadd.f32 %v1537, %v1538
  %v1540 = vsel %vm1264, %v1242, 0.0
  %v1541 = vadd.f32 %v1539, %v1540
  %v1542 = vsel %vm1264, %v1245, 0.0
  %v1543 = vadd.f32 %v1541, %v1542
  %v1544 = vsel %vm1264, %v1250, 0.0
  %v1545 = vadd.f32 %v1543, %v1544
  %v1546 = vsel %vm1264, %v1253, 0.0
  %v1547 = vadd.f32 %v1545, %v1546
  %v1548 = vsel %vm1264, %v1258, 0.0
  %v1549 = vadd.f32 %v1547, %v1548
  %v1550 = vsel %vm1264, %v1261, 0.0
  %v1551 = vadd.f32 %v1549, %v1550
  %v1552 = vrot.slane %v1551, 4
  %v1553 = vadd.f32 %v1551, %v1552
  %v1554 = vrot.slane %v1553, 2
  %v1555 = vadd.f32 %v1553, %v1554
  %v1556 = vrot.slane %v1555, 1
  %v1557 = vadd.f32 %v1555, %v1556
  %v1558 = vrcp.pop 1152.0
  %v1559 = vmul.f32 %v1557, %v1558
  %v1560 = vsub.f32 %v690, %v1559
  %v1561 = vsub.f32 %v693, %v1559
  %v1562 = vsub.f32 %v698, %v1559
  %v1563 = vsub.f32 %v701, %v1559
  %v1564 = vsub.f32 %v706, %v1559
  %v1565 = vsub.f32 %v709, %v1559
  %v1566 = vsub.f32 %v714, %v1559
  %v1567 = vsub.f32 %v717, %v1559
  %v1568 = vsub.f32 %v722, %v1559
  %v1569 = vsub.f32 %v725, %v1559
  %v1570 = vsub.f32 %v730, %v1559
  %v1571 = vsub.f32 %v733, %v1559
  %v1572 = vsub.f32 %v738, %v1559
  %v1573 = vsub.f32 %v741, %v1559
  %v1574 = vsub.f32 %v746, %v1559
  %v1575 = vsub.f32 %v749, %v1559
  %v1576 = vsub.f32 %v754, %v1559
  %v1577 = vsub.f32 %v757, %v1559
  %v1578 = vsub.f32 %v762, %v1559
  %v1579 = vsub.f32 %v765, %v1559
  %v1580 = vsub.f32 %v770, %v1559
  %v1581 = vsub.f32 %v773, %v1559
  %v1582 = vsub.f32 %v778, %v1559
  %v1583 = vsub.f32 %v781, %v1559
  %v1584 = vsub.f32 %v786, %v1559
  %v1585 = vsub.f32 %v789, %v1559
  %v1586 = vsub.f32 %v794, %v1559
  %v1587 = vsub.f32 %v797, %v1559
  %v1588 = vsub.f32 %v802, %v1559
  %v1589 = vsub.f32 %v805, %v1559
  %v1590 = vsub.f32 %v810, %v1559
  %v1591 = vsub.f32 %v813, %v1559
  %v1592 = vsub.f32 %v818, %v1559
  %v1593 = vsub.f32 %v821, %v1559
  %v1594 = vsub.f32 %v826, %v1559
  %v1595 = vsub.f32 %v829, %v1559
  %v1596 = vsub.f32 %v834, %v1559
  %v1597 = vsub.f32 %v837, %v1559
  %v1598 = vsub.f32 %v842, %v1559
  %v1599 = vsub.f32 %v845, %v1559
  %v1600 = vsub.f32 %v850, %v1559
  %v1601 = vsub.f32 %v853, %v1559
  %v1602 = vsub.f32 %v858, %v1559
  %v1603 = vsub.f32 %v861, %v1559
  %v1604 = vsub.f32 %v866, %v1559
  %v1605 = vsub.f32 %v869, %v1559
  %v1606 = vsub.f32 %v874, %v1559
  %v1607 = vsub.f32 %v877, %v1559
  %v1608 = vsub.f32 %v882, %v1559
  %v1609 = vsub.f32 %v885, %v1559
  %v1610 = vsub.f32 %v890, %v1559
  %v1611 = vsub.f32 %v893, %v1559
  %v1612 = vsub.f32 %v898, %v1559
  %v1613 = vsub.f32 %v901, %v1559
  %v1614 = vsub.f32 %v906, %v1559
  %v1615 = vsub.f32 %v909, %v1559
  %v1616 = vsub.f32 %v914, %v1559
  %v1617 = vsub.f32 %v917, %v1559
  %v1618 = vsub.f32 %v922, %v1559
  %v1619 = vsub.f32 %v925, %v1559
  %v1620 = vsub.f32 %v930, %v1559
  %v1621 = vsub.f32 %v933, %v1559
  %v1622 = vsub.f32 %v938, %v1559
  %v1623 = vsub.f32 %v941, %v1559
  %v1624 = vsub.f32 %v946, %v1559
  %v1625 = vsub.f32 %v949, %v1559
  %v1626 = vsub.f32 %v954, %v1559
  %v1627 = vsub.f32 %v957, %v1559
  %v1628 = vsub.f32 %v962, %v1559
  %v1629 = vsub.f32 %v965, %v1559
  %v1630 = vsub.f32 %v970, %v1559
  %v1631 = vsub.f32 %v973, %v1559
  %v1632 = vsub.f32 %v978, %v1559
  %v1633 = vsub.f32 %v981, %v1559
  %v1634 = vsub.f32 %v986, %v1559
  %v1635 = vsub.f32 %v989, %v1559
  %v1636 = vsub.f32 %v994, %v1559
  %v1637 = vsub.f32 %v997, %v1559
  %v1638 = vsub.f32 %v1002, %v1559
  %v1639 = vsub.f32 %v1005, %v1559
  %v1640 = vsub.f32 %v1010, %v1559
  %v1641 = vsub.f32 %v1013, %v1559
  %v1642 = vsub.f32 %v1018, %v1559
  %v1643 = vsub.f32 %v1021, %v1559
  %v1644 = vsub.f32 %v1026, %v1559
  %v1645 = vsub.f32 %v1029, %v1559
  %v1646 = vsub.f32 %v1034, %v1559
  %v1647 = vsub.f32 %v1037, %v1559
  %v1648 = vsub.f32 %v1042, %v1559
  %v1649 = vsub.f32 %v1045, %v1559
  %v1650 = vsub.f32 %v1050, %v1559
  %v1651 = vsub.f32 %v1053, %v1559
  %v1652 = vsub.f32 %v1058, %v1559
  %v1653 = vsub.f32 %v1061, %v1559
  %v1654 = vsub.f32 %v1066, %v1559
  %v1655 = vsub.f32 %v1069, %v1559
  %v1656 = vsub.f32 %v1074, %v1559
  %v1657 = vsub.f32 %v1077, %v1559
  %v1658 = vsub.f32 %v1082, %v1559
  %v1659 = vsub.f32 %v1085, %v1559
  %v1660 = vsub.f32 %v1090, %v1559
  %v1661 = vsub.f32 %v1093, %v1559
  %v1662 = vsub.f32 %v1098, %v1559
  %v1663 = vsub.f32 %v1101, %v1559
  %v1664 = vsub.f32 %v1106, %v1559
  %v1665 = vsub.f32 %v1109, %v1559
  %v1666 = vsub.f32 %v1114, %v1559
  %v1667 = vsub.f32 %v1117, %v1559
  %v1668 = vsub.f32 %v1122, %v1559
  %v1669 = vsub.f32 %v1125, %v1559
  %v1670 = vsub.f32 %v1130, %v1559
  %v1671 = vsub.f32 %v1133, %v1559
  %v1672 = vsub.f32 %v1138, %v1559
  %v1673 = vsub.f32 %v1141, %v1559
  %v1674 = vsub.f32 %v1146, %v1559
  %v1675 = vsub.f32 %v1149, %v1559
  %v1676 = vsub.f32 %v1154, %v1559
  %v1677 = vsub.f32 %v1157, %v1559
  %v1678 = vsub.f32 %v1162, %v1559
  %v1679 = vsub.f32 %v1165, %v1559
  %v1680 = vsub.f32 %v1170, %v1559
  %v1681 = vsub.f32 %v1173, %v1559
  %v1682 = vsub.f32 %v1178, %v1559
  %v1683 = vsub.f32 %v1181, %v1559
  %v1684 = vsub.f32 %v1186, %v1559
  %v1685 = vsub.f32 %v1189, %v1559
  %v1686 = vsub.f32 %v1194, %v1559
  %v1687 = vsub.f32 %v1197, %v1559
  %v1688 = vsub.f32 %v1202, %v1559
  %v1689 = vsub.f32 %v1205, %v1559
  %v1690 = vsub.f32 %v1210, %v1559
  %v1691 = vsub.f32 %v1213, %v1559
  %v1692 = vsub.f32 %v1218, %v1559
  %v1693 = vsub.f32 %v1221, %v1559
  %v1694 = vsub.f32 %v1226, %v1559
  %v1695 = vsub.f32 %v1229, %v1559
  %v1696 = vsub.f32 %v1234, %v1559
  %v1697 = vsub.f32 %v1237, %v1559
  %v1698 = vsub.f32 %v1242, %v1559
  %v1699 = vsub.f32 %v1245, %v1559
  %v1700 = vsub.f32 %v1250, %v1559
  %v1701 = vsub.f32 %v1253, %v1559
  %v1702 = vsub.f32 %v1258, %v1559
  %v1703 = vsub.f32 %v1261, %v1559
  %v1704 = vmul.f32 %v1560, %v1560
  %v1705 = vmul.f32 %v1561, %v1561
  %v1706 = vmul.f32 %v1562, %v1562
  %v1707 = vmul.f32 %v1563, %v1563
  %v1708 = vmul.f32 %v1564, %v1564
  %v1709 = vmul.f32 %v1565, %v1565
  %v1710 = vmul.f32 %v1566, %v1566
  %v1711 = vmul.f32 %v1567, %v1567
  %v1712 = vmul.f32 %v1568, %v1568
  %v1713 = vmul.f32 %v1569, %v1569
  %v1714 = vmul.f32 %v1570, %v1570
  %v1715 = vmul.f32 %v1571, %v1571
  %v1716 = vmul.f32 %v1572, %v1572
  %v1717 = vmul.f32 %v1573, %v1573
  %v1718 = vmul.f32 %v1574, %v1574
  %v1719 = vmul.f32 %v1575, %v1575
  %v1720 = vmul.f32 %v1576, %v1576
  %v1721 = vmul.f32 %v1577, %v1577
  %v1722 = vmul.f32 %v1578, %v1578
  %v1723 = vmul.f32 %v1579, %v1579
  %v1724 = vmul.f32 %v1580, %v1580
  %v1725 = vmul.f32 %v1581, %v1581
  %v1726 = vmul.f32 %v1582, %v1582
  %v1727 = vmul.f32 %v1583, %v1583
  %v1728 = vmul.f32 %v1584, %v1584
  %v1729 = vmul.f32 %v1585, %v1585
  %v1730 = vmul.f32 %v1586, %v1586
  %v1731 = vmul.f32 %v1587, %v1587
  %v1732 = vmul.f32 %v1588, %v1588
  %v1733 = vmul.f32 %v1589, %v1589
  %v1734 = vmul.f32 %v1590, %v1590
  %v1735 = vmul.f32 %v1591, %v1591
  %v1736 = vmul.f32 %v1592, %v1592
  %v1737 = vmul.f32 %v1593, %v1593
  %v1738 = vmul.f32 %v1594, %v1594
  %v1739 = vmul.f32 %v1595, %v1595
  %v1740 = vmul.f32 %v1596, %v1596
  %v1741 = vmul.f32 %v1597, %v1597
  %v1742 = vmul.f32 %v1598, %v1598
  %v1743 = vmul.f32 %v1599, %v1599
  %v1744 = vmul.f32 %v1600, %v1600
  %v1745 = vmul.f32 %v1601, %v1601
  %v1746 = vmul.f32 %v1602, %v1602
  %v1747 = vmul.f32 %v1603, %v1603
  %v1748 = vmul.f32 %v1604, %v1604
  %v1749 = vmul.f32 %v1605, %v1605
  %v1750 = vmul.f32 %v1606, %v1606
  %v1751 = vmul.f32 %v1607, %v1607
  %v1752 = vmul.f32 %v1608, %v1608
  %v1753 = vmul.f32 %v1609, %v1609
  %v1754 = vmul.f32 %v1610, %v1610
  %v1755 = vmul.f32 %v1611, %v1611
  %v1756 = vmul.f32 %v1612, %v1612
  %v1757 = vmul.f32 %v1613, %v1613
  %v1758 = vmul.f32 %v1614, %v1614
  %v1759 = vmul.f32 %v1615, %v1615
  %v1760 = vmul.f32 %v1616, %v1616
  %v1761 = vmul.f32 %v1617, %v1617
  %v1762 = vmul.f32 %v1618, %v1618
  %v1763 = vmul.f32 %v1619, %v1619
  %v1764 = vmul.f32 %v1620, %v1620
  %v1765 = vmul.f32 %v1621, %v1621
  %v1766 = vmul.f32 %v1622, %v1622
  %v1767 = vmul.f32 %v1623, %v1623
  %v1768 = vmul.f32 %v1624, %v1624
  %v1769 = vmul.f32 %v1625, %v1625
  %v1770 = vmul.f32 %v1626, %v1626
  %v1771 = vmul.f32 %v1627, %v1627
  %v1772 = vmul.f32 %v1628, %v1628
  %v1773 = vmul.f32 %v1629, %v1629
  %v1774 = vmul.f32 %v1630, %v1630
  %v1775 = vmul.f32 %v1631, %v1631
  %v1776 = vmul.f32 %v1632, %v1632
  %v1777 = vmul.f32 %v1633, %v1633
  %v1778 = vmul.f32 %v1634, %v1634
  %v1779 = vmul.f32 %v1635, %v1635
  %v1780 = vmul.f32 %v1636, %v1636
  %v1781 = vmul.f32 %v1637, %v1637
  %v1782 = vmul.f32 %v1638, %v1638
  %v1783 = vmul.f32 %v1639, %v1639
  %v1784 = vmul.f32 %v1640, %v1640
  %v1785 = vmul.f32 %v1641, %v1641
  %v1786 = vmul.f32 %v1642, %v1642
  %v1787 = vmul.f32 %v1643, %v1643
  %v1788 = vmul.f32 %v1644, %v1644
  %v1789 = vmul.f32 %v1645, %v1645
  %v1790 = vmul.f32 %v1646, %v1646
  %v1791 = vmul.f32 %v1647, %v1647
  %v1792 = vmul.f32 %v1648, %v1648
  %v1793 = vmul.f32 %v1649, %v1649
  %v1794 = vmul.f32 %v1650, %v1650
  %v1795 = vmul.f32 %v1651, %v1651
  %v1796 = vmul.f32 %v1652, %v1652
  %v1797 = vmul.f32 %v1653, %v1653
  %v1798 = vmul.f32 %v1654, %v1654
  %v1799 = vmul.f32 %v1655, %v1655
  %v1800 = vmul.f32 %v1656, %v1656
  %v1801 = vmul.f32 %v1657, %v1657
  %v1802 = vmul.f32 %v1658, %v1658
  %v1803 = vmul.f32 %v1659, %v1659
  %v1804 = vmul.f32 %v1660, %v1660
  %v1805 = vmul.f32 %v1661, %v1661
  %v1806 = vmul.f32 %v1662, %v1662
  %v1807 = vmul.f32 %v1663, %v1663
  %v1808 = vmul.f32 %v1664, %v1664
  %v1809 = vmul.f32 %v1665, %v1665
  %v1810 = vmul.f32 %v1666, %v1666
  %v1811 = vmul.f32 %v1667, %v1667
  %v1812 = vmul.f32 %v1668, %v1668
  %v1813 = vmul.f32 %v1669, %v1669
  %v1814 = vmul.f32 %v1670, %v1670
  %v1815 = vmul.f32 %v1671, %v1671
  %v1816 = vmul.f32 %v1672, %v1672
  %v1817 = vmul.f32 %v1673, %v1673
  %v1818 = vmul.f32 %v1674, %v1674
  %v1819 = vmul.f32 %v1675, %v1675
  %v1820 = vmul.f32 %v1676, %v1676
  %v1821 = vmul.f32 %v1677, %v1677
  %v1822 = vmul.f32 %v1678, %v1678
  %v1823 = vmul.f32 %v1679, %v1679
  %v1824 = vmul.f32 %v1680, %v1680
  %v1825 = vmul.f32 %v1681, %v1681
  %v1826 = vmul.f32 %v1682, %v1682
  %v1827 = vmul.f32 %v1683, %v1683
  %v1828 = vmul.f32 %v1684, %v1684
  %v1829 = vmul.f32 %v1685, %v1685
  %v1830 = vmul.f32 %v1686, %v1686
  %v1831 = vmul.f32 %v1687, %v1687
  %v1832 = vmul.f32 %v1688, %v1688
  %v1833 = vmul.f32 %v1689, %v1689
  %v1834 = vmul.f32 %v1690, %v1690
  %v1835 = vmul.f32 %v1691, %v1691
  %v1836 = vmul.f32 %v1692, %v1692
  %v1837 = vmul.f32 %v1693, %v1693
  %v1838 = vmul.f32 %v1694, %v1694
  %v1839 = vmul.f32 %v1695, %v1695
  %v1840 = vmul.f32 %v1696, %v1696
  %v1841 = vmul.f32 %v1697, %v1697
  %v1842 = vmul.f32 %v1698, %v1698
  %v1843 = vmul.f32 %v1699, %v1699
  %v1844 = vmul.f32 %v1700, %v1700
  %v1845 = vmul.f32 %v1701, %v1701
  %v1846 = vmul.f32 %v1702, %v1702
  %v1847 = vmul.f32 %v1703, %v1703
  %v1848 = vsel %vm1264, %v1704, 0.0
  %v1849 = vsel %vm1264, %v1705, 0.0
  %v1850 = vadd.f32 %v1848, %v1849
  %v1851 = vsel %vm1264, %v1706, 0.0
  %v1852 = vadd.f32 %v1850, %v1851
  %v1853 = vsel %vm1264, %v1707, 0.0
  %v1854 = vadd.f32 %v1852, %v1853
  %v1855 = vsel %vm1264, %v1708, 0.0
  %v1856 = vadd.f32 %v1854, %v1855
  %v1857 = vsel %vm1264, %v1709, 0.0
  %v1858 = vadd.f32 %v1856, %v1857
  %v1859 = vsel %vm1264, %v1710, 0.0
  %v1860 = vadd.f32 %v1858, %v1859
  %v1861 = vsel %vm1264, %v1711, 0.0
  %v1862 = vadd.f32 %v1860, %v1861
  %v1863 = vsel %vm1264, %v1712, 0.0
  %v1864 = vadd.f32 %v1862, %v1863
  %v1865 = vsel %vm1264, %v1713, 0.0
  %v1866 = vadd.f32 %v1864, %v1865
  %v1867 = vsel %vm1264, %v1714, 0.0
  %v1868 = vadd.f32 %v1866, %v1867
  %v1869 = vsel %vm1264, %v1715, 0.0
  %v1870 = vadd.f32 %v1868, %v1869
  %v1871 = vsel %vm1264, %v1716, 0.0
  %v1872 = vadd.f32 %v1870, %v1871
  %v1873 = vsel %vm1264, %v1717, 0.0
  %v1874 = vadd.f32 %v1872, %v1873
  %v1875 = vsel %vm1264, %v1718, 0.0
  %v1876 = vadd.f32 %v1874, %v1875
  %v1877 = vsel %vm1264, %v1719, 0.0
  %v1878 = vadd.f32 %v1876, %v1877
  %v1879 = vsel %vm1264, %v1720, 0.0
  %v1880 = vadd.f32 %v1878, %v1879
  %v1881 = vsel %vm1264, %v1721, 0.0
  %v1882 = vadd.f32 %v1880, %v1881
  %v1883 = vsel %vm1264, %v1722, 0.0
  %v1884 = vadd.f32 %v1882, %v1883
  %v1885 = vsel %vm1264, %v1723, 0.0
  %v1886 = vadd.f32 %v1884, %v1885
  %v1887 = vsel %vm1264, %v1724, 0.0
  %v1888 = vadd.f32 %v1886, %v1887
  %v1889 = vsel %vm1264, %v1725, 0.0
  %v1890 = vadd.f32 %v1888, %v1889
  %v1891 = vsel %vm1264, %v1726, 0.0
  %v1892 = vadd.f32 %v1890, %v1891
  %v1893 = vsel %vm1264, %v1727, 0.0
  %v1894 = vadd.f32 %v1892, %v1893
  %v1895 = vsel %vm1264, %v1728, 0.0
  %v1896 = vadd.f32 %v1894, %v1895
  %v1897 = vsel %vm1264, %v1729, 0.0
  %v1898 = vadd.f32 %v1896, %v1897
  %v1899 = vsel %vm1264, %v1730, 0.0
  %v1900 = vadd.f32 %v1898, %v1899
  %v1901 = vsel %vm1264, %v1731, 0.0
  %v1902 = vadd.f32 %v1900, %v1901
  %v1903 = vsel %vm1264, %v1732, 0.0
  %v1904 = vadd.f32 %v1902, %v1903
  %v1905 = vsel %vm1264, %v1733, 0.0
  %v1906 = vadd.f32 %v1904, %v1905
  %v1907 = vsel %vm1264, %v1734, 0.0
  %v1908 = vadd.f32 %v1906, %v1907
  %v1909 = vsel %vm1264, %v1735, 0.0
  %v1910 = vadd.f32 %v1908, %v1909
  %v1911 = vsel %vm1264, %v1736, 0.0
  %v1912 = vadd.f32 %v1910, %v1911
  %v1913 = vsel %vm1264, %v1737, 0.0
  %v1914 = vadd.f32 %v1912, %v1913
  %v1915 = vsel %vm1264, %v1738, 0.0
  %v1916 = vadd.f32 %v1914, %v1915
  %v1917 = vsel %vm1264, %v1739, 0.0
  %v1918 = vadd.f32 %v1916, %v1917
  %v1919 = vsel %vm1264, %v1740, 0.0
  %v1920 = vadd.f32 %v1918, %v1919
  %v1921 = vsel %vm1264, %v1741, 0.0
  %v1922 = vadd.f32 %v1920, %v1921
  %v1923 = vsel %vm1264, %v1742, 0.0
  %v1924 = vadd.f32 %v1922, %v1923
  %v1925 = vsel %vm1264, %v1743, 0.0
  %v1926 = vadd.f32 %v1924, %v1925
  %v1927 = vsel %vm1264, %v1744, 0.0
  %v1928 = vadd.f32 %v1926, %v1927
  %v1929 = vsel %vm1264, %v1745, 0.0
  %v1930 = vadd.f32 %v1928, %v1929
  %v1931 = vsel %vm1264, %v1746, 0.0
  %v1932 = vadd.f32 %v1930, %v1931
  %v1933 = vsel %vm1264, %v1747, 0.0
  %v1934 = vadd.f32 %v1932, %v1933
  %v1935 = vsel %vm1264, %v1748, 0.0
  %v1936 = vadd.f32 %v1934, %v1935
  %v1937 = vsel %vm1264, %v1749, 0.0
  %v1938 = vadd.f32 %v1936, %v1937
  %v1939 = vsel %vm1264, %v1750, 0.0
  %v1940 = vadd.f32 %v1938, %v1939
  %v1941 = vsel %vm1264, %v1751, 0.0
  %v1942 = vadd.f32 %v1940, %v1941
  %v1943 = vsel %vm1264, %v1752, 0.0
  %v1944 = vadd.f32 %v1942, %v1943
  %v1945 = vsel %vm1264, %v1753, 0.0
  %v1946 = vadd.f32 %v1944, %v1945
  %v1947 = vsel %vm1264, %v1754, 0.0
  %v1948 = vadd.f32 %v1946, %v1947
  %v1949 = vsel %vm1264, %v1755, 0.0
  %v1950 = vadd.f32 %v1948, %v1949
  %v1951 = vsel %vm1264, %v1756, 0.0
  %v1952 = vadd.f32 %v1950, %v1951
  %v1953 = vsel %vm1264, %v1757, 0.0
  %v1954 = vadd.f32 %v1952, %v1953
  %v1955 = vsel %vm1264, %v1758, 0.0
  %v1956 = vadd.f32 %v1954, %v1955
  %v1957 = vsel %vm1264, %v1759, 0.0
  %v1958 = vadd.f32 %v1956, %v1957
  %v1959 = vsel %vm1264, %v1760, 0.0
  %v1960 = vadd.f32 %v1958, %v1959
  %v1961 = vsel %vm1264, %v1761, 0.0
  %v1962 = vadd.f32 %v1960, %v1961
  %v1963 = vsel %vm1264, %v1762, 0.0
  %v1964 = vadd.f32 %v1962, %v1963
  %v1965 = vsel %vm1264, %v1763, 0.0
  %v1966 = vadd.f32 %v1964, %v1965
  %v1967 = vsel %vm1264, %v1764, 0.0
  %v1968 = vadd.f32 %v1966, %v1967
  %v1969 = vsel %vm1264, %v1765, 0.0
  %v1970 = vadd.f32 %v1968, %v1969
  %v1971 = vsel %vm1264, %v1766, 0.0
  %v1972 = vadd.f32 %v1970, %v1971
  %v1973 = vsel %vm1264, %v1767, 0.0
  %v1974 = vadd.f32 %v1972, %v1973
  %v1975 = vsel %vm1264, %v1768, 0.0
  %v1976 = vadd.f32 %v1974, %v1975
  %v1977 = vsel %vm1264, %v1769, 0.0
  %v1978 = vadd.f32 %v1976, %v1977
  %v1979 = vsel %vm1264, %v1770, 0.0
  %v1980 = vadd.f32 %v1978, %v1979
  %v1981 = vsel %vm1264, %v1771, 0.0
  %v1982 = vadd.f32 %v1980, %v1981
  %v1983 = vsel %vm1264, %v1772, 0.0
  %v1984 = vadd.f32 %v1982, %v1983
  %v1985 = vsel %vm1264, %v1773, 0.0
  %v1986 = vadd.f32 %v1984, %v1985
  %v1987 = vsel %vm1264, %v1774, 0.0
  %v1988 = vadd.f32 %v1986, %v1987
  %v1989 = vsel %vm1264, %v1775, 0.0
  %v1990 = vadd.f32 %v1988, %v1989
  %v1991 = vsel %vm1264, %v1776, 0.0
  %v1992 = vadd.f32 %v1990, %v1991
  %v1993 = vsel %vm1264, %v1777, 0.0
  %v1994 = vadd.f32 %v1992, %v1993
  %v1995 = vsel %vm1264, %v1778, 0.0
  %v1996 = vadd.f32 %v1994, %v1995
  %v1997 = vsel %vm1264, %v1779, 0.0
  %v1998 = vadd.f32 %v1996, %v1997
  %v1999 = vsel %vm1264, %v1780, 0.0
  %v2000 = vadd.f32 %v1998, %v1999
  %v2001 = vsel %vm1264, %v1781, 0.0
  %v2002 = vadd.f32 %v2000, %v2001
  %v2003 = vsel %vm1264, %v1782, 0.0
  %v2004 = vadd.f32 %v2002, %v2003
  %v2005 = vsel %vm1264, %v1783, 0.0
  %v2006 = vadd.f32 %v2004, %v2005
  %v2007 = vsel %vm1264, %v1784, 0.0
  %v2008 = vadd.f32 %v2006, %v2007
  %v2009 = vsel %vm1264, %v1785, 0.0
  %v2010 = vadd.f32 %v2008, %v2009
  %v2011 = vsel %vm1264, %v1786, 0.0
  %v2012 = vadd.f32 %v2010, %v2011
  %v2013 = vsel %vm1264, %v1787, 0.0
  %v2014 = vadd.f32 %v2012, %v2013
  %v2015 = vsel %vm1264, %v1788, 0.0
  %v2016 = vadd.f32 %v2014, %v2015
  %v2017 = vsel %vm1264, %v1789, 0.0
  %v2018 = vadd.f32 %v2016, %v2017
  %v2019 = vsel %vm1264, %v1790, 0.0
  %v2020 = vadd.f32 %v2018, %v2019
  %v2021 = vsel %vm1264, %v1791, 0.0
  %v2022 = vadd.f32 %v2020, %v2021
  %v2023 = vsel %vm1264, %v1792, 0.0
  %v2024 = vadd.f32 %v2022, %v2023
  %v2025 = vsel %vm1264, %v1793, 0.0
  %v2026 = vadd.f32 %v2024, %v2025
  %v2027 = vsel %vm1264, %v1794, 0.0
  %v2028 = vadd.f32 %v2026, %v2027
  %v2029 = vsel %vm1264, %v1795, 0.0
  %v2030 = vadd.f32 %v2028, %v2029
  %v2031 = vsel %vm1264, %v1796, 0.0
  %v2032 = vadd.f32 %v2030, %v2031
  %v2033 = vsel %vm1264, %v1797, 0.0
  %v2034 = vadd.f32 %v2032, %v2033
  %v2035 = vsel %vm1264, %v1798, 0.0
  %v2036 = vadd.f32 %v2034, %v2035
  %v2037 = vsel %vm1264, %v1799, 0.0
  %v2038 = vadd.f32 %v2036, %v2037
  %v2039 = vsel %vm1264, %v1800, 0.0
  %v2040 = vadd.f32 %v2038, %v2039
  %v2041 = vsel %vm1264, %v1801, 0.0
  %v2042 = vadd.f32 %v2040, %v2041
  %v2043 = vsel %vm1264, %v1802, 0.0
  %v2044 = vadd.f32 %v2042, %v2043
  %v2045 = vsel %vm1264, %v1803, 0.0
  %v2046 = vadd.f32 %v2044, %v2045
  %v2047 = vsel %vm1264, %v1804, 0.0
  %v2048 = vadd.f32 %v2046, %v2047
  %v2049 = vsel %vm1264, %v1805, 0.0
  %v2050 = vadd.f32 %v2048, %v2049
  %v2051 = vsel %vm1264, %v1806, 0.0
  %v2052 = vadd.f32 %v2050, %v2051
  %v2053 = vsel %vm1264, %v1807, 0.0
  %v2054 = vadd.f32 %v2052, %v2053
  %v2055 = vsel %vm1264, %v1808, 0.0
  %v2056 = vadd.f32 %v2054, %v2055
  %v2057 = vsel %vm1264, %v1809, 0.0
  %v2058 = vadd.f32 %v2056, %v2057
  %v2059 = vsel %vm1264, %v1810, 0.0
  %v2060 = vadd.f32 %v2058, %v2059
  %v2061 = vsel %vm1264, %v1811, 0.0
  %v2062 = vadd.f32 %v2060, %v2061
  %v2063 = vsel %vm1264, %v1812, 0.0
  %v2064 = vadd.f32 %v2062, %v2063
  %v2065 = vsel %vm1264, %v1813, 0.0
  %v2066 = vadd.f32 %v2064, %v2065
  %v2067 = vsel %vm1264, %v1814, 0.0
  %v2068 = vadd.f32 %v2066, %v2067
  %v2069 = vsel %vm1264, %v1815, 0.0
  %v2070 = vadd.f32 %v2068, %v2069
  %v2071 = vsel %vm1264, %v1816, 0.0
  %v2072 = vadd.f32 %v2070, %v2071
  %v2073 = vsel %vm1264, %v1817, 0.0
  %v2074 = vadd.f32 %v2072, %v2073
  %v2075 = vsel %vm1264, %v1818, 0.0
  %v2076 = vadd.f32 %v2074, %v2075
  %v2077 = vsel %vm1264, %v1819, 0.0
  %v2078 = vadd.f32 %v2076, %v2077
  %v2079 = vsel %vm1264, %v1820, 0.0
  %v2080 = vadd.f32 %v2078, %v2079
  %v2081 = vsel %vm1264, %v1821, 0.0
  %v2082 = vadd.f32 %v2080, %v2081
  %v2083 = vsel %vm1264, %v1822, 0.0
  %v2084 = vadd.f32 %v2082, %v2083
  %v2085 = vsel %vm1264, %v1823, 0.0
  %v2086 = vadd.f32 %v2084, %v2085
  %v2087 = vsel %vm1264, %v1824, 0.0
  %v2088 = vadd.f32 %v2086, %v2087
  %v2089 = vsel %vm1264, %v1825, 0.0
  %v2090 = vadd.f32 %v2088, %v2089
  %v2091 = vsel %vm1264, %v1826, 0.0
  %v2092 = vadd.f32 %v2090, %v2091
  %v2093 = vsel %vm1264, %v1827, 0.0
  %v2094 = vadd.f32 %v2092, %v2093
  %v2095 = vsel %vm1264, %v1828, 0.0
  %v2096 = vadd.f32 %v2094, %v2095
  %v2097 = vsel %vm1264, %v1829, 0.0
  %v2098 = vadd.f32 %v2096, %v2097
  %v2099 = vsel %vm1264, %v1830, 0.0
  %v2100 = vadd.f32 %v2098, %v2099
  %v2101 = vsel %vm1264, %v1831, 0.0
  %v2102 = vadd.f32 %v2100, %v2101
  %v2103 = vsel %vm1264, %v1832, 0.0
  %v2104 = vadd.f32 %v2102, %v2103
  %v2105 = vsel %vm1264, %v1833, 0.0
  %v2106 = vadd.f32 %v2104, %v2105
  %v2107 = vsel %vm1264, %v1834, 0.0
  %v2108 = vadd.f32 %v2106, %v2107
  %v2109 = vsel %vm1264, %v1835, 0.0
  %v2110 = vadd.f32 %v2108, %v2109
  %v2111 = vsel %vm1264, %v1836, 0.0
  %v2112 = vadd.f32 %v2110, %v2111
  %v2113 = vsel %vm1264, %v1837, 0.0
  %v2114 = vadd.f32 %v2112, %v2113
  %v2115 = vsel %vm1264, %v1838, 0.0
  %v2116 = vadd.f32 %v2114, %v2115
  %v2117 = vsel %vm1264, %v1839, 0.0
  %v2118 = vadd.f32 %v2116, %v2117
  %v2119 = vsel %vm1264, %v1840, 0.0
  %v2120 = vadd.f32 %v2118, %v2119
  %v2121 = vsel %vm1264, %v1841, 0.0
  %v2122 = vadd.f32 %v2120, %v2121
  %v2123 = vsel %vm1264, %v1842, 0.0
  %v2124 = vadd.f32 %v2122, %v2123
  %v2125 = vsel %vm1264, %v1843, 0.0
  %v2126 = vadd.f32 %v2124, %v2125
  %v2127 = vsel %vm1264, %v1844, 0.0
  %v2128 = vadd.f32 %v2126, %v2127
  %v2129 = vsel %vm1264, %v1845, 0.0
  %v2130 = vadd.f32 %v2128, %v2129
  %v2131 = vsel %vm1264, %v1846, 0.0
  %v2132 = vadd.f32 %v2130, %v2131
  %v2133 = vsel %vm1264, %v1847, 0.0
  %v2134 = vadd.f32 %v2132, %v2133
  %v2135 = vrot.slane %v2134, 4
  %v2136 = vadd.f32 %v2134, %v2135
  %v2137 = vrot.slane %v2136, 2
  %v2138 = vadd.f32 %v2136, %v2137
  %v2139 = vrot.slane %v2138, 1
  %v2140 = vadd.f32 %v2138, %v2139
  %v2141 = vmul.f32 %v2140, %v1558
  %v2142 = vld [vmem:[%s2] sm:$0x1]
  %v2143 = vadd.f32 %v2141, 1e-05
  %v2144 = vrsqrt.pop %v2143
  %v2145 = vmul.f32 %v2142, %v2144
  %v2146 = vlaneseq
  %v2147 = vshrl.u32 %v2146, 7
  %v2148 = vsub.s32 0, %v2147
  %v2149 = vrot.slane %v2145, %v2148
  %v2150 = vmul.f32 %v1560, %v2149
  %v2151 = vmul.f32 %v1561, %v2149
  %v2152 = vmul.f32 %v1562, %v2149
  %v2153 = vmul.f32 %v1563, %v2149
  %v2154 = vmul.f32 %v1564, %v2149
  %v2155 = vmul.f32 %v1565, %v2149
  %v2156 = vmul.f32 %v1566, %v2149
  %v2157 = vmul.f32 %v1567, %v2149
  %v2158 = vmul.f32 %v1568, %v2149
  %v2159 = vmul.f32 %v1569, %v2149
  %v2160 = vmul.f32 %v1570, %v2149
  %v2161 = vmul.f32 %v1571, %v2149
  %v2162 = vmul.f32 %v1572, %v2149
  %v2163 = vmul.f32 %v1573, %v2149
  %v2164 = vmul.f32 %v1574, %v2149
  %v2165 = vmul.f32 %v1575, %v2149
  %v2166 = vmul.f32 %v1576, %v2149
  %v2167 = vmul.f32 %v1577, %v2149
  %v2168 = vmul.f32 %v1578, %v2149
  %v2169 = vmul.f32 %v1579, %v2149
  %v2170 = vmul.f32 %v1580, %v2149
  %v2171 = vmul.f32 %v1581, %v2149
  %v2172 = vmul.f32 %v1582, %v2149
  %v2173 = vmul.f32 %v1583, %v2149
  %v2174 = vmul.f32 %v1584, %v2149
  %v2175 = vmul.f32 %v1585, %v2149
  %v2176 = vmul.f32 %v1586, %v2149
  %v2177 = vmul.f32 %v1587, %v2149
  %v2178 = vmul.f32 %v1588, %v2149
  %v2179 = vmul.f32 %v1589, %v2149
  %v2180 = vmul.f32 %v1590, %v2149
  %v2181 = vmul.f32 %v1591, %v2149
  %v2182 = vmul.f32 %v1592, %v2149
  %v2183 = vmul.f32 %v1593, %v2149
  %v2184 = vmul.f32 %v1594, %v2149
  %v2185 = vmul.f32 %v1595, %v2149
  %v2186 = vmul.f32 %v1596, %v2149
  %v2187 = vmul.f32 %v1597, %v2149
  %v2188 = vmul.f32 %v1598, %v2149
  %v2189 = vmul.f32 %v1599, %v2149
  %v2190 = vmul.f32 %v1600, %v2149
  %v2191 = vmul.f32 %v1601, %v2149
  %v2192 = vmul.f32 %v1602, %v2149
  %v2193 = vmul.f32 %v1603, %v2149
  %v2194 = vmul.f32 %v1604, %v2149
  %v2195 = vmul.f32 %v1605, %v2149
  %v2196 = vmul.f32 %v1606, %v2149
  %v2197 = vmul.f32 %v1607, %v2149
  %v2198 = vmul.f32 %v1608, %v2149
  %v2199 = vmul.f32 %v1609, %v2149
  %v2200 = vmul.f32 %v1610, %v2149
  %v2201 = vmul.f32 %v1611, %v2149
  %v2202 = vmul.f32 %v1612, %v2149
  %v2203 = vmul.f32 %v1613, %v2149
  %v2204 = vmul.f32 %v1614, %v2149
  %v2205 = vmul.f32 %v1615, %v2149
  %v2206 = vmul.f32 %v1616, %v2149
  %v2207 = vmul.f32 %v1617, %v2149
  %v2208 = vmul.f32 %v1618, %v2149
  %v2209 = vmul.f32 %v1619, %v2149
  %v2210 = vmul.f32 %v1620, %v2149
  %v2211 = vmul.f32 %v1621, %v2149
  %v2212 = vmul.f32 %v1622, %v2149
  %v2213 = vmul.f32 %v1623, %v2149
  %v2214 = vmul.f32 %v1624, %v2149
  %v2215 = vmul.f32 %v1625, %v2149
  %v2216 = vmul.f32 %v1626, %v2149
  %v2217 = vmul.f32 %v1627, %v2149
  %v2218 = vmul.f32 %v1628, %v2149
  %v2219 = vmul.f32 %v1629, %v2149
  %v2220 = vmul.f32 %v1630, %v2149
  %v2221 = vmul.f32 %v1631, %v2149
  %v2222 = vmul.f32 %v1632, %v2149
  %v2223 = vmul.f32 %v1633, %v2149
  %v2224 = vmul.f32 %v1634, %v2149
  %v2225 = vmul.f32 %v1635, %v2149
  %v2226 = vmul.f32 %v1636, %v2149
  %v2227 = vmul.f32 %v1637, %v2149
  %v2228 = vmul.f32 %v1638, %v2149
  %v2229 = vmul.f32 %v1639, %v2149
  %v2230 = vmul.f32 %v1640, %v2149
  %v2231 = vmul.f32 %v1641, %v2149
  %v2232 = vmul.f32 %v1642, %v2149
  %v2233 = vmul.f32 %v1643, %v2149
  %v2234 = vmul.f32 %v1644, %v2149
  %v2235 = vmul.f32 %v1645, %v2149
  %v2236 = vmul.f32 %v1646, %v2149
  %v2237 = vmul.f32 %v1647, %v2149
  %v2238 = vmul.f32 %v1648, %v2149
  %v2239 = vmul.f32 %v1649, %v2149
  %v2240 = vmul.f32 %v1650, %v2149
  %v2241 = vmul.f32 %v1651, %v2149
  %v2242 = vmul.f32 %v1652, %v2149
  %v2243 = vmul.f32 %v1653, %v2149
  %v2244 = vmul.f32 %v1654, %v2149
  %v2245 = vmul.f32 %v1655, %v2149
  %v2246 = vmul.f32 %v1656, %v2149
  %v2247 = vmul.f32 %v1657, %v2149
  %v2248 = vmul.f32 %v1658, %v2149
  %v2249 = vmul.f32 %v1659, %v2149
  %v2250 = vmul.f32 %v1660, %v2149
  %v2251 = vmul.f32 %v1661, %v2149
  %v2252 = vmul.f32 %v1662, %v2149
  %v2253 = vmul.f32 %v1663, %v2149
  %v2254 = vmul.f32 %v1664, %v2149
  %v2255 = vmul.f32 %v1665, %v2149
  %v2256 = vmul.f32 %v1666, %v2149
  %v2257 = vmul.f32 %v1667, %v2149
  %v2258 = vmul.f32 %v1668, %v2149
  %v2259 = vmul.f32 %v1669, %v2149
  %v2260 = vmul.f32 %v1670, %v2149
  %v2261 = vmul.f32 %v1671, %v2149
  %v2262 = vmul.f32 %v1672, %v2149
  %v2263 = vmul.f32 %v1673, %v2149
  %v2264 = vmul.f32 %v1674, %v2149
  %v2265 = vmul.f32 %v1675, %v2149
  %v2266 = vmul.f32 %v1676, %v2149
  %v2267 = vmul.f32 %v1677, %v2149
  %v2268 = vmul.f32 %v1678, %v2149
  %v2269 = vmul.f32 %v1679, %v2149
  %v2270 = vmul.f32 %v1680, %v2149
  %v2271 = vmul.f32 %v1681, %v2149
  %v2272 = vmul.f32 %v1682, %v2149
  %v2273 = vmul.f32 %v1683, %v2149
  %v2274 = vmul.f32 %v1684, %v2149
  %v2275 = vmul.f32 %v1685, %v2149
  %v2276 = vmul.f32 %v1686, %v2149
  %v2277 = vmul.f32 %v1687, %v2149
  %v2278 = vmul.f32 %v1688, %v2149
  %v2279 = vmul.f32 %v1689, %v2149
  %v2280 = vmul.f32 %v1690, %v2149
  %v2281 = vmul.f32 %v1691, %v2149
  %v2282 = vmul.f32 %v1692, %v2149
  %v2283 = vmul.f32 %v1693, %v2149
  %v2284 = vmul.f32 %v1694, %v2149
  %v2285 = vmul.f32 %v1695, %v2149
  %v2286 = vmul.f32 %v1696, %v2149
  %v2287 = vmul.f32 %v1697, %v2149
  %v2288 = vmul.f32 %v1698, %v2149
  %v2289 = vmul.f32 %v1699, %v2149
  %v2290 = vmul.f32 %v1700, %v2149
  %v2291 = vmul.f32 %v1701, %v2149
  %v2292 = vmul.f32 %v1702, %v2149
  %v2293 = vmul.f32 %v1703, %v2149
  %v2294 = vld [vmem:[%s2 + $0x1] sm:$0x1]
  %v2295 = vlaneseq
  %v2296 = vshrl.u32 %v2295, 7
  %v2297 = vsub.s32 0, %v2296
  %v2298 = vrot.slane %v2294, %v2297
  %v2299 = vadd.f32 %v2150, %v2298
  %v2300 = vadd.f32 %v2151, %v2298
  %v2301 = vadd.f32 %v2152, %v2298
  %v2302 = vadd.f32 %v2153, %v2298
  %v2303 = vadd.f32 %v2154, %v2298
  %v2304 = vadd.f32 %v2155, %v2298
  %v2305 = vadd.f32 %v2156, %v2298
  %v2306 = vadd.f32 %v2157, %v2298
  %v2307 = vadd.f32 %v2158, %v2298
  %v2308 = vadd.f32 %v2159, %v2298
  %v2309 = vadd.f32 %v2160, %v2298
  %v2310 = vadd.f32 %v2161, %v2298
  %v2311 = vadd.f32 %v2162, %v2298
  %v2312 = vadd.f32 %v2163, %v2298
  %v2313 = vadd.f32 %v2164, %v2298
  %v2314 = vadd.f32 %v2165, %v2298
  %v2315 = vadd.f32 %v2166, %v2298
  %v2316 = vadd.f32 %v2167, %v2298
  %v2317 = vadd.f32 %v2168, %v2298
  %v2318 = vadd.f32 %v2169, %v2298
  %v2319 = vadd.f32 %v2170, %v2298
  %v2320 = vadd.f32 %v2171, %v2298
  %v2321 = vadd.f32 %v2172, %v2298
  %v2322 = vadd.f32 %v2173, %v2298
  %v2323 = vadd.f32 %v2174, %v2298
  %v2324 = vadd.f32 %v2175, %v2298
  %v2325 = vadd.f32 %v2176, %v2298
  %v2326 = vadd.f32 %v2177, %v2298
  %v2327 = vadd.f32 %v2178, %v2298
  %v2328 = vadd.f32 %v2179, %v2298
  %v2329 = vadd.f32 %v2180, %v2298
  %v2330 = vadd.f32 %v2181, %v2298
  %v2331 = vadd.f32 %v2182, %v2298
  %v2332 = vadd.f32 %v2183, %v2298
  %v2333 = vadd.f32 %v2184, %v2298
  %v2334 = vadd.f32 %v2185, %v2298
  %v2335 = vadd.f32 %v2186, %v2298
  %v2336 = vadd.f32 %v2187, %v2298
  %v2337 = vadd.f32 %v2188, %v2298
  %v2338 = vadd.f32 %v2189, %v2298
  %v2339 = vadd.f32 %v2190, %v2298
  %v2340 = vadd.f32 %v2191, %v2298
  %v2341 = vadd.f32 %v2192, %v2298
  %v2342 = vadd.f32 %v2193, %v2298
  %v2343 = vadd.f32 %v2194, %v2298
  %v2344 = vadd.f32 %v2195, %v2298
  %v2345 = vadd.f32 %v2196, %v2298
  %v2346 = vadd.f32 %v2197, %v2298
  %v2347 = vadd.f32 %v2198, %v2298
  %v2348 = vadd.f32 %v2199, %v2298
  %v2349 = vadd.f32 %v2200, %v2298
  %v2350 = vadd.f32 %v2201, %v2298
  %v2351 = vadd.f32 %v2202, %v2298
  %v2352 = vadd.f32 %v2203, %v2298
  %v2353 = vadd.f32 %v2204, %v2298
  %v2354 = vadd.f32 %v2205, %v2298
  %v2355 = vadd.f32 %v2206, %v2298
  %v2356 = vadd.f32 %v2207, %v2298
  %v2357 = vadd.f32 %v2208, %v2298
  %v2358 = vadd.f32 %v2209, %v2298
  %v2359 = vadd.f32 %v2210, %v2298
  %v2360 = vadd.f32 %v2211, %v2298
  %v2361 = vadd.f32 %v2212, %v2298
  %v2362 = vadd.f32 %v2213, %v2298
  %v2363 = vadd.f32 %v2214, %v2298
  %v2364 = vadd.f32 %v2215, %v2298
  %v2365 = vadd.f32 %v2216, %v2298
  %v2366 = vadd.f32 %v2217, %v2298
  %v2367 = vadd.f32 %v2218, %v2298
  %v2368 = vadd.f32 %v2219, %v2298
  %v2369 = vadd.f32 %v2220, %v2298
  %v2370 = vadd.f32 %v2221, %v2298
  %v2371 = vadd.f32 %v2222, %v2298
  %v2372 = vadd.f32 %v2223, %v2298
  %v2373 = vadd.f32 %v2224, %v2298
  %v2374 = vadd.f32 %v2225, %v2298
  %v2375 = vadd.f32 %v2226, %v2298
  %v2376 = vadd.f32 %v2227, %v2298
  %v2377 = vadd.f32 %v2228, %v2298
  %v2378 = vadd.f32 %v2229, %v2298
  %v2379 = vadd.f32 %v2230, %v2298
  %v2380 = vadd.f32 %v2231, %v2298
  %v2381 = vadd.f32 %v2232, %v2298
  %v2382 = vadd.f32 %v2233, %v2298
  %v2383 = vadd.f32 %v2234, %v2298
  %v2384 = vadd.f32 %v2235, %v2298
  %v2385 = vadd.f32 %v2236, %v2298
  %v2386 = vadd.f32 %v2237, %v2298
  %v2387 = vadd.f32 %v2238, %v2298
  %v2388 = vadd.f32 %v2239, %v2298
  %v2389 = vadd.f32 %v2240, %v2298
  %v2390 = vadd.f32 %v2241, %v2298
  %v2391 = vadd.f32 %v2242, %v2298
  %v2392 = vadd.f32 %v2243, %v2298
  %v2393 = vadd.f32 %v2244, %v2298
  %v2394 = vadd.f32 %v2245, %v2298
  %v2395 = vadd.f32 %v2246, %v2298
  %v2396 = vadd.f32 %v2247, %v2298
  %v2397 = vadd.f32 %v2248, %v2298
  %v2398 = vadd.f32 %v2249, %v2298
  %v2399 = vadd.f32 %v2250, %v2298
  %v2400 = vadd.f32 %v2251, %v2298
  %v2401 = vadd.f32 %v2252, %v2298
  %v2402 = vadd.f32 %v2253, %v2298
  %v2403 = vadd.f32 %v2254, %v2298
  %v2404 = vadd.f32 %v2255, %v2298
  %v2405 = vadd.f32 %v2256, %v2298
  %v2406 = vadd.f32 %v2257, %v2298
  %v2407 = vadd.f32 %v2258, %v2298
  %v2408 = vadd.f32 %v2259, %v2298
  %v2409 = vadd.f32 %v2260, %v2298
  %v2410 = vadd.f32 %v2261, %v2298
  %v2411 = vadd.f32 %v2262, %v2298
  %v2412 = vadd.f32 %v2263, %v2298
  %v2413 = vadd.f32 %v2264, %v2298
  %v2414 = vadd.f32 %v2265, %v2298
  %v2415 = vadd.f32 %v2266, %v2298
  %v2416 = vadd.f32 %v2267, %v2298
  %v2417 = vadd.f32 %v2268, %v2298
  %v2418 = vadd.f32 %v2269, %v2298
  %v2419 = vadd.f32 %v2270, %v2298
  %v2420 = vadd.f32 %v2271, %v2298
  %v2421 = vadd.f32 %v2272, %v2298
  %v2422 = vadd.f32 %v2273, %v2298
  %v2423 = vadd.f32 %v2274, %v2298
  %v2424 = vadd.f32 %v2275, %v2298
  %v2425 = vadd.f32 %v2276, %v2298
  %v2426 = vadd.f32 %v2277, %v2298
  %v2427 = vadd.f32 %v2278, %v2298
  %v2428 = vadd.f32 %v2279, %v2298
  %v2429 = vadd.f32 %v2280, %v2298
  %v2430 = vadd.f32 %v2281, %v2298
  %v2431 = vadd.f32 %v2282, %v2298
  %v2432 = vadd.f32 %v2283, %v2298
  %v2433 = vadd.f32 %v2284, %v2298
  %v2434 = vadd.f32 %v2285, %v2298
  %v2435 = vadd.f32 %v2286, %v2298
  %v2436 = vadd.f32 %v2287, %v2298
  %v2437 = vadd.f32 %v2288, %v2298
  %v2438 = vadd.f32 %v2289, %v2298
  %v2439 = vadd.f32 %v2290, %v2298
  %v2440 = vadd.f32 %v2291, %v2298
  %v2441 = vadd.f32 %v2292, %v2298
  %v2442 = vadd.f32 %v2293, %v2298
  %vm2443 = vcmp.gt.f32.partialorder %v2299, 0.0
  %vm2444 = vcmp.gt.f32.partialorder %v2300, 0.0
  %vm2445 = vcmp.gt.f32.partialorder %v2301, 0.0
  %vm2446 = vcmp.gt.f32.partialorder %v2302, 0.0
  %vm2447 = vcmp.gt.f32.partialorder %v2303, 0.0
  %vm2448 = vcmp.gt.f32.partialorder %v2304, 0.0
  %vm2449 = vcmp.gt.f32.partialorder %v2305, 0.0
  %vm2450 = vcmp.gt.f32.partialorder %v2306, 0.0
  %vm2451 = vcmp.gt.f32.partialorder %v2307, 0.0
  %vm2452 = vcmp.gt.f32.partialorder %v2308, 0.0
  %vm2453 = vcmp.gt.f32.partialorder %v2309, 0.0
  %vm2454 = vcmp.gt.f32.partialorder %v2310, 0.0
  %vm2455 = vcmp.gt.f32.partialorder %v2311, 0.0
  %vm2456 = vcmp.gt.f32.partialorder %v2312, 0.0
  %vm2457 = vcmp.gt.f32.partialorder %v2313, 0.0
  %vm2458 = vcmp.gt.f32.partialorder %v2314, 0.0
  %vm2459 = vcmp.gt.f32.partialorder %v2315, 0.0
  %vm2460 = vcmp.gt.f32.partialorder %v2316, 0.0
  %vm2461 = vcmp.gt.f32.partialorder %v2317, 0.0
  %vm2462 = vcmp.gt.f32.partialorder %v2318, 0.0
  %vm2463 = vcmp.gt.f32.partialorder %v2319, 0.0
  %vm2464 = vcmp.gt.f32.partialorder %v2320, 0.0
  %vm2465 = vcmp.gt.f32.partialorder %v2321, 0.0
  %vm2466 = vcmp.gt.f32.partialorder %v2322, 0.0
  %vm2467 = vcmp.gt.f32.partialorder %v2323, 0.0
  %vm2468 = vcmp.gt.f32.partialorder %v2324, 0.0
  %vm2469 = vcmp.gt.f32.partialorder %v2325, 0.0
  %vm2470 = vcmp.gt.f32.partialorder %v2326, 0.0
  %vm2471 = vcmp.gt.f32.partialorder %v2327, 0.0
  %vm2472 = vcmp.gt.f32.partialorder %v2328, 0.0
  %vm2473 = vcmp.gt.f32.partialorder %v2329, 0.0
  %vm2474 = vcmp.gt.f32.partialorder %v2330, 0.0
  %vm2475 = vcmp.gt.f32.partialorder %v2331, 0.0
  %vm2476 = vcmp.gt.f32.partialorder %v2332, 0.0
  %vm2477 = vcmp.gt.f32.partialorder %v2333, 0.0
  %vm2478 = vcmp.gt.f32.partialorder %v2334, 0.0
  %vm2479 = vcmp.gt.f32.partialorder %v2335, 0.0
  %vm2480 = vcmp.gt.f32.partialorder %v2336, 0.0
  %vm2481 = vcmp.gt.f32.partialorder %v2337, 0.0
  %vm2482 = vcmp.gt.f32.partialorder %v2338, 0.0
  %vm2483 = vcmp.gt.f32.partialorder %v2339, 0.0
  %vm2484 = vcmp.gt.f32.partialorder %v2340, 0.0
  %vm2485 = vcmp.gt.f32.partialorder %v2341, 0.0
  %vm2486 = vcmp.gt.f32.partialorder %v2342, 0.0
  %vm2487 = vcmp.gt.f32.partialorder %v2343, 0.0
  %vm2488 = vcmp.gt.f32.partialorder %v2344, 0.0
  %vm2489 = vcmp.gt.f32.partialorder %v2345, 0.0
  %vm2490 = vcmp.gt.f32.partialorder %v2346, 0.0
  %vm2491 = vcmp.gt.f32.partialorder %v2347, 0.0
  %vm2492 = vcmp.gt.f32.partialorder %v2348, 0.0
  %vm2493 = vcmp.gt.f32.partialorder %v2349, 0.0
  %vm2494 = vcmp.gt.f32.partialorder %v2350, 0.0
  %vm2495 = vcmp.gt.f32.partialorder %v2351, 0.0
  %vm2496 = vcmp.gt.f32.partialorder %v2352, 0.0
  %vm2497 = vcmp.gt.f32.partialorder %v2353, 0.0
  %vm2498 = vcmp.gt.f32.partialorder %v2354, 0.0
  %vm2499 = vcmp.gt.f32.partialorder %v2355, 0.0
  %vm2500 = vcmp.gt.f32.partialorder %v2356, 0.0
  %vm2501 = vcmp.gt.f32.partialorder %v2357, 0.0
  %vm2502 = vcmp.gt.f32.partialorder %v2358, 0.0
  %vm2503 = vcmp.gt.f32.partialorder %v2359, 0.0
  %vm2504 = vcmp.gt.f32.partialorder %v2360, 0.0
  %vm2505 = vcmp.gt.f32.partialorder %v2361, 0.0
  %vm2506 = vcmp.gt.f32.partialorder %v2362, 0.0
  %vm2507 = vcmp.gt.f32.partialorder %v2363, 0.0
  %vm2508 = vcmp.gt.f32.partialorder %v2364, 0.0
  %vm2509 = vcmp.gt.f32.partialorder %v2365, 0.0
  %vm2510 = vcmp.gt.f32.partialorder %v2366, 0.0
  %vm2511 = vcmp.gt.f32.partialorder %v2367, 0.0
  %vm2512 = vcmp.gt.f32.partialorder %v2368, 0.0
  %vm2513 = vcmp.gt.f32.partialorder %v2369, 0.0
  %vm2514 = vcmp.gt.f32.partialorder %v2370, 0.0
  %vm2515 = vcmp.gt.f32.partialorder %v2371, 0.0
  %vm2516 = vcmp.gt.f32.partialorder %v2372, 0.0
  %vm2517 = vcmp.gt.f32.partialorder %v2373, 0.0
  %vm2518 = vcmp.gt.f32.partialorder %v2374, 0.0
  %vm2519 = vcmp.gt.f32.partialorder %v2375, 0.0
  %vm2520 = vcmp.gt.f32.partialorder %v2376, 0.0
  %vm2521 = vcmp.gt.f32.partialorder %v2377, 0.0
  %vm2522 = vcmp.gt.f32.partialorder %v2378, 0.0
  %vm2523 = vcmp.gt.f32.partialorder %v2379, 0.0
  %vm2524 = vcmp.gt.f32.partialorder %v2380, 0.0
  %vm2525 = vcmp.gt.f32.partialorder %v2381, 0.0
  %vm2526 = vcmp.gt.f32.partialorder %v2382, 0.0
  %vm2527 = vcmp.gt.f32.partialorder %v2383, 0.0
  %vm2528 = vcmp.gt.f32.partialorder %v2384, 0.0
  %vm2529 = vcmp.gt.f32.partialorder %v2385, 0.0
  %vm2530 = vcmp.gt.f32.partialorder %v2386, 0.0
  %vm2531 = vcmp.gt.f32.partialorder %v2387, 0.0
  %vm2532 = vcmp.gt.f32.partialorder %v2388, 0.0
  %vm2533 = vcmp.gt.f32.partialorder %v2389, 0.0
  %vm2534 = vcmp.gt.f32.partialorder %v2390, 0.0
  %vm2535 = vcmp.gt.f32.partialorder %v2391, 0.0
  %vm2536 = vcmp.gt.f32.partialorder %v2392, 0.0
  %vm2537 = vcmp.gt.f32.partialorder %v2393, 0.0
  %vm2538 = vcmp.gt.f32.partialorder %v2394, 0.0
  %vm2539 = vcmp.gt.f32.partialorder %v2395, 0.0
  %vm2540 = vcmp.gt.f32.partialorder %v2396, 0.0
  %vm2541 = vcmp.gt.f32.partialorder %v2397, 0.0
  %vm2542 = vcmp.gt.f32.partialorder %v2398, 0.0
  %vm2543 = vcmp.gt.f32.partialorder %v2399, 0.0
  %vm2544 = vcmp.gt.f32.partialorder %v2400, 0.0
  %vm2545 = vcmp.gt.f32.partialorder %v2401, 0.0
  %vm2546 = vcmp.gt.f32.partialorder %v2402, 0.0
  %vm2547 = vcmp.gt.f32.partialorder %v2403, 0.0
  %vm2548 = vcmp.gt.f32.partialorder %v2404, 0.0
  %vm2549 = vcmp.gt.f32.partialorder %v2405, 0.0
  %vm2550 = vcmp.gt.f32.partialorder %v2406, 0.0
  %vm2551 = vcmp.gt.f32.partialorder %v2407, 0.0
  %vm2552 = vcmp.gt.f32.partialorder %v2408, 0.0
  %vm2553 = vcmp.gt.f32.partialorder %v2409, 0.0
  %vm2554 = vcmp.gt.f32.partialorder %v2410, 0.0
  %vm2555 = vcmp.gt.f32.partialorder %v2411, 0.0
  %vm2556 = vcmp.gt.f32.partialorder %v2412, 0.0
  %vm2557 = vcmp.gt.f32.partialorder %v2413, 0.0
  %vm2558 = vcmp.gt.f32.partialorder %v2414, 0.0
  %vm2559 = vcmp.gt.f32.partialorder %v2415, 0.0
  %vm2560 = vcmp.gt.f32.partialorder %v2416, 0.0
  %vm2561 = vcmp.gt.f32.partialorder %v2417, 0.0
  %vm2562 = vcmp.gt.f32.partialorder %v2418, 0.0
  %vm2563 = vcmp.gt.f32.partialorder %v2419, 0.0
  %vm2564 = vcmp.gt.f32.partialorder %v2420, 0.0
  %vm2565 = vcmp.gt.f32.partialorder %v2421, 0.0
  %vm2566 = vcmp.gt.f32.partialorder %v2422, 0.0
  %vm2567 = vcmp.gt.f32.partialorder %v2423, 0.0
  %vm2568 = vcmp.gt.f32.partialorder %v2424, 0.0
  %vm2569 = vcmp.gt.f32.partialorder %v2425, 0.0
  %vm2570 = vcmp.gt.f32.partialorder %v2426, 0.0
  %vm2571 = vcmp.gt.f32.partialorder %v2427, 0.0
  %vm2572 = vcmp.gt.f32.partialorder %v2428, 0.0
  %vm2573 = vcmp.gt.f32.partialorder %v2429, 0.0
  %vm2574 = vcmp.gt.f32.partialorder %v2430, 0.0
  %vm2575 = vcmp.gt.f32.partialorder %v2431, 0.0
  %vm2576 = vcmp.gt.f32.partialorder %v2432, 0.0
  %vm2577 = vcmp.gt.f32.partialorder %v2433, 0.0
  %vm2578 = vcmp.gt.f32.partialorder %v2434, 0.0
  %vm2579 = vcmp.gt.f32.partialorder %v2435, 0.0
  %vm2580 = vcmp.gt.f32.partialorder %v2436, 0.0
  %vm2581 = vcmp.gt.f32.partialorder %v2437, 0.0
  %vm2582 = vcmp.gt.f32.partialorder %v2438, 0.0
  %vm2583 = vcmp.gt.f32.partialorder %v2439, 0.0
  %vm2584 = vcmp.gt.f32.partialorder %v2440, 0.0
  %vm2585 = vcmp.gt.f32.partialorder %v2441, 0.0
  %vm2586 = vcmp.gt.f32.partialorder %v2442, 0.0
  %v2587 = vmul.f32 %v2299, 0.01
  %v2588 = vmul.f32 %v2300, 0.01
  %v2589 = vmul.f32 %v2301, 0.01
  %v2590 = vmul.f32 %v2302, 0.01
  %v2591 = vmul.f32 %v2303, 0.01
  %v2592 = vmul.f32 %v2304, 0.01
  %v2593 = vmul.f32 %v2305, 0.01
  %v2594 = vmul.f32 %v2306, 0.01
  %v2595 = vmul.f32 %v2307, 0.01
  %v2596 = vmul.f32 %v2308, 0.01
  %v2597 = vmul.f32 %v2309, 0.01
  %v2598 = vmul.f32 %v2310, 0.01
  %v2599 = vmul.f32 %v2311, 0.01
  %v2600 = vmul.f32 %v2312, 0.01
  %v2601 = vmul.f32 %v2313, 0.01
  %v2602 = vmul.f32 %v2314, 0.01
  %v2603 = vmul.f32 %v2315, 0.01
  %v2604 = vmul.f32 %v2316, 0.01
  %v2605 = vmul.f32 %v2317, 0.01
  %v2606 = vmul.f32 %v2318, 0.01
  %v2607 = vmul.f32 %v2319, 0.01
  %v2608 = vmul.f32 %v2320, 0.01
  %v2609 = vmul.f32 %v2321, 0.01
  %v2610 = vmul.f32 %v2322, 0.01
  %v2611 = vmul.f32 %v2323, 0.01
  %v2612 = vmul.f32 %v2324, 0.01
  %v2613 = vmul.f32 %v2325, 0.01
  %v2614 = vmul.f32 %v2326, 0.01
  %v2615 = vmul.f32 %v2327, 0.01
  %v2616 = vmul.f32 %v2328, 0.01
  %v2617 = vmul.f32 %v2329, 0.01
  %v2618 = vmul.f32 %v2330, 0.01
  %v2619 = vmul.f32 %v2331, 0.01
  %v2620 = vmul.f32 %v2332, 0.01
  %v2621 = vmul.f32 %v2333, 0.01
  %v2622 = vmul.f32 %v2334, 0.01
  %v2623 = vmul.f32 %v2335, 0.01
  %v2624 = vmul.f32 %v2336, 0.01
  %v2625 = vmul.f32 %v2337, 0.01
  %v2626 = vmul.f32 %v2338, 0.01
  %v2627 = vmul.f32 %v2339, 0.01
  %v2628 = vmul.f32 %v2340, 0.01
  %v2629 = vmul.f32 %v2341, 0.01
  %v2630 = vmul.f32 %v2342, 0.01
  %v2631 = vmul.f32 %v2343, 0.01
  %v2632 = vmul.f32 %v2344, 0.01
  %v2633 = vmul.f32 %v2345, 0.01
  %v2634 = vmul.f32 %v2346, 0.01
  %v2635 = vmul.f32 %v2347, 0.01
  %v2636 = vmul.f32 %v2348, 0.01
  %v2637 = vmul.f32 %v2349, 0.01
  %v2638 = vmul.f32 %v2350, 0.01
  %v2639 = vmul.f32 %v2351, 0.01
  %v2640 = vmul.f32 %v2352, 0.01
  %v2641 = vmul.f32 %v2353, 0.01
  %v2642 = vmul.f32 %v2354, 0.01
  %v2643 = vmul.f32 %v2355, 0.01
  %v2644 = vmul.f32 %v2356, 0.01
  %v2645 = vmul.f32 %v2357, 0.01
  %v2646 = vmul.f32 %v2358, 0.01
  %v2647 = vmul.f32 %v2359, 0.01
  %v2648 = vmul.f32 %v2360, 0.01
  %v2649 = vmul.f32 %v2361, 0.01
  %v2650 = vmul.f32 %v2362, 0.01
  %v2651 = vmul.f32 %v2363, 0.01
  %v2652 = vmul.f32 %v2364, 0.01
  %v2653 = vmul.f32 %v2365, 0.01
  %v2654 = vmul.f32 %v2366, 0.01
  %v2655 = vmul.f32 %v2367, 0.01
  %v2656 = vmul.f32 %v2368, 0.01
  %v2657 = vmul.f32 %v2369, 0.01
  %v2658 = vmul.f32 %v2370, 0.01
  %v2659 = vmul.f32 %v2371, 0.01
  %v2660 = vmul.f32 %v2372, 0.01
  %v2661 = vmul.f32 %v2373, 0.01
  %v2662 = vmul.f32 %v2374, 0.01
  %v2663 = vmul.f32 %v2375, 0.01
  %v2664 = vmul.f32 %v2376, 0.01
  %v2665 = vmul.f32 %v2377, 0.01
  %v2666 = vmul.f32 %v2378, 0.01
  %v2667 = vmul.f32 %v2379, 0.01
  %v2668 = vmul.f32 %v2380, 0.01
  %v2669 = vmul.f32 %v2381, 0.01
  %v2670 = vmul.f32 %v2382, 0.01
  %v2671 = vmul.f32 %v2383, 0.01
  %v2672 = vmul.f32 %v2384, 0.01
  %v2673 = vmul.f32 %v2385, 0.01
  %v2674 = vmul.f32 %v2386, 0.01
  %v2675 = vmul.f32 %v2387, 0.01
  %v2676 = vmul.f32 %v2388, 0.01
  %v2677 = vmul.f32 %v2389, 0.01
  %v2678 = vmul.f32 %v2390, 0.01
  %v2679 = vmul.f32 %v2391, 0.01
  %v2680 = vmul.f32 %v2392, 0.01
  %v2681 = vmul.f32 %v2393, 0.01
  %v2682 = vmul.f32 %v2394, 0.01
  %v2683 = vmul.f32 %v2395, 0.01
  %v2684 = vmul.f32 %v2396, 0.01
  %v2685 = vmul.f32 %v2397, 0.01
  %v2686 = vmul.f32 %v2398, 0.01
  %v2687 = vmul.f32 %v2399, 0.01
  %v2688 = vmul.f32 %v2400, 0.01
  %v2689 = vmul.f32 %v2401, 0.01
  %v2690 = vmul.f32 %v2402, 0.01
  %v2691 = vmul.f32 %v2403, 0.01
  %v2692 = vmul.f32 %v2404, 0.01
  %v2693 = vmul.f32 %v2405, 0.01
  %v2694 = vmul.f32 %v2406, 0.01
  %v2695 = vmul.f32 %v2407, 0.01
  %v2696 = vmul.f32 %v2408, 0.01
  %v2697 = vmul.f32 %v2409, 0.01
  %v2698 = vmul.f32 %v2410, 0.01
  %v2699 = vmul.f32 %v2411, 0.01
  %v2700 = vmul.f32 %v2412, 0.01
  %v2701 = vmul.f32 %v2413, 0.01
  %v2702 = vmul.f32 %v2414, 0.01
  %v2703 = vmul.f32 %v2415, 0.01
  %v2704 = vmul.f32 %v2416, 0.01
  %v2705 = vmul.f32 %v2417, 0.01
  %v2706 = vmul.f32 %v2418, 0.01
  %v2707 = vmul.f32 %v2419, 0.01
  %v2708 = vmul.f32 %v2420, 0.01
  %v2709 = vmul.f32 %v2421, 0.01
  %v2710 = vmul.f32 %v2422, 0.01
  %v2711 = vmul.f32 %v2423, 0.01
  %v2712 = vmul.f32 %v2424, 0.01
  %v2713 = vmul.f32 %v2425, 0.01
  %v2714 = vmul.f32 %v2426, 0.01
  %v2715 = vmul.f32 %v2427, 0.01
  %v2716 = vmul.f32 %v2428, 0.01
  %v2717 = vmul.f32 %v2429, 0.01
  %v2718 = vmul.f32 %v2430, 0.01
  %v2719 = vmul.f32 %v2431, 0.01
  %v2720 = vmul.f32 %v2432, 0.01
  %v2721 = vmul.f32 %v2433, 0.01
  %v2722 = vmul.f32 %v2434, 0.01
  %v2723 = vmul.f32 %v2435, 0.01
  %v2724 = vmul.f32 %v2436, 0.01
  %v2725 = vmul.f32 %v2437, 0.01
  %v2726 = vmul.f32 %v2438, 0.01
  %v2727 = vmul.f32 %v2439, 0.01
  %v2728 = vmul.f32 %v2440, 0.01
  %v2729 = vmul.f32 %v2441, 0.01
  %v2730 = vmul.f32 %v2442, 0.01
  %v2731 = vsel %vm2443, %v2299, %v2587
  %v2732 = vsel %vm2444, %v2300, %v2588
  %v2733 = vsel %vm2445, %v2301, %v2589
  %v2734 = vsel %vm2446, %v2302, %v2590
  %v2735 = vsel %vm2447, %v2303, %v2591
  %v2736 = vsel %vm2448, %v2304, %v2592
  %v2737 = vsel %vm2449, %v2305, %v2593
  %v2738 = vsel %vm2450, %v2306, %v2594
  %v2739 = vsel %vm2451, %v2307, %v2595
  %v2740 = vsel %vm2452, %v2308, %v2596
  %v2741 = vsel %vm2453, %v2309, %v2597
  %v2742 = vsel %vm2454, %v2310, %v2598
  %v2743 = vsel %vm2455, %v2311, %v2599
  %v2744 = vsel %vm2456, %v2312, %v2600
  %v2745 = vsel %vm2457, %v2313, %v2601
  %v2746 = vsel %vm2458, %v2314, %v2602
  %v2747 = vsel %vm2459, %v2315, %v2603
  %v2748 = vsel %vm2460, %v2316, %v2604
  %v2749 = vsel %vm2461, %v2317, %v2605
  %v2750 = vsel %vm2462, %v2318, %v2606
  %v2751 = vsel %vm2463, %v2319, %v2607
  %v2752 = vsel %vm2464, %v2320, %v2608
  %v2753 = vsel %vm2465, %v2321, %v2609
  %v2754 = vsel %vm2466, %v2322, %v2610
  %v2755 = vsel %vm2467, %v2323, %v2611
  %v2756 = vsel %vm2468, %v2324, %v2612
  %v2757 = vsel %vm2469, %v2325, %v2613
  %v2758 = vsel %vm2470, %v2326, %v2614
  %v2759 = vsel %vm2471, %v2327, %v2615
  %v2760 = vsel %vm2472, %v2328, %v2616
  %v2761 = vsel %vm2473, %v2329, %v2617
  %v2762 = vsel %vm2474, %v2330, %v2618
  %v2763 = vsel %vm2475, %v2331, %v2619
  %v2764 = vsel %vm2476, %v2332, %v2620
  %v2765 = vsel %vm2477, %v2333, %v2621
  %v2766 = vsel %vm2478, %v2334, %v2622
  %v2767 = vsel %vm2479, %v2335, %v2623
  %v2768 = vsel %vm2480, %v2336, %v2624
  %v2769 = vsel %vm2481, %v2337, %v2625
  %v2770 = vsel %vm2482, %v2338, %v2626
  %v2771 = vsel %vm2483, %v2339, %v2627
  %v2772 = vsel %vm2484, %v2340, %v2628
  %v2773 = vsel %vm2485, %v2341, %v2629
  %v2774 = vsel %vm2486, %v2342, %v2630
  %v2775 = vsel %vm2487, %v2343, %v2631
  %v2776 = vsel %vm2488, %v2344, %v2632
  %v2777 = vsel %vm2489, %v2345, %v2633
  %v2778 = vsel %vm2490, %v2346, %v2634
  %v2779 = vsel %vm2491, %v2347, %v2635
  %v2780 = vsel %vm2492, %v2348, %v2636
  %v2781 = vsel %vm2493, %v2349, %v2637
  %v2782 = vsel %vm2494, %v2350, %v2638
  %v2783 = vsel %vm2495, %v2351, %v2639
  %v2784 = vsel %vm2496, %v2352, %v2640
  %v2785 = vsel %vm2497, %v2353, %v2641
  %v2786 = vsel %vm2498, %v2354, %v2642
  %v2787 = vsel %vm2499, %v2355, %v2643
  %v2788 = vsel %vm2500, %v2356, %v2644
  %v2789 = vsel %vm2501, %v2357, %v2645
  %v2790 = vsel %vm2502, %v2358, %v2646
  %v2791 = vsel %vm2503, %v2359, %v2647
  %v2792 = vsel %vm2504, %v2360, %v2648
  %v2793 = vsel %vm2505, %v2361, %v2649
  %v2794 = vsel %vm2506, %v2362, %v2650
  %v2795 = vsel %vm2507, %v2363, %v2651
  %v2796 = vsel %vm2508, %v2364, %v2652
  %v2797 = vsel %vm2509, %v2365, %v2653
  %v2798 = vsel %vm2510, %v2366, %v2654
  %v2799 = vsel %vm2511, %v2367, %v2655
  %v2800 = vsel %vm2512, %v2368, %v2656
  %v2801 = vsel %vm2513, %v2369, %v2657
  %v2802 = vsel %vm2514, %v2370, %v2658
  %v2803 = vsel %vm2515, %v2371, %v2659
  %v2804 = vsel %vm2516, %v2372, %v2660
  %v2805 = vsel %vm2517, %v2373, %v2661
  %v2806 = vsel %vm2518, %v2374, %v2662
  %v2807 = vsel %vm2519, %v2375, %v2663
  %v2808 = vsel %vm2520, %v2376, %v2664
  %v2809 = vsel %vm2521, %v2377, %v2665
  %v2810 = vsel %vm2522, %v2378, %v2666
  %v2811 = vsel %vm2523, %v2379, %v2667
  %v2812 = vsel %vm2524, %v2380, %v2668
  %v2813 = vsel %vm2525, %v2381, %v2669
  %v2814 = vsel %vm2526, %v2382, %v2670
  %v2815 = vsel %vm2527, %v2383, %v2671
  %v2816 = vsel %vm2528, %v2384, %v2672
  %v2817 = vsel %vm2529, %v2385, %v2673
  %v2818 = vsel %vm2530, %v2386, %v2674
  %v2819 = vsel %vm2531, %v2387, %v2675
  %v2820 = vsel %vm2532, %v2388, %v2676
  %v2821 = vsel %vm2533, %v2389, %v2677
  %v2822 = vsel %vm2534, %v2390, %v2678
  %v2823 = vsel %vm2535, %v2391, %v2679
  %v2824 = vsel %vm2536, %v2392, %v2680
  %v2825 = vsel %vm2537, %v2393, %v2681
  %v2826 = vsel %vm2538, %v2394, %v2682
  %v2827 = vsel %vm2539, %v2395, %v2683
  %v2828 = vsel %vm2540, %v2396, %v2684
  %v2829 = vsel %vm2541, %v2397, %v2685
  %v2830 = vsel %vm2542, %v2398, %v2686
  %v2831 = vsel %vm2543, %v2399, %v2687
  %v2832 = vsel %vm2544, %v2400, %v2688
  %v2833 = vsel %vm2545, %v2401, %v2689
  %v2834 = vsel %vm2546, %v2402, %v2690
  %v2835 = vsel %vm2547, %v2403, %v2691
  %v2836 = vsel %vm2548, %v2404, %v2692
  %v2837 = vsel %vm2549, %v2405, %v2693
  %v2838 = vsel %vm2550, %v2406, %v2694
  %v2839 = vsel %vm2551, %v2407, %v2695
  %v2840 = vsel %vm2552, %v2408, %v2696
  %v2841 = vsel %vm2553, %v2409, %v2697
  %v2842 = vsel %vm2554, %v2410, %v2698
  %v2843 = vsel %vm2555, %v2411, %v2699
  %v2844 = vsel %vm2556, %v2412, %v2700
  %v2845 = vsel %vm2557, %v2413, %v2701
  %v2846 = vsel %vm2558, %v2414, %v2702
  %v2847 = vsel %vm2559, %v2415, %v2703
  %v2848 = vsel %vm2560, %v2416, %v2704
  %v2849 = vsel %vm2561, %v2417, %v2705
  %v2850 = vsel %vm2562, %v2418, %v2706
  %v2851 = vsel %vm2563, %v2419, %v2707
  %v2852 = vsel %vm2564, %v2420, %v2708
  %v2853 = vsel %vm2565, %v2421, %v2709
  %v2854 = vsel %vm2566, %v2422, %v2710
  %v2855 = vsel %vm2567, %v2423, %v2711
  %v2856 = vsel %vm2568, %v2424, %v2712
  %v2857 = vsel %vm2569, %v2425, %v2713
  %v2858 = vsel %vm2570, %v2426, %v2714
  %v2859 = vsel %vm2571, %v2427, %v2715
  %v2860 = vsel %vm2572, %v2428, %v2716
  %v2861 = vsel %vm2573, %v2429, %v2717
  %v2862 = vsel %vm2574, %v2430, %v2718
  %v2863 = vsel %vm2575, %v2431, %v2719
  %v2864 = vsel %vm2576, %v2432, %v2720
  %v2865 = vsel %vm2577, %v2433, %v2721
  %v2866 = vsel %vm2578, %v2434, %v2722
  %v2867 = vsel %vm2579, %v2435, %v2723
  %v2868 = vsel %vm2580, %v2436, %v2724
  %v2869 = vsel %vm2581, %v2437, %v2725
  %v2870 = vsel %vm2582, %v2438, %v2726
  %v2871 = vsel %vm2583, %v2439, %v2727
  %v2872 = vsel %vm2584, %v2440, %v2728
  %v2873 = vsel %vm2585, %v2441, %v2729
  %v2874 = vsel %vm2586, %v2442, %v2730
  %v2875 = vmax.f32 %v2731, %v2767
  %v2876 = vmax.f32 %v2732, %v2768
  %v2877 = vmax.f32 %v2733, %v2769
  %v2878 = vmax.f32 %v2734, %v2770
  %v2879 = vmax.f32 %v2735, %v2771
  %v2880 = vmax.f32 %v2736, %v2772
  %v2881 = vmax.f32 %v2737, %v2773
  %v2882 = vmax.f32 %v2738, %v2774
  %v2883 = vmax.f32 %v2739, %v2775
  %v2884 = vmax.f32 %v2740, %v2776
  %v2885 = vmax.f32 %v2741, %v2777
  %v2886 = vmax.f32 %v2742, %v2778
  %v2887 = vmax.f32 %v2743, %v2779
  %v2888 = vmax.f32 %v2744, %v2780
  %v2889 = vmax.f32 %v2745, %v2781
  %v2890 = vmax.f32 %v2746, %v2782
  %v2891 = vmax.f32 %v2747, %v2783
  %v2892 = vmax.f32 %v2748, %v2784
  %v2893 = vmax.f32 %v2749, %v2785
  %v2894 = vmax.f32 %v2750, %v2786
  %v2895 = vmax.f32 %v2751, %v2787
  %v2896 = vmax.f32 %v2752, %v2788
  %v2897 = vmax.f32 %v2753, %v2789
  %v2898 = vmax.f32 %v2754, %v2790
  %v2899 = vmax.f32 %v2755, %v2791
  %v2900 = vmax.f32 %v2756, %v2792
  %v2901 = vmax.f32 %v2757, %v2793
  %v2902 = vmax.f32 %v2758, %v2794
  %v2903 = vmax.f32 %v2759, %v2795
  %v2904 = vmax.f32 %v2760, %v2796
  %v2905 = vmax.f32 %v2761, %v2797
  %v2906 = vmax.f32 %v2762, %v2798
  %v2907 = vmax.f32 %v2763, %v2799
  %v2908 = vmax.f32 %v2764, %v2800
  %v2909 = vmax.f32 %v2765, %v2801
  %v2910 = vmax.f32 %v2766, %v2802
  %v2911 = vmax.f32 %v2803, %v2839
  %v2912 = vmax.f32 %v2804, %v2840
  %v2913 = vmax.f32 %v2805, %v2841
  %v2914 = vmax.f32 %v2806, %v2842
  %v2915 = vmax.f32 %v2807, %v2843
  %v2916 = vmax.f32 %v2808, %v2844
  %v2917 = vmax.f32 %v2809, %v2845
  %v2918 = vmax.f32 %v2810, %v2846
  %v2919 = vmax.f32 %v2811, %v2847
  %v2920 = vmax.f32 %v2812, %v2848
  %v2921 = vmax.f32 %v2813, %v2849
  %v2922 = vmax.f32 %v2814, %v2850
  %v2923 = vmax.f32 %v2815, %v2851
  %v2924 = vmax.f32 %v2816, %v2852
  %v2925 = vmax.f32 %v2817, %v2853
  %v2926 = vmax.f32 %v2818, %v2854
  %v2927 = vmax.f32 %v2819, %v2855
  %v2928 = vmax.f32 %v2820, %v2856
  %v2929 = vmax.f32 %v2821, %v2857
  %v2930 = vmax.f32 %v2822, %v2858
  %v2931 = vmax.f32 %v2823, %v2859
  %v2932 = vmax.f32 %v2824, %v2860
  %v2933 = vmax.f32 %v2825, %v2861
  %v2934 = vmax.f32 %v2826, %v2862
  %v2935 = vmax.f32 %v2827, %v2863
  %v2936 = vmax.f32 %v2828, %v2864
  %v2937 = vmax.f32 %v2829, %v2865
  %v2938 = vmax.f32 %v2830, %v2866
  %v2939 = vmax.f32 %v2831, %v2867
  %v2940 = vmax.f32 %v2832, %v2868
  %v2941 = vmax.f32 %v2833, %v2869
  %v2942 = vmax.f32 %v2834, %v2870
  %v2943 = vmax.f32 %v2835, %v2871
  %v2944 = vmax.f32 %v2836, %v2872
  %v2945 = vmax.f32 %v2837, %v2873
  %v2946 = vmax.f32 %v2838, %v2874
  %v2947 = vmax.f32 %v2875, %v2911
  %v2948 = vmax.f32 %v2876, %v2912
  %v2949 = vmax.f32 %v2877, %v2913
  %v2950 = vmax.f32 %v2878, %v2914
  %v2951 = vmax.f32 %v2879, %v2915
  %v2952 = vmax.f32 %v2880, %v2916
  %v2953 = vmax.f32 %v2881, %v2917
  %v2954 = vmax.f32 %v2882, %v2918
  %v2955 = vmax.f32 %v2883, %v2919
  %v2956 = vmax.f32 %v2884, %v2920
  %v2957 = vmax.f32 %v2885, %v2921
  %v2958 = vmax.f32 %v2886, %v2922
  %v2959 = vmax.f32 %v2887, %v2923
  %v2960 = vmax.f32 %v2888, %v2924
  %v2961 = vmax.f32 %v2889, %v2925
  %v2962 = vmax.f32 %v2890, %v2926
  %v2963 = vmax.f32 %v2891, %v2927
  %v2964 = vmax.f32 %v2892, %v2928
  %v2965 = vmax.f32 %v2893, %v2929
  %v2966 = vmax.f32 %v2894, %v2930
  %v2967 = vmax.f32 %v2895, %v2931
  %v2968 = vmax.f32 %v2896, %v2932
  %v2969 = vmax.f32 %v2897, %v2933
  %v2970 = vmax.f32 %v2898, %v2934
  %v2971 = vmax.f32 %v2899, %v2935
  %v2972 = vmax.f32 %v2900, %v2936
  %v2973 = vmax.f32 %v2901, %v2937
  %v2974 = vmax.f32 %v2902, %v2938
  %v2975 = vmax.f32 %v2903, %v2939
  %v2976 = vmax.f32 %v2904, %v2940
  %v2977 = vmax.f32 %v2905, %v2941
  %v2978 = vmax.f32 %v2906, %v2942
  %v2979 = vmax.f32 %v2907, %v2943
  %v2980 = vmax.f32 %v2908, %v2944
  %v2981 = vmax.f32 %v2909, %v2945
  %v2982 = vmax.f32 %v2910, %v2946
  %v2983 = vpack.c.bf16 %v2948, %v2947
  %v2984 = vpack.c.bf16 %v2950, %v2949
  %v2985 = vpack.c.bf16 %v2952, %v2951
  %v2986 = vpack.c.bf16 %v2954, %v2953
  %v2987 = vpack.c.bf16 %v2956, %v2955
  %v2988 = vpack.c.bf16 %v2958, %v2957
  %v2989 = vpack.c.bf16 %v2960, %v2959
  %v2990 = vpack.c.bf16 %v2962, %v2961
  %v2991 = vpack.c.bf16 %v2964, %v2963
  %v2992 = vpack.c.bf16 %v2966, %v2965
  %v2993 = vpack.c.bf16 %v2968, %v2967
  %v2994 = vpack.c.bf16 %v2970, %v2969
  %v2995 = vpack.c.bf16 %v2972, %v2971
  %v2996 = vpack.c.bf16 %v2974, %v2973
  %v2997 = vpack.c.bf16 %v2976, %v2975
  %v2998 = vpack.c.bf16 %v2978, %v2977
  %v2999 = vpack.c.bf16 %v2980, %v2979
  %v3000 = vpack.c.bf16 %v2982, %v2981
  %v3019 = vunpack.c.l.b16 %v2983
  %v3020 = vunpack.c.h.b16 %v2983
  %v3021 = vunpack.c.l.b16 %v2984
  %v3022 = vunpack.c.h.b16 %v2984
  %v3023 = vunpack.c.l.b16 %v2985
  %v3024 = vunpack.c.h.b16 %v2985
  %v3025 = vunpack.c.l.b16 %v2986
  %v3026 = vunpack.c.h.b16 %v2986
  %v3027 = vunpack.c.l.b16 %v2987
  %v3028 = vunpack.c.h.b16 %v2987
  %v3029 = vunpack.c.l.b16 %v2988
  %v3030 = vunpack.c.h.b16 %v2988
  %v3031 = vunpack.c.l.b16 %v2989
  %v3032 = vunpack.c.h.b16 %v2989
  %v3033 = vunpack.c.l.b16 %v2990
  %v3034 = vunpack.c.h.b16 %v2990
  %v3035 = vunpack.c.l.b16 %v2991
  %v3036 = vunpack.c.h.b16 %v2991
  %v3037 = vunpack.c.l.b16 %v2992
  %v3038 = vunpack.c.h.b16 %v2992
  %v3039 = vunpack.c.l.b16 %v2993
  %v3040 = vunpack.c.h.b16 %v2993
  %v3041 = vunpack.c.l.b16 %v2994
  %v3042 = vunpack.c.h.b16 %v2994
  %v3043 = vunpack.c.l.b16 %v2995
  %v3044 = vunpack.c.h.b16 %v2995
  %v3045 = vunpack.c.l.b16 %v2996
  %v3046 = vunpack.c.h.b16 %v2996
  %v3047 = vunpack.c.l.b16 %v2997
  %v3048 = vunpack.c.h.b16 %v2997
  %v3049 = vunpack.c.l.b16 %v2998
  %v3050 = vunpack.c.h.b16 %v2998
  %v3051 = vunpack.c.l.b16 %v2999
  %v3052 = vunpack.c.h.b16 %v2999
  %v3053 = vunpack.c.l.b16 %v3000
  %v3054 = vunpack.c.h.b16 %v3000
  %v3055 = vpack.c.b16 %v3019, %v3019
  %v3056 = vpack.c.b16 %v3020, %v3020
  %v3057 = vpack.c.b16 %v3021, %v3021
  %v3058 = vpack.c.b16 %v3022, %v3022
  %v3059 = vpack.c.b16 %v3023, %v3023
  %v3060 = vpack.c.b16 %v3024, %v3024
  %v3061 = vpack.c.b16 %v3025, %v3025
  %v3062 = vpack.c.b16 %v3026, %v3026
  %v3063 = vpack.c.b16 %v3027, %v3027
  %v3064 = vpack.c.b16 %v3028, %v3028
  %v3065 = vpack.c.b16 %v3029, %v3029
  %v3066 = vpack.c.b16 %v3030, %v3030
  %v3067 = vpack.c.b16 %v3031, %v3031
  %v3068 = vpack.c.b16 %v3032, %v3032
  %v3069 = vpack.c.b16 %v3033, %v3033
  %v3070 = vpack.c.b16 %v3034, %v3034
  %v3071 = vpack.c.b16 %v3035, %v3035
  %v3072 = vpack.c.b16 %v3036, %v3036
  %v3073 = vpack.c.b16 %v3037, %v3037
  %v3074 = vpack.c.b16 %v3038, %v3038
  %v3075 = vpack.c.b16 %v3039, %v3039
  %v3076 = vpack.c.b16 %v3040, %v3040
  %v3077 = vpack.c.b16 %v3041, %v3041
  %v3078 = vpack.c.b16 %v3042, %v3042
  %v3079 = vpack.c.b16 %v3043, %v3043
  %v3080 = vpack.c.b16 %v3044, %v3044
  %v3081 = vpack.c.b16 %v3045, %v3045
  %v3082 = vpack.c.b16 %v3046, %v3046
  %v3083 = vpack.c.b16 %v3047, %v3047
  %v3084 = vpack.c.b16 %v3048, %v3048
  %v3085 = vpack.c.b16 %v3049, %v3049
  %v3086 = vpack.c.b16 %v3050, %v3050
  %v3087 = vpack.c.b16 %v3051, %v3051
  %v3088 = vpack.c.b16 %v3052, %v3052
  %v3089 = vpack.c.b16 %v3053, %v3053
  %v3090 = vpack.c.b16 %v3054, %v3054
  %vm3127 = vcmask 257024
  %3128 = vst.msk [vmem:[%s3] sm:$0xf] %vm3127, %v3055
  %3129 = vst.msk [vmem:[%s3 + $0x4] sm:$0xf] %vm3127, %v3056
  %3130 = vst.msk [vmem:[%s3 + $0x8] sm:$0xf] %vm3127, %v3057
  %3131 = vst.msk [vmem:[%s3 + $0xc] sm:$0xf] %vm3127, %v3058
  %3132 = vst.msk [vmem:[%s3 + $0x10] sm:$0xf] %vm3127, %v3059
  %3133 = vst.msk [vmem:[%s3 + $0x14] sm:$0xf] %vm3127, %v3060
  %3134 = vst.msk [vmem:[%s3 + $0x18] sm:$0xf] %vm3127, %v3061
  %3135 = vst.msk [vmem:[%s3 + $0x1c] sm:$0xf] %vm3127, %v3062
  %3136 = vst.msk [vmem:[%s3 + $0x20] sm:$0xf] %vm3127, %v3063
  %3137 = vst.msk [vmem:[%s3 + $0x24] sm:$0xf] %vm3127, %v3064
  %3138 = vst.msk [vmem:[%s3 + $0x28] sm:$0xf] %vm3127, %v3065
  %3139 = vst.msk [vmem:[%s3 + $0x2c] sm:$0xf] %vm3127, %v3066
  %3140 = vst.msk [vmem:[%s3 + $0x30] sm:$0xf] %vm3127, %v3067
  %3141 = vst.msk [vmem:[%s3 + $0x34] sm:$0xf] %vm3127, %v3068
  %3142 = vst.msk [vmem:[%s3 + $0x38] sm:$0xf] %vm3127, %v3069
  %3143 = vst.msk [vmem:[%s3 + $0x3c] sm:$0xf] %vm3127, %v3070
  %3144 = vst.msk [vmem:[%s3 + $0x40] sm:$0xf] %vm3127, %v3071
  %3145 = vst.msk [vmem:[%s3 + $0x44] sm:$0xf] %vm3127, %v3072
  %3146 = vst.msk [vmem:[%s3 + $0x48] sm:$0xf] %vm3127, %v3073
  %3147 = vst.msk [vmem:[%s3 + $0x4c] sm:$0xf] %vm3127, %v3074
  %3148 = vst.msk [vmem:[%s3 + $0x50] sm:$0xf] %vm3127, %v3075
  %3149 = vst.msk [vmem:[%s3 + $0x54] sm:$0xf] %vm3127, %v3076
  %3150 = vst.msk [vmem:[%s3 + $0x58] sm:$0xf] %vm3127, %v3077
  %3151 = vst.msk [vmem:[%s3 + $0x5c] sm:$0xf] %vm3127, %v3078
  %3152 = vst.msk [vmem:[%s3 + $0x60] sm:$0xf] %vm3127, %v3079
  %3153 = vst.msk [vmem:[%s3 + $0x64] sm:$0xf] %vm3127, %v3080
  %3154 = vst.msk [vmem:[%s3 + $0x68] sm:$0xf] %vm3127, %v3081
  %3155 = vst.msk [vmem:[%s3 + $0x6c] sm:$0xf] %vm3127, %v3082
  %3156 = vst.msk [vmem:[%s3 + $0x70] sm:$0xf] %vm3127, %v3083
  %3157 = vst.msk [vmem:[%s3 + $0x74] sm:$0xf] %vm3127, %v3084
  %3158 = vst.msk [vmem:[%s3 + $0x78] sm:$0xf] %vm3127, %v3085
  %3159 = vst.msk [vmem:[%s3 + $0x7c] sm:$0xf] %vm3127, %v3086
  %3160 = vst.msk [vmem:[%s3 + $0x80] sm:$0xf] %vm3127, %v3087
  %3161 = vst.msk [vmem:[%s3 + $0x84] sm:$0xf] %vm3127, %v3088
  %3162 = vst.msk [vmem:[%s3 + $0x88] sm:$0xf] %vm3127, %v3089
  %3163 = vst.msk [vmem:[%s3 + $0x8c] sm:$0xf] %vm3127, %v3090
  // Predicated region
  $region14: #{dann_forward.3} parent=0 // pred_check
    _
  $region15: #{dann_forward.3} parent=0 // pred_check_branch
    %3165 = sbr.rel (0) target = $region17
  $region16: #{dann_forward.3} parent=0 // pred_region
    _
  $region17: #{dann_forward.3} parent=0 // pred_fallthru
    _
  // Predicated region
  $region18: #{dann_forward.3} parent=0 // pred_check
    _
  $region19: #{dann_forward.3} parent=0 // pred_check_branch
    %3167 = sbr.rel (0) target = $region21
  $region20: #{dann_forward.3} parent=0 // pred_region
    _
  $region21: #{dann_forward.3} parent=0 // pred_fallthru
    _

// kernel: dann_forward.4
$region0: #{dann_forward.4}
  #allocation0 [shape = 'u32[]', space=smem, size = 0x4, offset = 0x4, fixed_abs, tag = 'smem constant byte address 0x4 - core index']
  #allocation1 [shape = 'u32[144,128]{1,0:T(1,128)}', space=vmem, size = 0x12000, scoped, tag = 'internal scratch']
  %s0 = inlined_call_operand.vmem [shape: bf16[128,896], index: 0, kind: input, shape index: {}]
  %s1 = inlined_call_operand.vmem [shape: bf16[896,64], index: 1, kind: input, shape index: {}]
  %s2 = inlined_call_operand.vmem [shape: f32[2,64], index: 2, kind: input, shape index: {}]
  %s3 = inlined_call_operand.vmem [shape: bf16[32,64], index: 3, kind: output, shape index: {}]
  %s4 = sld [smem:[#allocation0]]
  $region22: #{dann_forward.4} parent=0
    _
  %s6 = ssub.s32 1, %s4
  %s7 = scalar_select 0, %s6, %s4
  // Predicated region
  $region2: #{dann_forward.4} parent=0 // pred_check
    _
  $region3: #{dann_forward.4} parent=0 // pred_check_branch
    %9 = sbr.rel (0) target = $region5
  $region4: #{dann_forward.4} parent=0 // pred_region
    _
  $region5: #{dann_forward.4} parent=0 // pred_fallthru
    _
  // Predicated region
  $region6: #{dann_forward.4} parent=0 // pred_check
    _
  $region7: #{dann_forward.4} parent=0 // pred_check_branch
    %11 = sbr.rel (0) target = $region9
  $region8: #{dann_forward.4} parent=0 // pred_region
    _
  $region9: #{dann_forward.4} parent=0 // pred_fallthru
    _
  // Predicated region
  $region10: #{dann_forward.4} parent=0 // pred_check
    _
  $region11: #{dann_forward.4} parent=0 // pred_check_branch
    %13 = sbr.rel (0) target = $region13
  $region12: #{dann_forward.4} parent=0 // pred_region
    _
  $region13: #{dann_forward.4} parent=0 // pred_fallthru
    _
  %v15 = vld [vmem:[%s0] sm:$0xff]
  %v16 = vld [vmem:[%s0 + $0x8] sm:$0xff]
  %v17 = vld [vmem:[%s0 + $0x10] sm:$0xff]
  %v18 = vld [vmem:[%s0 + $0x18] sm:$0xf]
  %v19 = vld [vmem:[%s0 + $0x1c] sm:$0xff]
  %v20 = vld [vmem:[%s0 + $0x24] sm:$0xff]
  %v21 = vld [vmem:[%s0 + $0x2c] sm:$0xff]
  %v22 = vld [vmem:[%s0 + $0x34] sm:$0xf]
  %v23 = vld [vmem:[%s0 + $0x38] sm:$0xff]
  %v24 = vld [vmem:[%s0 + $0x40] sm:$0xff]
  %v25 = vld [vmem:[%s0 + $0x48] sm:$0xff]
  %v26 = vld [vmem:[%s0 + $0x50] sm:$0xf]
  %v27 = vld [vmem:[%s0 + $0x54] sm:$0xff]
  %v28 = vld [vmem:[%s0 + $0x5c] sm:$0xff]
  %v29 = vld [vmem:[%s0 + $0x64] sm:$0xff]
  %v30 = vld [vmem:[%s0 + $0x6c] sm:$0xf]
  %v31 = vld [vmem:[%s0 + $0x70] sm:$0xff]
  %v32 = vld [vmem:[%s0 + $0x78] sm:$0xff]
  %v33 = vld [vmem:[%s0 + $0x80] sm:$0xff]
  %v34 = vld [vmem:[%s0 + $0x88] sm:$0xf]
  %v35 = vld [vmem:[%s0 + $0x8c] sm:$0xff]
  %v36 = vld [vmem:[%s0 + $0x94] sm:$0xff]
  %v37 = vld [vmem:[%s0 + $0x9c] sm:$0xff]
  %v38 = vld [vmem:[%s0 + $0xa4] sm:$0xf]
  %v39 = vld [vmem:[%s0 + $0xa8] sm:$0xff]
  %v40 = vld [vmem:[%s0 + $0xb0] sm:$0xff]
  %v41 = vld [vmem:[%s0 + $0xb8] sm:$0xff]
  %v42 = vld [vmem:[%s0 + $0xc0] sm:$0xf]
  %v43 = vld [vmem:[%s0 + $0xc4] sm:$0xff]
  %v44 = vld [vmem:[%s0 + $0xcc] sm:$0xff]
  %v45 = vld [vmem:[%s0 + $0xd4] sm:$0xff]
  %v46 = vld [vmem:[%s0 + $0xdc] sm:$0xf]
  %v47 = vld [vmem:[%s0 + $0xe0] sm:$0xff]
  %v48 = vld [vmem:[%s0 + $0xe8] sm:$0xff]
  %v49 = vld [vmem:[%s0 + $0xf0] sm:$0xff]
  %v50 = vld [vmem:[%s0 + $0xf8] sm:$0xf]
  %v51 = vld [vmem:[%s0 + $0xfc] sm:$0xff]
  %v52 = vld [vmem:[%s0 + $0x104] sm:$0xff]
  %v53 = vld [vmem:[%s0 + $0x10c] sm:$0xff]
  %v54 = vld [vmem:[%s0 + $0x114] sm:$0xf]
  %v55 = vld [vmem:[%s0 + $0x118] sm:$0xff]
  %v56 = vld [vmem:[%s0 + $0x120] sm:$0xff]
  %v57 = vld [vmem:[%s0 + $0x128] sm:$0xff]
  %v58 = vld [vmem:[%s0 + $0x130] sm:$0xf]
  %v59 = vld [vmem:[%s0 + $0x134] sm:$0xff]
  %v60 = vld [vmem:[%s0 + $0x13c] sm:$0xff]
  %v61 = vld [vmem:[%s0 + $0x144] sm:$0xff]
  %v62 = vld [vmem:[%s0 + $0x14c] sm:$0xf]
  %v63 = vld [vmem:[%s0 + $0x150] sm:$0xff]
  %v64 = vld [vmem:[%s0 + $0x158] sm:$0xff]
  %v65 = vld [vmem:[%s0 + $0x160] sm:$0xff]
  %v66 = vld [vmem:[%s0 + $0x168] sm:$0xf]
  %v67 = vld [vmem:[%s0 + $0x16c] sm:$0xff]
  %v68 = vld [vmem:[%s0 + $0x174] sm:$0xff]
  %v69 = vld [vmem:[%s0 + $0x17c] sm:$0xff]
  %v70 = vld [vmem:[%s0 + $0x184] sm:$0xf]
  %v71 = vld [vmem:[%s0 + $0x188] sm:$0xff]
  %v72 = vld [vmem:[%s0 + $0x190] sm:$0xff]
  %v73 = vld [vmem:[%s0 + $0x198] sm:$0xff]
  %v74 = vld [vmem:[%s0 + $0x1a0] sm:$0xf]
  %v75 = vld [vmem:[%s0 + $0x1a4] sm:$0xff]
  %v76 = vld [vmem:[%s0 + $0x1ac] sm:$0xff]
  %v77 = vld [vmem:[%s0 + $0x1b4] sm:$0xff]
  %v78 = vld [vmem:[%s0 + $0x1bc] sm:$0xf]
  %v79 = vld [vmem:[%s1] sm:$0xf]
  %v80 = vld [vmem:[%s1 + $0x4] sm:$0xf]
  %v81 = vld [vmem:[%s1 + $0x8] sm:$0xf]
  %v82 = vld [vmem:[%s1 + $0xc] sm:$0xf]
  %v83 = vld [vmem:[%s1 + $0x10] sm:$0xf]
  %v84 = vld [vmem:[%s1 + $0x14] sm:$0xf]
  %v85 = vld [vmem:[%s1 + $0x18] sm:$0xf]
  %v86 = vld [vmem:[%s1 + $0x1c] sm:$0xf]
  %v87 = vld [vmem:[%s1 + $0x20] sm:$0xf]
  %v88 = vld [vmem:[%s1 + $0x24] sm:$0xf]
  %v89 = vld [vmem:[%s1 + $0x28] sm:$0xf]
  %v90 = vld [vmem:[%s1 + $0x2c] sm:$0xf]
  %v91 = vld [vmem:[%s1 + $0x30] sm:$0xf]
  %v92 = vld [vmem:[%s1 + $0x34] sm:$0xf]
  %v93 = vld [vmem:[%s1 + $0x38] sm:$0xf]
  %v94 = vld [vmem:[%s1 + $0x3c] sm:$0xf]
  %v95 = vld [vmem:[%s1 + $0x40] sm:$0xf]
  %v96 = vld [vmem:[%s1 + $0x44] sm:$0xf]
  %v97 = vld [vmem:[%s1 + $0x48] sm:$0xf]
  %v98 = vld [vmem:[%s1 + $0x4c] sm:$0xf]
  %v99 = vld [vmem:[%s1 + $0x50] sm:$0xf]
  %v100 = vld [vmem:[%s1 + $0x54] sm:$0xf]
  %v101 = vld [vmem:[%s1 + $0x58] sm:$0xf]
  %v102 = vld [vmem:[%s1 + $0x5c] sm:$0xf]
  %v103 = vld [vmem:[%s1 + $0x60] sm:$0xf]
  %v104 = vld [vmem:[%s1 + $0x64] sm:$0xf]
  %v105 = vld [vmem:[%s1 + $0x68] sm:$0xf]
  %v106 = vld [vmem:[%s1 + $0x6c] sm:$0xf]
  %v107 = vld [vmem:[%s1 + $0x70] sm:$0xf]
  %v108 = vld [vmem:[%s1 + $0x74] sm:$0xf]
  %v109 = vld [vmem:[%s1 + $0x78] sm:$0xf]
  %v110 = vld [vmem:[%s1 + $0x7c] sm:$0xf]
  %v111 = vld [vmem:[%s1 + $0x80] sm:$0xf]
  %v112 = vld [vmem:[%s1 + $0x84] sm:$0xf]
  %v113 = vld [vmem:[%s1 + $0x88] sm:$0xf]
  %v114 = vld [vmem:[%s1 + $0x8c] sm:$0xf]
  %v115 = vld [vmem:[%s1 + $0x90] sm:$0xf]
  %v116 = vld [vmem:[%s1 + $0x94] sm:$0xf]
  %v117 = vld [vmem:[%s1 + $0x98] sm:$0xf]
  %v118 = vld [vmem:[%s1 + $0x9c] sm:$0xf]
  %v119 = vld [vmem:[%s1 + $0xa0] sm:$0xf]
  %v120 = vld [vmem:[%s1 + $0xa4] sm:$0xf]
  %v121 = vld [vmem:[%s1 + $0xa8] sm:$0xf]
  %v122 = vld [vmem:[%s1 + $0xac] sm:$0xf]
  %v123 = vld [vmem:[%s1 + $0xb0] sm:$0xf]
  %v124 = vld [vmem:[%s1 + $0xb4] sm:$0xf]
  %v125 = vld [vmem:[%s1 + $0xb8] sm:$0xf]
  %v126 = vld [vmem:[%s1 + $0xbc] sm:$0xf]
  %v127 = vld [vmem:[%s1 + $0xc0] sm:$0xf]
  %v128 = vld [vmem:[%s1 + $0xc4] sm:$0xf]
  %v129 = vld [vmem:[%s1 + $0xc8] sm:$0xf]
  %v130 = vld [vmem:[%s1 + $0xcc] sm:$0xf]
  %v131 = vld [vmem:[%s1 + $0xd0] sm:$0xf]
  %v132 = vld [vmem:[%s1 + $0xd4] sm:$0xf]
  %v133 = vld [vmem:[%s1 + $0xd8] sm:$0xf]
  %v134 = vld [vmem:[%s1 + $0xdc] sm:$0xf]
  %v135 = vld [vmem:[%s1 + $0xe0] sm:$0xf]
  %v136 = vld [vmem:[%s1 + $0xe4] sm:$0xf]
  %v137 = vld [vmem:[%s1 + $0xe8] sm:$0xf]
  %v138 = vld [vmem:[%s1 + $0xec] sm:$0xf]
  %v139 = vld [vmem:[%s1 + $0xf0] sm:$0xf]
  %v140 = vld [vmem:[%s1 + $0xf4] sm:$0xf]
  %v141 = vld [vmem:[%s1 + $0xf8] sm:$0xf]
  %v142 = vld [vmem:[%s1 + $0xfc] sm:$0xf]
  %v143 = vld [vmem:[%s1 + $0x100] sm:$0xf]
  %v144 = vld [vmem:[%s1 + $0x104] sm:$0xf]
  %v145 = vld [vmem:[%s1 + $0x108] sm:$0xf]
  %v146 = vld [vmem:[%s1 + $0x10c] sm:$0xf]
  %v147 = vld [vmem:[%s1 + $0x110] sm:$0xf]
  %v148 = vld [vmem:[%s1 + $0x114] sm:$0xf]
  %v149 = vld [vmem:[%s1 + $0x118] sm:$0xf]
  %v150 = vld [vmem:[%s1 + $0x11c] sm:$0xf]
  %v151 = vld [vmem:[%s1 + $0x120] sm:$0xf]
  %v152 = vld [vmem:[%s1 + $0x124] sm:$0xf]
  %v153 = vld [vmem:[%s1 + $0x128] sm:$0xf]
  %v154 = vld [vmem:[%s1 + $0x12c] sm:$0xf]
  %v155 = vld [vmem:[%s1 + $0x130] sm:$0xf]
  %v156 = vld [vmem:[%s1 + $0x134] sm:$0xf]
  %v157 = vld [vmem:[%s1 + $0x138] sm:$0xf]
  %v158 = vld [vmem:[%s1 + $0x13c] sm:$0xf]
  %v159 = vld [vmem:[%s1 + $0x140] sm:$0xf]
  %v160 = vld [vmem:[%s1 + $0x144] sm:$0xf]
  %v161 = vld [vmem:[%s1 + $0x148] sm:$0xf]
  %v162 = vld [vmem:[%s1 + $0x14c] sm:$0xf]
  %v163 = vld [vmem:[%s1 + $0x150] sm:$0xf]
  %v164 = vld [vmem:[%s1 + $0x154] sm:$0xf]
  %v165 = vld [vmem:[%s1 + $0x158] sm:$0xf]
  %v166 = vld [vmem:[%s1 + $0x15c] sm:$0xf]
  %v167 = vld [vmem:[%s1 + $0x160] sm:$0xf]
  %v168 = vld [vmem:[%s1 + $0x164] sm:$0xf]
  %v169 = vld [vmem:[%s1 + $0x168] sm:$0xf]
  %v170 = vld [vmem:[%s1 + $0x16c] sm:$0xf]
  %v171 = vld [vmem:[%s1 + $0x170] sm:$0xf]
  %v172 = vld [vmem:[%s1 + $0x174] sm:$0xf]
  %v173 = vld [vmem:[%s1 + $0x178] sm:$0xf]
  %v174 = vld [vmem:[%s1 + $0x17c] sm:$0xf]
  %v175 = vld [vmem:[%s1 + $0x180] sm:$0xf]
  %v176 = vld [vmem:[%s1 + $0x184] sm:$0xf]
  %v177 = vld [vmem:[%s1 + $0x188] sm:$0xf]
  %v178 = vld [vmem:[%s1 + $0x18c] sm:$0xf]
  %v179 = vld [vmem:[%s1 + $0x190] sm:$0xf]
  %v180 = vld [vmem:[%s1 + $0x194] sm:$0xf]
  %v181 = vld [vmem:[%s1 + $0x198] sm:$0xf]
  %v182 = vld [vmem:[%s1 + $0x19c] sm:$0xf]
  %v183 = vld [vmem:[%s1 + $0x1a0] sm:$0xf]
  %v184 = vld [vmem:[%s1 + $0x1a4] sm:$0xf]
  %v185 = vld [vmem:[%s1 + $0x1a8] sm:$0xf]
  %v186 = vld [vmem:[%s1 + $0x1ac] sm:$0xf]
  %v187 = vld [vmem:[%s1 + $0x1b0] sm:$0xf]
  %v188 = vld [vmem:[%s1 + $0x1b4] sm:$0xf]
  %v189 = vld [vmem:[%s1 + $0x1b8] sm:$0xf]
  %v190 = vld [vmem:[%s1 + $0x1bc] sm:$0xf]
  %v255 = vunpack.c.l.b16 %v15
  %v256 = vunpack.c.h.b16 %v15
  %v257 = vunpack.c.l.b16 %v16
  %v258 = vunpack.c.h.b16 %v16
  %v259 = vunpack.c.l.b16 %v17
  %v260 = vunpack.c.h.b16 %v17
  %v261 = vunpack.c.l.b16 %v18
  %v262 = vunpack.c.l.b16 %v19
  %v263 = vunpack.c.h.b16 %v19
  %v264 = vunpack.c.l.b16 %v20
  %v265 = vunpack.c.h.b16 %v20
  %v266 = vunpack.c.l.b16 %v21
  %v267 = vunpack.c.h.b16 %v21
  %v268 = vunpack.c.l.b16 %v22
  %v269 = vunpack.c.l.b16 %v23
  %v270 = vunpack.c.h.b16 %v23
  %v271 = vunpack.c.l.b16 %v24
  %v272 = vunpack.c.h.b16 %v24
  %v273 = vunpack.c.l.b16 %v25
  %v274 = vunpack.c.h.b16 %v25
  %v275 = vunpack.c.l.b16 %v26
  %v276 = vunpack.c.l.b16 %v27
  %v277 = vunpack.c.h.b16 %v27
  %v278 = vunpack.c.l.b16 %v28
  %v279 = vunpack.c.h.b16 %v28
  %v280 = vunpack.c.l.b16 %v29
  %v281 = vunpack.c.h.b16 %v29
  %v282 = vunpack.c.l.b16 %v30
  %v283 = vunpack.c.l.b16 %v31
  %v284 = vunpack.c.h.b16 %v31
  %v285 = vunpack.c.l.b16 %v32
  %v286 = vunpack.c.h.b16 %v32
  %v287 = vunpack.c.l.b16 %v33
  %v288 = vunpack.c.h.b16 %v33
  %v289 = vunpack.c.l.b16 %v34
  %v290 = vunpack.c.l.b16 %v35
  %v291 = vunpack.c.h.b16 %v35
  %v292 = vunpack.c.l.b16 %v36
  %v293 = vunpack.c.h.b16 %v36
  %v294 = vunpack.c.l.b16 %v37
  %v295 = vunpack.c.h.b16 %v37
  %v296 = vunpack.c.l.b16 %v38
  %v297 = vunpack.c.l.b16 %v39
  %v298 = vunpack.c.h.b16 %v39
  %v299 = vunpack.c.l.b16 %v40
  %v300 = vunpack.c.h.b16 %v40
  %v301 = vunpack.c.l.b16 %v41
  %v302 = vunpack.c.h.b16 %v41
  %v303 = vunpack.c.l.b16 %v42
  %v304 = vunpack.c.l.b16 %v43
  %v305 = vunpack.c.h.b16 %v43
  %v306 = vunpack.c.l.b16 %v44
  %v307 = vunpack.c.h.b16 %v44
  %v308 = vunpack.c.l.b16 %v45
  %v309 = vunpack.c.h.b16 %v45
  %v310 = vunpack.c.l.b16 %v46
  %v311 = vunpack.c.l.b16 %v47
  %v312 = vunpack.c.h.b16 %v47
  %v313 = vunpack.c.l.b16 %v48
  %v314 = vunpack.c.h.b16 %v48
  %v315 = vunpack.c.l.b16 %v49
  %v316 = vunpack.c.h.b16 %v49
  %v317 = vunpack.c.l.b16 %v50
  %v318 = vunpack.c.l.b16 %v51
  %v319 = vunpack.c.h.b16 %v51
  %v320 = vunpack.c.l.b16 %v52
  %v321 = vunpack.c.h.b16 %v52
  %v322 = vunpack.c.l.b16 %v53
  %v323 = vunpack.c.h.b16 %v53
  %v324 = vunpack.c.l.b16 %v54
  %v325 = vunpack.c.l.b16 %v55
  %v326 = vunpack.c.h.b16 %v55
  %v327 = vunpack.c.l.b16 %v56
  %v328 = vunpack.c.h.b16 %v56
  %v329 = vunpack.c.l.b16 %v57
  %v330 = vunpack.c.h.b16 %v57
  %v331 = vunpack.c.l.b16 %v58
  %v332 = vunpack.c.l.b16 %v59
  %v333 = vunpack.c.h.b16 %v59
  %v334 = vunpack.c.l.b16 %v60
  %v335 = vunpack.c.h.b16 %v60
  %v336 = vunpack.c.l.b16 %v61
  %v337 = vunpack.c.h.b16 %v61
  %v338 = vunpack.c.l.b16 %v62
  %v339 = vunpack.c.l.b16 %v63
  %v340 = vunpack.c.h.b16 %v63
  %v341 = vunpack.c.l.b16 %v64
  %v342 = vunpack.c.h.b16 %v64
  %v343 = vunpack.c.l.b16 %v65
  %v344 = vunpack.c.h.b16 %v65
  %v345 = vunpack.c.l.b16 %v66
  %v346 = vunpack.c.l.b16 %v67
  %v347 = vunpack.c.h.b16 %v67
  %v348 = vunpack.c.l.b16 %v68
  %v349 = vunpack.c.h.b16 %v68
  %v350 = vunpack.c.l.b16 %v69
  %v351 = vunpack.c.h.b16 %v69
  %v352 = vunpack.c.l.b16 %v70
  %v353 = vunpack.c.l.b16 %v71
  %v354 = vunpack.c.h.b16 %v71
  %v355 = vunpack.c.l.b16 %v72
  %v356 = vunpack.c.h.b16 %v72
  %v357 = vunpack.c.l.b16 %v73
  %v358 = vunpack.c.h.b16 %v73
  %v359 = vunpack.c.l.b16 %v74
  %v360 = vunpack.c.l.b16 %v75
  %v361 = vunpack.c.h.b16 %v75
  %v362 = vunpack.c.l.b16 %v76
  %v363 = vunpack.c.h.b16 %v76
  %v364 = vunpack.c.l.b16 %v77
  %v365 = vunpack.c.h.b16 %v77
  %v366 = vunpack.c.l.b16 %v78
  %v367 = vpack.c.b16 %v262, %v255
  %v368 = vpack.c.b16 %v263, %v256
  %v369 = vpack.c.b16 %v264, %v257
  %v370 = vpack.c.b16 %v265, %v258
  %v371 = vpack.c.b16 %v266, %v259
  %v372 = vpack.c.b16 %v267, %v260
  %v373 = vpack.c.b16 %v268, %v261
  %v374 = vpack.c.b16 %v276, %v269
  %v375 = vpack.c.b16 %v277, %v270
  %v376 = vpack.c.b16 %v278, %v271
  %v377 = vpack.c.b16 %v279, %v272
  %v378 = vpack.c.b16 %v280, %v273
  %v379 = vpack.c.b16 %v281, %v274
  %v380 = vpack.c.b16 %v282, %v275
  %v381 = vpack.c.b16 %v290, %v283
  %v382 = vpack.c.b16 %v291, %v284
  %v383 = vpack.c.b16 %v292, %v285
  %v384 = vpack.c.b16 %v293, %v286
  %v385 = vpack.c.b16 %v294, %v287
  %v386 = vpack.c.b16 %v295, %v288
  %v387 = vpack.c.b16 %v296, %v289
  %v388 = vpack.c.b16 %v304, %v297
  %v389 = vpack.c.b16 %v305, %v298
  %v390 = vpack.c.b16 %v306, %v299
  %v391 = vpack.c.b16 %v307, %v300
  %v392 = vpack.c.b16 %v308, %v301
  %v393 = vpack.c.b16 %v309, %v302
  %v394 = vpack.c.b16 %v310, %v303
  %v395 = vpack.c.b16 %v318, %v311
  %v396 = vpack.c.b16 %v319, %v312
  %v397 = vpack.c.b16 %v320, %v313
  %v398 = vpack.c.b16 %v321, %v314
  %v399 = vpack.c.b16 %v322, %v315
  %v400 = vpack.c.b16 %v323, %v316
  %v401 = vpack.c.b16 %v324, %v317
  %v402 = vpack.c.b16 %v332, %v325
  %v403 = vpack.c.b16 %v333, %v326
  %v404 = vpack.c.b16 %v334, %v327
  %v405 = vpack.c.b16 %v335, %v328
  %v406 = vpack.c.b16 %v336, %v329
  %v407 = vpack.c.b16 %v337, %v330
  %v408 = vpack.c.b16 %v338, %v331
  %v409 = vpack.c.b16 %v346, %v339
  %v410 = vpack.c.b16 %v347, %v340
  %v411 = vpack.c.b16 %v348, %v341
  %v412 = vpack.c.b16 %v349, %v342
  %v413 = vpack.c.b16 %v350, %v343
  %v414 = vpack.c.b16 %v351, %v344
  %v415 = vpack.c.b16 %v352, %v345
  %v416 = vpack.c.b16 %v360, %v353
  %v417 = vpack.c.b16 %v361, %v354
  %v418 = vpack.c.b16 %v362, %v355
  %v419 = vpack.c.b16 %v363, %v356
  %v420 = vpack.c.b16 %v364, %v357
  %v421 = vpack.c.b16 %v365, %v358
  %v422 = vpack.c.b16 %v366, %v359
  %v591 = vunpack.c.l.b16 %v79
  %v592 = vunpack.c.l.b16 %v80
  %v593 = vunpack.c.l.b16 %v81
  %v594 = vunpack.c.l.b16 %v82
  %v595 = vunpack.c.l.b16 %v83
  %v596 = vunpack.c.l.b16 %v84
  %v597 = vunpack.c.l.b16 %v85
  %v598 = vunpack.c.l.b16 %v86
  %v599 = vunpack.c.l.b16 %v87
  %v600 = vunpack.c.l.b16 %v88
  %v601 = vunpack.c.l.b16 %v89
  %v602 = vunpack.c.l.b16 %v90
  %v603 = vunpack.c.l.b16 %v91
  %v604 = vunpack.c.l.b16 %v92
  %v605 = vunpack.c.l.b16 %v93
  %v606 = vunpack.c.l.b16 %v94
  %v607 = vunpack.c.l.b16 %v95
  %v608 = vunpack.c.l.b16 %v96
  %v609 = vunpack.c.l.b16 %v97
  %v610 = vunpack.c.l.b16 %v98
  %v611 = vunpack.c.l.b16 %v99
  %v612 = vunpack.c.l.b16 %v100
  %v613 = vunpack.c.l.b16 %v101
  %v614 = vunpack.c.l.b16 %v102
  %v615 = vunpack.c.l.b16 %v103
  %v616 = vunpack.c.l.b16 %v104
  %v617 = vunpack.c.l.b16 %v105
  %v618 = vunpack.c.l.b16 %v106
  %v619 = vunpack.c.l.b16 %v107
  %v620 = vunpack.c.l.b16 %v108
  %v621 = vunpack.c.l.b16 %v109
  %v622 = vunpack.c.l.b16 %v110
  %v623 = vunpack.c.l.b16 %v111
  %v624 = vunpack.c.l.b16 %v112
  %v625 = vunpack.c.l.b16 %v113
  %v626 = vunpack.c.l.b16 %v114
  %v627 = vunpack.c.l.b16 %v115
  %v628 = vunpack.c.l.b16 %v116
  %v629 = vunpack.c.l.b16 %v117
  %v630 = vunpack.c.l.b16 %v118
  %v631 = vunpack.c.l.b16 %v119
  %v632 = vunpack.c.l.b16 %v120
  %v633 = vunpack.c.l.b16 %v121
  %v634 = vunpack.c.l.b16 %v122
  %v635 = vunpack.c.l.b16 %v123
  %v636 = vunpack.c.l.b16 %v124
  %v637 = vunpack.c.l.b16 %v125
  %v638 = vunpack.c.l.b16 %v126
  %v639 = vunpack.c.l.b16 %v127
  %v640 = vunpack.c.l.b16 %v128
  %v641 = vunpack.c.l.b16 %v129
  %v642 = vunpack.c.l.b16 %v130
  %v643 = vunpack.c.l.b16 %v131
  %v644 = vunpack.c.l.b16 %v132
  %v645 = vunpack.c.l.b16 %v133
  %v646 = vunpack.c.l.b16 %v134
  %v647 = vunpack.c.l.b16 %v135
  %v648 = vunpack.c.l.b16 %v136
  %v649 = vunpack.c.l.b16 %v137
  %v650 = vunpack.c.l.b16 %v138
  %v651 = vunpack.c.l.b16 %v139
  %v652 = vunpack.c.l.b16 %v140
  %v653 = vunpack.c.l.b16 %v141
  %v654 = vunpack.c.l.b16 %v142
  %v655 = vunpack.c.l.b16 %v143
  %v656 = vunpack.c.l.b16 %v144
  %v657 = vunpack.c.l.b16 %v145
  %v658 = vunpack.c.l.b16 %v146
  %v659 = vunpack.c.l.b16 %v147
  %v660 = vunpack.c.l.b16 %v148
  %v661 = vunpack.c.l.b16 %v149
  %v662 = vunpack.c.l.b16 %v150
  %v663 = vunpack.c.l.b16 %v151
  %v664 = vunpack.c.l.b16 %v152
  %v665 = vunpack.c.l.b16 %v153
  %v666 = vunpack.c.l.b16 %v154
  %v667 = vunpack.c.l.b16 %v155
  %v668 = vunpack.c.l.b16 %v156
  %v669 = vunpack.c.l.b16 %v157
  %v670 = vunpack.c.l.b16 %v158
  %v671 = vunpack.c.l.b16 %v159
  %v672 = vunpack.c.l.b16 %v160
  %v673 = vunpack.c.l.b16 %v161
  %v674 = vunpack.c.l.b16 %v162
  %v675 = vunpack.c.l.b16 %v163
  %v676 = vunpack.c.l.b16 %v164
  %v677 = vunpack.c.l.b16 %v165
  %v678 = vunpack.c.l.b16 %v166
  %v679 = vunpack.c.l.b16 %v167
  %v680 = vunpack.c.l.b16 %v168
  %v681 = vunpack.c.l.b16 %v169
  %v682 = vunpack.c.l.b16 %v170
  %v683 = vunpack.c.l.b16 %v171
  %v684 = vunpack.c.l.b16 %v172
  %v685 = vunpack.c.l.b16 %v173
  %v686 = vunpack.c.l.b16 %v174
  %v687 = vunpack.c.l.b16 %v175
  %v688 = vunpack.c.l.b16 %v176
  %v689 = vunpack.c.l.b16 %v177
  %v690 = vunpack.c.l.b16 %v178
  %v691 = vunpack.c.l.b16 %v179
  %v692 = vunpack.c.l.b16 %v180
  %v693 = vunpack.c.l.b16 %v181
  %v694 = vunpack.c.l.b16 %v182
  %v695 = vunpack.c.l.b16 %v183
  %v696 = vunpack.c.l.b16 %v184
  %v697 = vunpack.c.l.b16 %v185
  %v698 = vunpack.c.l.b16 %v186
  %v699 = vunpack.c.l.b16 %v187
  %v700 = vunpack.c.l.b16 %v188
  %v701 = vunpack.c.l.b16 %v189
  %v702 = vunpack.c.l.b16 %v190
  %v703 = vpack.c.b16 %v592, %v591
  %v704 = vpack.c.b16 %v594, %v593
  %v705 = vpack.c.b16 %v596, %v595
  %v706 = vpack.c.b16 %v598, %v597
  %v707 = vpack.c.b16 %v600, %v599
  %v708 = vpack.c.b16 %v602, %v601
  %v709 = vpack.c.b16 %v604, %v603
  %v710 = vpack.c.b16 %v606, %v605
  %v711 = vpack.c.b16 %v608, %v607
  %v712 = vpack.c.b16 %v610, %v609
  %v713 = vpack.c.b16 %v612, %v611
  %v714 = vpack.c.b16 %v614, %v613
  %v715 = vpack.c.b16 %v616, %v615
  %v716 = vpack.c.b16 %v618, %v617
  %v717 = vpack.c.b16 %v620, %v619
  %v718 = vpack.c.b16 %v622, %v621
  %v719 = vpack.c.b16 %v624, %v623
  %v720 = vpack.c.b16 %v626, %v625
  %v721 = vpack.c.b16 %v628, %v627
  %v722 = vpack.c.b16 %v630, %v629
  %v723 = vpack.c.b16 %v632, %v631
  %v724 = vpack.c.b16 %v634, %v633
  %v725 = vpack.c.b16 %v636, %v635
  %v726 = vpack.c.b16 %v638, %v637
  %v727 = vpack.c.b16 %v640, %v639
  %v728 = vpack.c.b16 %v642, %v641
  %v729 = vpack.c.b16 %v644, %v643
  %v730 = vpack.c.b16 %v646, %v645
  %v731 = vpack.c.b16 %v648, %v647
  %v732 = vpack.c.b16 %v650, %v649
  %v733 = vpack.c.b16 %v652, %v651
  %v734 = vpack.c.b16 %v654, %v653
  %v735 = vpack.c.b16 %v656, %v655
  %v736 = vpack.c.b16 %v658, %v657
  %v737 = vpack.c.b16 %v660, %v659
  %v738 = vpack.c.b16 %v662, %v661
  %v739 = vpack.c.b16 %v664, %v663
  %v740 = vpack.c.b16 %v666, %v665
  %v741 = vpack.c.b16 %v668, %v667
  %v742 = vpack.c.b16 %v670, %v669
  %v743 = vpack.c.b16 %v672, %v671
  %v744 = vpack.c.b16 %v674, %v673
  %v745 = vpack.c.b16 %v676, %v675
  %v746 = vpack.c.b16 %v678, %v677
  %v747 = vpack.c.b16 %v680, %v679
  %v748 = vpack.c.b16 %v682, %v681
  %v749 = vpack.c.b16 %v684, %v683
  %v750 = vpack.c.b16 %v686, %v685
  %v751 = vpack.c.b16 %v688, %v687
  %v752 = vpack.c.b16 %v690, %v689
  %v753 = vpack.c.b16 %v692, %v691
  %v754 = vpack.c.b16 %v694, %v693
  %v755 = vpack.c.b16 %v696, %v695
  %v756 = vpack.c.b16 %v698, %v697
  %v757 = vpack.c.b16 %v700, %v699
  %v758 = vpack.c.b16 %v702, %v701
  %815 = vmatprep.subr.bf16.mxu0 0
  %816 = vmatpush1.bf16.msra.mxu0 %v710
  %817 = vmatprep.subr.bf16.mxu0 0
  %818 = vmatpush1.bf16.msra.mxu0 %v709
  %819 = vmatprep.subr.bf16.mxu0 0
  %820 = vmatpush1.bf16.msra.mxu0 %v708
  %821 = vmatprep.subr.bf16.mxu0 0
  %822 = vmatpush1.bf16.msra.mxu0 %v707
  %823 = vmatprep.subr.bf16.mxu0 0
  %824 = vmatpush1.bf16.msra.mxu0 %v706
  %825 = vmatprep.subr.bf16.mxu0 0
  %826 = vmatpush1.bf16.msra.mxu0 %v705
  %827 = vmatprep.subr.bf16.mxu0 0
  %828 = vmatpush1.bf16.msra.mxu0 %v704
  %829 = vmatprep.subr.bf16.mxu0 0
  %830 = vmatpush1.bf16.msra.mxu0 %v703
  %831 = vmatprep.subr.bf16.mxu0 0
  %832 = vmatpush2.bf16.msra.mxu0 %v718
  %833 = vmatprep.subr.bf16.mxu0 0
  %834 = vmatpush2.bf16.msra.mxu0 %v717
  %835 = vmatprep.subr.bf16.mxu0 0
  %836 = vmatpush2.bf16.msra.mxu0 %v716
  %837 = vmatprep.subr.bf16.mxu0 0
  %838 = vmatpush2.bf16.msra.mxu0 %v715
  %839 = vmatprep.subr.bf16.mxu0 0
  %840 = vmatpush2.bf16.msra.mxu0 %v714
  %841 = vmatprep.subr.bf16.mxu0 0
  %842 = vmatpush2.bf16.msra.mxu0 %v713
  %843 = vmatprep.subr.bf16.mxu0 0
  %844 = vmatpush2.bf16.msra.mxu0 %v712
  %845 = vmatprep.subr.bf16.mxu0 0
  %846 = vmatpush2.bf16.msra.mxu0 %v711
  %847 = vmatprep.mubr.bf16.mxu0 %v368
  %848 = vmatmul.mubr.bf16.gmra.mxu0 %v367
  %v849 = vpop.f32.mrf.mxu0
  %v850 = vadd.f32 0.0, %v849
  %v851 = vpop.f32.mrf.mxu0
  %v852 = vpop.f32.mrf.mxu0
  %v853 = vadd.f32 0.0, %v852
  %v854 = vpop.f32.mrf.mxu0
  %855 = vmatprep.mubr.bf16.mxu0 %v375
  %856 = vmatmul.mubr.bf16.gmra.mxu0 %v374
  %v857 = vpop.f32.mrf.mxu0
  %v858 = vadd.f32 0.0, %v857
  %v859 = vpop.f32.mrf.mxu0
  %v860 = vpop.f32.mrf.mxu0
  %v861 = vadd.f32 0.0, %v860
  %v862 = vpop.f32.mrf.mxu0
  %863 = vmatprep.mubr.bf16.mxu0 %v382
  %864 = vmatmul.mubr.bf16.gmra.mxu0 %v381
  %v865 = vpop.f32.mrf.mxu0
  %v866 = vadd.f32 0.0, %v865
  %v867 = vpop.f32.mrf.mxu0
  %v868 = vpop.f32.mrf.mxu0
  %v869 = vadd.f32 0.0, %v868
  %v870 = vpop.f32.mrf.mxu0
  %871 = vmatprep.mubr.bf16.mxu0 %v389
  %872 = vmatmul.mubr.bf16.gmra.mxu0 %v388
  %v873 = vpop.f32.mrf.mxu0
  %v874 = vadd.f32 0.0, %v873
  %v875 = vpop.f32.mrf.mxu0
  %v876 = vpop.f32.mrf.mxu0
  %v877 = vadd.f32 0.0, %v876
  %v878 = vpop.f32.mrf.mxu0
  %879 = vmatprep.mubr.bf16.mxu0 %v396
  %880 = vmatmul.mubr.bf16.gmra.mxu0 %v395
  %v881 = vpop.f32.mrf.mxu0
  %v882 = vadd.f32 0.0, %v881
  %v883 = vpop.f32.mrf.mxu0
  %v884 = vpop.f32.mrf.mxu0
  %v885 = vadd.f32 0.0, %v884
  %v886 = vpop.f32.mrf.mxu0
  %887 = vmatprep.mubr.bf16.mxu0 %v403
  %888 = vmatmul.mubr.bf16.gmra.mxu0 %v402
  %v889 = vpop.f32.mrf.mxu0
  %v890 = vadd.f32 0.0, %v889
  %v891 = vpop.f32.mrf.mxu0
  %v892 = vpop.f32.mrf.mxu0
  %v893 = vadd.f32 0.0, %v892
  %v894 = vpop.f32.mrf.mxu0
  %895 = vmatprep.mubr.bf16.mxu0 %v410
  %896 = vmatmul.mubr.bf16.gmra.mxu0 %v409
  %v897 = vpop.f32.mrf.mxu0
  %v898 = vadd.f32 0.0, %v897
  %v899 = vpop.f32.mrf.mxu0
  %v900 = vpop.f32.mrf.mxu0
  %v901 = vadd.f32 0.0, %v900
  %v902 = vpop.f32.mrf.mxu0
  %903 = vmatprep.mubr.bf16.mxu0 %v417
  %904 = vmatmul.mubr.bf16.gmra.mxu0 %v416
  %v905 = vpop.f32.mrf.mxu0
  %v906 = vadd.f32 0.0, %v905
  %v907 = vpop.f32.mrf.mxu0
  %v908 = vpop.f32.mrf.mxu0
  %v909 = vadd.f32 0.0, %v908
  %v910 = vpop.f32.mrf.mxu0
  %911 = vdwg.mxu0
  %912 = vmatprep.subr.bf16.mxu0 0
  %913 = vmatpush1.bf16.msra.mxu0 %v726
  %914 = vmatprep.subr.bf16.mxu0 0
  %915 = vmatpush1.bf16.msra.mxu0 %v725
  %916 = vmatprep.subr.bf16.mxu0 0
  %917 = vmatpush1.bf16.msra.mxu0 %v724
  %918 = vmatprep.subr.bf16.mxu0 0
  %919 = vmatpush1.bf16.msra.mxu0 %v723
  %920 = vmatprep.subr.bf16.mxu0 0
  %921 = vmatpush1.bf16.msra.mxu0 %v722
  %922 = vmatprep.subr.bf16.mxu0 0
  %923 = vmatpush1.bf16.msra.mxu0 %v721
  %924 = vmatprep.subr.bf16.mxu0 0
  %925 = vmatpush1.bf16.msra.mxu0 %v720
  %926 = vmatprep.subr.bf16.mxu0 0
  %927 = vmatpush1.bf16.msra.mxu0 %v719
  %928 = vmatprep.subr.bf16.mxu0 0
  %929 = vmatpush2.bf16.msra.mxu0 %v734
  %930 = vmatprep.subr.bf16.mxu0 0
  %931 = vmatpush2.bf16.msra.mxu0 %v733
  %932 = vmatprep.subr.bf16.mxu0 0
  %933 = vmatpush2.bf16.msra.mxu0 %v732
  %934 = vmatprep.subr.bf16.mxu0 0
  %935 = vmatpush2.bf16.msra.mxu0 %v731
  %936 = vmatprep.subr.bf16.mxu0 0
  %937 = vmatpush2.bf16.msra.mxu0 %v730
  %938 = vmatprep.subr.bf16.mxu0 0
  %939 = vmatpush2.bf16.msra.mxu0 %v729
  %940 = vmatprep.subr.bf16.mxu0 0
  %941 = vmatpush2.bf16.msra.mxu0 %v728
  %942 = vmatprep.subr.bf16.mxu0 0
  %943 = vmatpush2.bf16.msra.mxu0 %v727
  %944 = vmatprep.mubr.bf16.mxu0 %v370
  %945 = vmatmul.mubr.bf16.gmra.mxu0 %v369
  %v946 = vpop.f32.mrf.mxu0
  %v947 = vadd.f32 %v850, %v946
  %v948 = vpop.f32.mrf.mxu0
  %v949 = vpop.f32.mrf.mxu0
  %v950 = vadd.f32 %v853, %v949
  %v951 = vpop.f32.mrf.mxu0
  %952 = vmatprep.mubr.bf16.mxu0 %v377
  %953 = vmatmul.mubr.bf16.gmra.mxu0 %v376
  %v954 = vpop.f32.mrf.mxu0
  %v955 = vadd.f32 %v858, %v954
  %v956 = vpop.f32.mrf.mxu0
  %v957 = vpop.f32.mrf.mxu0
  %v958 = vadd.f32 %v861, %v957
  %v959 = vpop.f32.mrf.mxu0
  %960 = vmatprep.mubr.bf16.mxu0 %v384
  %961 = vmatmul.mubr.bf16.gmra.mxu0 %v383
  %v962 = vpop.f32.mrf.mxu0
  %v963 = vadd.f32 %v866, %v962
  %v964 = vpop.f32.mrf.mxu0
  %v965 = vpop.f32.mrf.mxu0
  %v966 = vadd.f32 %v869, %v965
  %v967 = vpop.f32.mrf.mxu0
  %968 = vmatprep.mubr.bf16.mxu0 %v391
  %969 = vmatmul.mubr.bf16.gmra.mxu0 %v390
  %v970 = vpop.f32.mrf.mxu0
  %v971 = vadd.f32 %v874, %v970
  %v972 = vpop.f32.mrf.mxu0
  %v973 = vpop.f32.mrf.mxu0
  %v974 = vadd.f32 %v877, %v973
  %v975 = vpop.f32.mrf.mxu0
  %976 = vmatprep.mubr.bf16.mxu0 %v398
  %977 = vmatmul.mubr.bf16.gmra.mxu0 %v397
  %v978 = vpop.f32.mrf.mxu0
  %v979 = vadd.f32 %v882, %v978
  %v980 = vpop.f32.mrf.mxu0
  %v981 = vpop.f32.mrf.mxu0
  %v982 = vadd.f32 %v885, %v981
  %v983 = vpop.f32.mrf.mxu0
  %984 = vmatprep.mubr.bf16.mxu0 %v405
  %985 = vmatmul.mubr.bf16.gmra.mxu0 %v404
  %v986 = vpop.f32.mrf.mxu0
  %v987 = vadd.f32 %v890, %v986
  %v988 = vpop.f32.mrf.mxu0
  %v989 = vpop.f32.mrf.mxu0
  %v990 = vadd.f32 %v893, %v989
  %v991 = vpop.f32.mrf.mxu0
  %992 = vmatprep.mubr.bf16.mxu0 %v412
  %993 = vmatmul.mubr.bf16.gmra.mxu0 %v411
  %v994 = vpop.f32.mrf.mxu0
  %v995 = vadd.f32 %v898, %v994
  %v996 = vpop.f32.mrf.mxu0
  %v997 = vpop.f32.mrf.mxu0
  %v998 = vadd.f32 %v901, %v997
  %v999 = vpop.f32.mrf.mxu0
  %1000 = vmatprep.mubr.bf16.mxu0 %v419
  %1001 = vmatmul.mubr.bf16.gmra.mxu0 %v418
  %v1002 = vpop.f32.mrf.mxu0
  %v1003 = vadd.f32 %v906, %v1002
  %v1004 = vpop.f32.mrf.mxu0
  %v1005 = vpop.f32.mrf.mxu0
  %v1006 = vadd.f32 %v909, %v1005
  %v1007 = vpop.f32.mrf.mxu0
  %1008 = vdwg.mxu0
  %1009 = vmatprep.subr.bf16.mxu0 0
  %1010 = vmatpush1.bf16.msra.mxu0 %v742
  %1011 = vmatprep.subr.bf16.mxu0 0
  %1012 = vmatpush1.bf16.msra.mxu0 %v741
  %1013 = vmatprep.subr.bf16.mxu0 0
  %1014 = vmatpush1.bf16.msra.mxu0 %v740
  %1015 = vmatprep.subr.bf16.mxu0 0
  %1016 = vmatpush1.bf16.msra.mxu0 %v739
  %1017 = vmatprep.subr.bf16.mxu0 0
  %1018 = vmatpush1.bf16.msra.mxu0 %v738
  %1019 = vmatprep.subr.bf16.mxu0 0
  %1020 = vmatpush1.bf16.msra.mxu0 %v737
  %1021 = vmatprep.subr.bf16.mxu0 0
  %1022 = vmatpush1.bf16.msra.mxu0 %v736
  %1023 = vmatprep.subr.bf16.mxu0 0
  %1024 = vmatpush1.bf16.msra.mxu0 %v735
  %1025 = vmatprep.subr.bf16.mxu0 0
  %1026 = vmatpush2.bf16.msra.mxu0 %v750
  %1027 = vmatprep.subr.bf16.mxu0 0
  %1028 = vmatpush2.bf16.msra.mxu0 %v749
  %1029 = vmatprep.subr.bf16.mxu0 0
  %1030 = vmatpush2.bf16.msra.mxu0 %v748
  %1031 = vmatprep.subr.bf16.mxu0 0
  %1032 = vmatpush2.bf16.msra.mxu0 %v747
  %1033 = vmatprep.subr.bf16.mxu0 0
  %1034 = vmatpush2.bf16.msra.mxu0 %v746
  %1035 = vmatprep.subr.bf16.mxu0 0
  %1036 = vmatpush2.bf16.msra.mxu0 %v745
  %1037 = vmatprep.subr.bf16.mxu0 0
  %1038 = vmatpush2.bf16.msra.mxu0 %v744
  %1039 = vmatprep.subr.bf16.mxu0 0
  %1040 = vmatpush2.bf16.msra.mxu0 %v743
  %1041 = vmatprep.mubr.bf16.mxu0 %v372
  %1042 = vmatmul.mubr.bf16.gmra.mxu0 %v371
  %v1043 = vpop.f32.mrf.mxu0
  %v1044 = vadd.f32 %v947, %v1043
  %v1045 = vpop.f32.mrf.mxu0
  %v1046 = vpop.f32.mrf.mxu0
  %v1047 = vadd.f32 %v950, %v1046
  %v1048 = vpop.f32.mrf.mxu0
  %1049 = vmatprep.mubr.bf16.mxu0 %v379
  %1050 = vmatmul.mubr.bf16.gmra.mxu0 %v378
  %v1051 = vpop.f32.mrf.mxu0
  %v1052 = vadd.f32 %v955, %v1051
  %v1053 = vpop.f32.mrf.mxu0
  %v1054 = vpop.f32.mrf.mxu0
  %v1055 = vadd.f32 %v958, %v1054
  %v1056 = vpop.f32.mrf.mxu0
  %1057 = vmatprep.mubr.bf16.mxu0 %v386
  %1058 = vmatmul.mubr.bf16.gmra.mxu0 %v385
  %v1059 = vpop.f32.mrf.mxu0
  %v1060 = vadd.f32 %v963, %v1059
  %v1061 = vpop.f32.mrf.mxu0
  %v1062 = vpop.f32.mrf.mxu0
  %v1063 = vadd.f32 %v966, %v1062
  %v1064 = vpop.f32.mrf.mxu0
  %1065 = vmatprep.mubr.bf16.mxu0 %v393
  %1066 = vmatmul.mubr.bf16.gmra.mxu0 %v392
  %v1067 = vpop.f32.mrf.mxu0
  %v1068 = vadd.f32 %v971, %v1067
  %v1069 = vpop.f32.mrf.mxu0
  %v1070 = vpop.f32.mrf.mxu0
  %v1071 = vadd.f32 %v974, %v1070
  %v1072 = vpop.f32.mrf.mxu0
  %1073 = vmatprep.mubr.bf16.mxu0 %v400
  %1074 = vmatmul.mubr.bf16.gmra.mxu0 %v399
  %v1075 = vpop.f32.mrf.mxu0
  %v1076 = vadd.f32 %v979, %v1075
  %v1077 = vpop.f32.mrf.mxu0
  %v1078 = vpop.f32.mrf.mxu0
  %v1079 = vadd.f32 %v982, %v1078
  %v1080 = vpop.f32.mrf.mxu0
  %1081 = vmatprep.mubr.bf16.mxu0 %v407
  %1082 = vmatmul.mubr.bf16.gmra.mxu0 %v406
  %v1083 = vpop.f32.mrf.mxu0
  %v1084 = vadd.f32 %v987, %v1083
  %v1085 = vpop.f32.mrf.mxu0
  %v1086 = vpop.f32.mrf.mxu0
  %v1087 = vadd.f32 %v990, %v1086
  %v1088 = vpop.f32.mrf.mxu0
  %1089 = vmatprep.mubr.bf16.mxu0 %v414
  %1090 = vmatmul.mubr.bf16.gmra.mxu0 %v413
  %v1091 = vpop.f32.mrf.mxu0
  %v1092 = vadd.f32 %v995, %v1091
  %v1093 = vpop.f32.mrf.mxu0
  %v1094 = vpop.f32.mrf.mxu0
  %v1095 = vadd.f32 %v998, %v1094
  %v1096 = vpop.f32.mrf.mxu0
  %1097 = vmatprep.mubr.bf16.mxu0 %v421
  %1098 = vmatmul.mubr.bf16.gmra.mxu0 %v420
  %v1099 = vpop.f32.mrf.mxu0
  %v1100 = vadd.f32 %v1003, %v1099
  %v1101 = vpop.f32.mrf.mxu0
  %v1102 = vpop.f32.mrf.mxu0
  %v1103 = vadd.f32 %v1006, %v1102
  %v1104 = vpop.f32.mrf.mxu0
  %1105 = vdwg.mxu0
  %1106 = vmatprep.subr.bf16.mxu0 0
  %1107 = vmatpush1.bf16.msra.mxu0 %v758
  %1108 = vmatprep.subr.bf16.mxu0 0
  %1109 = vmatpush1.bf16.msra.mxu0 %v757
  %1110 = vmatprep.subr.bf16.mxu0 0
  %1111 = vmatpush1.bf16.msra.mxu0 %v756
  %1112 = vmatprep.subr.bf16.mxu0 0
  %1113 = vmatpush1.bf16.msra.mxu0 %v755
  %1114 = vmatprep.subr.bf16.mxu0 0
  %1115 = vmatpush1.bf16.msra.mxu0 %v754
  %1116 = vmatprep.subr.bf16.mxu0 0
  %1117 = vmatpush1.bf16.msra.mxu0 %v753
  %1118 = vmatprep.subr.bf16.mxu0 0
  %1119 = vmatpush1.bf16.msra.mxu0 %v752
  %1120 = vmatprep.subr.bf16.mxu0 0
  %1121 = vmatpush1.bf16.msra.mxu0 %v751
  %1122 = vmatprep.subr.bf16.mxu0 0
  %1123 = vmatpush2.bf16.msra.mxu0 0
  %1124 = vmatprep.subr.bf16.mxu0 0
  %1125 = vmatpush2.bf16.msra.mxu0 0
  %1126 = vmatprep.subr.bf16.mxu0 0
  %1127 = vmatpush2.bf16.msra.mxu0 0
  %1128 = vmatprep.subr.bf16.mxu0 0
  %1129 = vmatpush2.bf16.msra.mxu0 0
  %1130 = vmatprep.subr.bf16.mxu0 0
  %1131 = vmatpush2.bf16.msra.mxu0 0
  %1132 = vmatprep.subr.bf16.mxu0 0
  %1133 = vmatpush2.bf16.msra.mxu0 0
  %1134 = vmatprep.subr.bf16.mxu0 0
  %1135 = vmatpush2.bf16.msra.mxu0 0
  %1136 = vmatprep.subr.bf16.mxu0 0
  %1137 = vmatpush2.bf16.msra.mxu0 0
  %1138 = vmatprep.mubr.bf16.mxu0 0
  %1139 = vmatmul.mubr.bf16.gmra.mxu0 %v373
  %v1140 = vpop.f32.mrf.mxu0
  %v1141 = vadd.f32 %v1044, %v1140
  %v1142 = vpop.f32.mrf.mxu0
  %v1143 = vpop.f32.mrf.mxu0
  %v1144 = vadd.f32 %v1047, %v1143
  %v1145 = vpop.f32.mrf.mxu0
  %1146 = vmatprep.mubr.bf16.mxu0 0
  %1147 = vmatmul.mubr.bf16.gmra.mxu0 %v380
  %v1148 = vpop.f32.mrf.mxu0
  %v1149 = vadd.f32 %v1052, %v1148
  %v1150 = vpop.f32.mrf.mxu0
  %v1151 = vpop.f32.mrf.mxu0
  %v1152 = vadd.f32 %v1055, %v1151
  %v1153 = vpop.f32.mrf.mxu0
  %1154 = vmatprep.mubr.bf16.mxu0 0
  %1155 = vmatmul.mubr.bf16.gmra.mxu0 %v387
  %v1156 = vpop.f32.mrf.mxu0
  %v1157 = vadd.f32 %v1060, %v1156
  %v1158 = vpop.f32.mrf.mxu0
  %v1159 = vpop.f32.mrf.mxu0
  %v1160 = vadd.f32 %v1063, %v1159
  %v1161 = vpop.f32.mrf.mxu0
  %1162 = vmatprep.mubr.bf16.mxu0 0
  %1163 = vmatmul.mubr.bf16.gmra.mxu0 %v394
  %v1164 = vpop.f32.mrf.mxu0
  %v1165 = vadd.f32 %v1068, %v1164
  %v1166 = vpop.f32.mrf.mxu0
  %v1167 = vpop.f32.mrf.mxu0
  %v1168 = vadd.f32 %v1071, %v1167
  %v1169 = vpop.f32.mrf.mxu0
  %1170 = vmatprep.mubr.bf16.mxu0 0
  %1171 = vmatmul.mubr.bf16.gmra.mxu0 %v401
  %v1172 = vpop.f32.mrf.mxu0
  %v1173 = vadd.f32 %v1076, %v1172
  %v1174 = vpop.f32.mrf.mxu0
  %v1175 = vpop.f32.mrf.mxu0
  %v1176 = vadd.f32 %v1079, %v1175
  %v1177 = vpop.f32.mrf.mxu0
  %1178 = vmatprep.mubr.bf16.mxu0 0
  %1179 = vmatmul.mubr.bf16.gmra.mxu0 %v408
  %v1180 = vpop.f32.mrf.mxu0
  %v1181 = vadd.f32 %v1084, %v1180
  %v1182 = vpop.f32.mrf.mxu0
  %v1183 = vpop.f32.mrf.mxu0
  %v1184 = vadd.f32 %v1087, %v1183
  %v1185 = vpop.f32.mrf.mxu0
  %1186 = vmatprep.mubr.bf16.mxu0 0
  %1187 = vmatmul.mubr.bf16.gmra.mxu0 %v415
  %v1188 = vpop.f32.mrf.mxu0
  %v1189 = vadd.f32 %v1092, %v1188
  %v1190 = vpop.f32.mrf.mxu0
  %v1191 = vpop.f32.mrf.mxu0
  %v1192 = vadd.f32 %v1095, %v1191
  %v1193 = vpop.f32.mrf.mxu0
  %1194 = vmatprep.mubr.bf16.mxu0 0
  %1195 = vmatmul.mubr.bf16.gmra.mxu0 %v422
  %v1196 = vpop.f32.mrf.mxu0
  %v1197 = vadd.f32 %v1100, %v1196
  %v1198 = vpop.f32.mrf.mxu0
  %v1199 = vpop.f32.mrf.mxu0
  %v1200 = vadd.f32 %v1103, %v1199
  %v1201 = vpop.f32.mrf.mxu0
  %1202 = vdwg.mxu0
  %vm1203 = vcmask 523264
  %v1204 = vsel %vm1203, %v1141, 0.0
  %v1205 = vsel %vm1203, %v1144, 0.0
  %v1206 = vadd.f32 %v1204, %v1205
  %v1207 = vsel %vm1203, %v1149, 0.0
  %v1208 = vadd.f32 %v1206, %v1207
  %v1209 = vsel %vm1203, %v1152, 0.0
  %v1210 = vadd.f32 %v1208, %v1209
  %v1211 = vsel %vm1203, %v1157, 0.0
  %v1212 = vadd.f32 %v1210, %v1211
  %v1213 = vsel %vm1203, %v1160, 0.0
  %v1214 = vadd.f32 %v1212, %v1213
  %v1215 = vsel %vm1203, %v1165, 0.0
  %v1216 = vadd.f32 %v1214, %v1215
  %v1217 = vsel %vm1203, %v1168, 0.0
  %v1218 = vadd.f32 %v1216, %v1217
  %v1219 = vsel %vm1203, %v1173, 0.0
  %v1220 = vadd.f32 %v1218, %v1219
  %v1221 = vsel %vm1203, %v1176, 0.0
  %v1222 = vadd.f32 %v1220, %v1221
  %v1223 = vsel %vm1203, %v1181, 0.0
  %v1224 = vadd.f32 %v1222, %v1223
  %v1225 = vsel %vm1203, %v1184, 0.0
  %v1226 = vadd.f32 %v1224, %v1225
  %v1227 = vsel %vm1203, %v1189, 0.0
  %v1228 = vadd.f32 %v1226, %v1227
  %v1229 = vsel %vm1203, %v1192, 0.0
  %v1230 = vadd.f32 %v1228, %v1229
  %v1231 = vsel %vm1203, %v1197, 0.0
  %v1232 = vadd.f32 %v1230, %v1231
  %v1233 = vsel %vm1203, %v1200, 0.0
  %v1234 = vadd.f32 %v1232, %v1233
  %v1235 = vrot.slane %v1234, 4
  %v1236 = vadd.f32 %v1234, %v1235
  %v1237 = vrot.slane %v1236, 2
  %v1238 = vadd.f32 %v1236, %v1237
  %v1239 = vrot.slane %v1238, 1
  %v1240 = vadd.f32 %v1238, %v1239
  %v1241 = vrcp.pop 128.0
  %v1242 = vmul.f32 %v1240, %v1241
  %v1243 = vsub.f32 %v1141, %v1242
  %v1244 = vsub.f32 %v1144, %v1242
  %v1245 = vsub.f32 %v1149, %v1242
  %v1246 = vsub.f32 %v1152, %v1242
  %v1247 = vsub.f32 %v1157, %v1242
  %v1248 = vsub.f32 %v1160, %v1242
  %v1249 = vsub.f32 %v1165, %v1242
  %v1250 = vsub.f32 %v1168, %v1242
  %v1251 = vsub.f32 %v1173, %v1242
  %v1252 = vsub.f32 %v1176, %v1242
  %v1253 = vsub.f32 %v1181, %v1242
  %v1254 = vsub.f32 %v1184, %v1242
  %v1255 = vsub.f32 %v1189, %v1242
  %v1256 = vsub.f32 %v1192, %v1242
  %v1257 = vsub.f32 %v1197, %v1242
  %v1258 = vsub.f32 %v1200, %v1242
  %v1259 = vmul.f32 %v1243, %v1243
  %v1260 = vmul.f32 %v1244, %v1244
  %v1261 = vmul.f32 %v1245, %v1245
  %v1262 = vmul.f32 %v1246, %v1246
  %v1263 = vmul.f32 %v1247, %v1247
  %v1264 = vmul.f32 %v1248, %v1248
  %v1265 = vmul.f32 %v1249, %v1249
  %v1266 = vmul.f32 %v1250, %v1250
  %v1267 = vmul.f32 %v1251, %v1251
  %v1268 = vmul.f32 %v1252, %v1252
  %v1269 = vmul.f32 %v1253, %v1253
  %v1270 = vmul.f32 %v1254, %v1254
  %v1271 = vmul.f32 %v1255, %v1255
  %v1272 = vmul.f32 %v1256, %v1256
  %v1273 = vmul.f32 %v1257, %v1257
  %v1274 = vmul.f32 %v1258, %v1258
  %v1275 = vsel %vm1203, %v1259, 0.0
  %v1276 = vsel %vm1203, %v1260, 0.0
  %v1277 = vadd.f32 %v1275, %v1276
  %v1278 = vsel %vm1203, %v1261, 0.0
  %v1279 = vadd.f32 %v1277, %v1278
  %v1280 = vsel %vm1203, %v1262, 0.0
  %v1281 = vadd.f32 %v1279, %v1280
  %v1282 = vsel %vm1203, %v1263, 0.0
  %v1283 = vadd.f32 %v1281, %v1282
  %v1284 = vsel %vm1203, %v1264, 0.0
  %v1285 = vadd.f32 %v1283, %v1284
  %v1286 = vsel %vm1203, %v1265, 0.0
  %v1287 = vadd.f32 %v1285, %v1286
  %v1288 = vsel %vm1203, %v1266, 0.0
  %v1289 = vadd.f32 %v1287, %v1288
  %v1290 = vsel %vm1203, %v1267, 0.0
  %v1291 = vadd.f32 %v1289, %v1290
  %v1292 = vsel %vm1203, %v1268, 0.0
  %v1293 = vadd.f32 %v1291, %v1292
  %v1294 = vsel %vm1203, %v1269, 0.0
  %v1295 = vadd.f32 %v1293, %v1294
  %v1296 = vsel %vm1203, %v1270, 0.0
  %v1297 = vadd.f32 %v1295, %v1296
  %v1298 = vsel %vm1203, %v1271, 0.0
  %v1299 = vadd.f32 %v1297, %v1298
  %v1300 = vsel %vm1203, %v1272, 0.0
  %v1301 = vadd.f32 %v1299, %v1300
  %v1302 = vsel %vm1203, %v1273, 0.0
  %v1303 = vadd.f32 %v1301, %v1302
  %v1304 = vsel %vm1203, %v1274, 0.0
  %v1305 = vadd.f32 %v1303, %v1304
  %v1306 = vrot.slane %v1305, 4
  %v1307 = vadd.f32 %v1305, %v1306
  %v1308 = vrot.slane %v1307, 2
  %v1309 = vadd.f32 %v1307, %v1308
  %v1310 = vrot.slane %v1309, 1
  %v1311 = vadd.f32 %v1309, %v1310
  %v1312 = vmul.f32 %v1311, %v1241
  %v1313 = vld [vmem:[%s2] sm:$0x1]
  %v1314 = vadd.f32 %v1312, 1e-05
  %v1315 = vrsqrt.pop %v1314
  %v1316 = vmul.f32 %v1313, %v1315
  %v1317 = vlaneseq
  %v1318 = vshrl.u32 %v1317, 7
  %v1319 = vsub.s32 0, %v1318
  %v1320 = vrot.slane %v1316, %v1319
  %v1321 = vmul.f32 %v1243, %v1320
  %v1322 = vmul.f32 %v1244, %v1320
  %v1323 = vmul.f32 %v1245, %v1320
  %v1324 = vmul.f32 %v1246, %v1320
  %v1325 = vmul.f32 %v1247, %v1320
  %v1326 = vmul.f32 %v1248, %v1320
  %v1327 = vmul.f32 %v1249, %v1320
  %v1328 = vmul.f32 %v1250, %v1320
  %v1329 = vmul.f32 %v1251, %v1320
  %v1330 = vmul.f32 %v1252, %v1320
  %v1331 = vmul.f32 %v1253, %v1320
  %v1332 = vmul.f32 %v1254, %v1320
  %v1333 = vmul.f32 %v1255, %v1320
  %v1334 = vmul.f32 %v1256, %v1320
  %v1335 = vmul.f32 %v1257, %v1320
  %v1336 = vmul.f32 %v1258, %v1320
  %v1337 = vld [vmem:[%s2 + $0x1] sm:$0x1]
  %v1338 = vlaneseq
  %v1339 = vshrl.u32 %v1338, 7
  %v1340 = vsub.s32 0, %v1339
  %v1341 = vrot.slane %v1337, %v1340
  %v1342 = vadd.f32 %v1321, %v1341
  %v1343 = vadd.f32 %v1322, %v1341
  %v1344 = vadd.f32 %v1323, %v1341
  %v1345 = vadd.f32 %v1324, %v1341
  %v1346 = vadd.f32 %v1325, %v1341
  %v1347 = vadd.f32 %v1326, %v1341
  %v1348 = vadd.f32 %v1327, %v1341
  %v1349 = vadd.f32 %v1328, %v1341
  %v1350 = vadd.f32 %v1329, %v1341
  %v1351 = vadd.f32 %v1330, %v1341
  %v1352 = vadd.f32 %v1331, %v1341
  %v1353 = vadd.f32 %v1332, %v1341
  %v1354 = vadd.f32 %v1333, %v1341
  %v1355 = vadd.f32 %v1334, %v1341
  %v1356 = vadd.f32 %v1335, %v1341
  %v1357 = vadd.f32 %v1336, %v1341
  %vm1358 = vcmp.gt.f32.partialorder %v1342, 0.0
  %vm1359 = vcmp.gt.f32.partialorder %v1343, 0.0
  %vm1360 = vcmp.gt.f32.partialorder %v1344, 0.0
  %vm1361 = vcmp.gt.f32.partialorder %v1345, 0.0
  %vm1362 = vcmp.gt.f32.partialorder %v1346, 0.0
  %vm1363 = vcmp.gt.f32.partialorder %v1347, 0.0
  %vm1364 = vcmp.gt.f32.partialorder %v1348, 0.0
  %vm1365 = vcmp.gt.f32.partialorder %v1349, 0.0
  %vm1366 = vcmp.gt.f32.partialorder %v1350, 0.0
  %vm1367 = vcmp.gt.f32.partialorder %v1351, 0.0
  %vm1368 = vcmp.gt.f32.partialorder %v1352, 0.0
  %vm1369 = vcmp.gt.f32.partialorder %v1353, 0.0
  %vm1370 = vcmp.gt.f32.partialorder %v1354, 0.0
  %vm1371 = vcmp.gt.f32.partialorder %v1355, 0.0
  %vm1372 = vcmp.gt.f32.partialorder %v1356, 0.0
  %vm1373 = vcmp.gt.f32.partialorder %v1357, 0.0
  %v1374 = vmul.f32 %v1342, 0.01
  %v1375 = vmul.f32 %v1343, 0.01
  %v1376 = vmul.f32 %v1344, 0.01
  %v1377 = vmul.f32 %v1345, 0.01
  %v1378 = vmul.f32 %v1346, 0.01
  %v1379 = vmul.f32 %v1347, 0.01
  %v1380 = vmul.f32 %v1348, 0.01
  %v1381 = vmul.f32 %v1349, 0.01
  %v1382 = vmul.f32 %v1350, 0.01
  %v1383 = vmul.f32 %v1351, 0.01
  %v1384 = vmul.f32 %v1352, 0.01
  %v1385 = vmul.f32 %v1353, 0.01
  %v1386 = vmul.f32 %v1354, 0.01
  %v1387 = vmul.f32 %v1355, 0.01
  %v1388 = vmul.f32 %v1356, 0.01
  %v1389 = vmul.f32 %v1357, 0.01
  %v1390 = vsel %vm1358, %v1342, %v1374
  %v1391 = vsel %vm1359, %v1343, %v1375
  %v1392 = vsel %vm1360, %v1344, %v1376
  %v1393 = vsel %vm1361, %v1345, %v1377
  %v1394 = vsel %vm1362, %v1346, %v1378
  %v1395 = vsel %vm1363, %v1347, %v1379
  %v1396 = vsel %vm1364, %v1348, %v1380
  %v1397 = vsel %vm1365, %v1349, %v1381
  %v1398 = vsel %vm1366, %v1350, %v1382
  %v1399 = vsel %vm1367, %v1351, %v1383
  %v1400 = vsel %vm1368, %v1352, %v1384
  %v1401 = vsel %vm1369, %v1353, %v1385
  %v1402 = vsel %vm1370, %v1354, %v1386
  %v1403 = vsel %vm1371, %v1355, %v1387
  %v1404 = vsel %vm1372, %v1356, %v1388
  %v1405 = vsel %vm1373, %v1357, %v1389
  %v1406 = vmax.f32 %v1390, %v1394
  %v1407 = vmax.f32 %v1391, %v1395
  %v1408 = vmax.f32 %v1392, %v1396
  %v1409 = vmax.f32 %v1393, %v1397
  %v1410 = vmax.f32 %v1398, %v1402
  %v1411 = vmax.f32 %v1399, %v1403
  %v1412 = vmax.f32 %v1400, %v1404
  %v1413 = vmax.f32 %v1401, %v1405
  %v1414 = vmax.f32 %v1406, %v1410
  %v1415 = vmax.f32 %v1407, %v1411
  %v1416 = vmax.f32 %v1408, %v1412
  %v1417 = vmax.f32 %v1409, %v1413
  %v1418 = vpack.c.bf16 %v1415, %v1414
  %v1419 = vpack.c.bf16 %v1417, %v1416
  %v1422 = vunpack.c.l.b16 %v1418
  %v1423 = vunpack.c.h.b16 %v1418
  %v1424 = vunpack.c.l.b16 %v1419
  %v1425 = vunpack.c.h.b16 %v1419
  %v1426 = vpack.c.b16 %v1422, %v1422
  %v1427 = vpack.c.b16 %v1423, %v1423
  %v1428 = vpack.c.b16 %v1424, %v1424
  %v1429 = vpack.c.b16 %v1425, %v1425
  %vm1434 = vcmask 519168
  %1435 = vst.msk [vmem:[%s3] sm:$0xf] %vm1434, %v1426
  %1436 = vst.msk [vmem:[%s3 + $0x4] sm:$0xf] %vm1434, %v1427
  %1437 = vst.msk [vmem:[%s3 + $0x8] sm:$0xf] %vm1434, %v1428
  %1438 = vst.msk [vmem:[%s3 + $0xc] sm:$0xf] %vm1434, %v1429
  // Predicated region
  $region14: #{dann_forward.4} parent=0 // pred_check
    _
  $region15: #{dann_forward.4} parent=0 // pred_check_branch
    %1440 = sbr.rel (0) target = $region17
  $region16: #{dann_forward.4} parent=0 // pred_region
    _
  $region17: #{dann_forward.4} parent=0 // pred_fallthru
    _
  // Predicated region
  $region18: #{dann_forward.4} parent=0 // pred_check
    _
  $region19: #{dann_forward.4} parent=0 // pred_check_branch
    %1442 = sbr.rel (0) target = $region21
  $region20: #{dann_forward.4} parent=0 // pred_region
    _
  $region21: #{dann_forward.4} parent=0 // pred_fallthru
    _

// kernel: dann_forward.5
$region0: #{dann_forward.5}
  #allocation0 [shape = 'u32[]', space=smem, size = 0x4, offset = 0x4, fixed_abs, tag = 'smem constant byte address 0x4 - core index']
  #allocation1 [shape = 'u32[144,128]{1,0:T(1,128)}', space=vmem, size = 0x12000, scoped, tag = 'internal scratch']
  %s0 = inlined_call_operand.vmem [shape: bf16[2,1024], index: 0, kind: input, shape index: {}]
  %s1 = inlined_call_operand.vmem [shape: bf16[1024,512], index: 1, kind: input, shape index: {}]
  %s2 = inlined_call_operand.vmem [shape: f32[1,512], index: 2, kind: input, shape index: {}]
  %s3 = inlined_call_operand.vmem [shape: bf16[512,11], index: 3, kind: input, shape index: {}]
  %s4 = inlined_call_operand.vmem [shape: f32[1,11], index: 4, kind: input, shape index: {}]
  %s5 = inlined_call_operand.vmem [shape: f32[2,11], index: 5, kind: output, shape index: {}]
  %s6 = sld [smem:[#allocation0]]
  $region30: #{dann_forward.5} parent=0
    _
  %s8 = ssub.s32 1, %s6
  %s9 = scalar_select 0, %s8, %s6
  // Predicated region
  $region2: #{dann_forward.5} parent=0 // pred_check
    _
  $region3: #{dann_forward.5} parent=0 // pred_check_branch
    %11 = sbr.rel (0) target = $region5
  $region4: #{dann_forward.5} parent=0 // pred_region
    _
  $region5: #{dann_forward.5} parent=0 // pred_fallthru
    _
  // Predicated region
  $region6: #{dann_forward.5} parent=0 // pred_check
    _
  $region7: #{dann_forward.5} parent=0 // pred_check_branch
    %13 = sbr.rel (0) target = $region9
  $region8: #{dann_forward.5} parent=0 // pred_region
    _
  $region9: #{dann_forward.5} parent=0 // pred_fallthru
    _
  // Predicated region
  $region10: #{dann_forward.5} parent=0 // pred_check
    _
  $region11: #{dann_forward.5} parent=0 // pred_check_branch
    %15 = sbr.rel (0) target = $region13
  $region12: #{dann_forward.5} parent=0 // pred_region
    _
  $region13: #{dann_forward.5} parent=0 // pred_fallthru
    _
  // Predicated region
  $region14: #{dann_forward.5} parent=0 // pred_check
    _
  $region15: #{dann_forward.5} parent=0 // pred_check_branch
    %17 = sbr.rel (0) target = $region17
  $region16: #{dann_forward.5} parent=0 // pred_region
    _
  $region17: #{dann_forward.5} parent=0 // pred_fallthru
    _
  // Predicated region
  $region18: #{dann_forward.5} parent=0 // pred_check
    _
  $region19: #{dann_forward.5} parent=0 // pred_check_branch
    %19 = sbr.rel (0) target = $region21
  $region20: #{dann_forward.5} parent=0 // pred_region
    _
  $region21: #{dann_forward.5} parent=0 // pred_fallthru
    _
  %v21 = vld [vmem:[%s0] sm:$0xff]
  %v22 = vld [vmem:[%s1] sm:$0xff]
  %v23 = vld [vmem:[%s1 + $0x8] sm:$0xff]
  %v24 = vld [vmem:[%s1 + $0x10] sm:$0xff]
  %v25 = vld [vmem:[%s1 + $0x18] sm:$0xff]
  %v26 = vld [vmem:[%s1 + $0x20] sm:$0xff]
  %v27 = vld [vmem:[%s1 + $0x28] sm:$0xff]
  %v28 = vld [vmem:[%s1 + $0x30] sm:$0xff]
  %v29 = vld [vmem:[%s1 + $0x38] sm:$0xff]
  %v30 = vld [vmem:[%s1 + $0x40] sm:$0xff]
  %v31 = vld [vmem:[%s1 + $0x48] sm:$0xff]
  %v32 = vld [vmem:[%s1 + $0x50] sm:$0xff]
  %v33 = vld [vmem:[%s1 + $0x58] sm:$0xff]
  %v34 = vld [vmem:[%s1 + $0x60] sm:$0xff]
  %v35 = vld [vmem:[%s1 + $0x68] sm:$0xff]
  %v36 = vld [vmem:[%s1 + $0x70] sm:$0xff]
  %v37 = vld [vmem:[%s1 + $0x78] sm:$0xff]
  %v38 = vld [vmem:[%s1 + $0x80] sm:$0xff]
  %v39 = vld [vmem:[%s1 + $0x88] sm:$0xff]
  %v40 = vld [vmem:[%s1 + $0x90] sm:$0xff]
  %v41 = vld [vmem:[%s1 + $0x98] sm:$0xff]
  %v42 = vld [vmem:[%s1 + $0xa0] sm:$0xff]
  %v43 = vld [vmem:[%s1 + $0xa8] sm:$0xff]
  %v44 = vld [vmem:[%s1 + $0xb0] sm:$0xff]
  %v45 = vld [vmem:[%s1 + $0xb8] sm:$0xff]
  %v46 = vld [vmem:[%s1 + $0xc0] sm:$0xff]
  %v47 = vld [vmem:[%s1 + $0xc8] sm:$0xff]
  %v48 = vld [vmem:[%s1 + $0xd0] sm:$0xff]
  %v49 = vld [vmem:[%s1 + $0xd8] sm:$0xff]
  %v50 = vld [vmem:[%s1 + $0xe0] sm:$0xff]
  %v51 = vld [vmem:[%s1 + $0xe8] sm:$0xff]
  %v52 = vld [vmem:[%s1 + $0xf0] sm:$0xff]
  %v53 = vld [vmem:[%s1 + $0xf8] sm:$0xff]
  %v54 = vld [vmem:[%s1 + $0x100] sm:$0xff]
  %v55 = vld [vmem:[%s1 + $0x108] sm:$0xff]
  %v56 = vld [vmem:[%s1 + $0x110] sm:$0xff]
  %v57 = vld [vmem:[%s1 + $0x118] sm:$0xff]
  %v58 = vld [vmem:[%s1 + $0x120] sm:$0xff]
  %v59 = vld [vmem:[%s1 + $0x128] sm:$0xff]
  %v60 = vld [vmem:[%s1 + $0x130] sm:$0xff]
  %v61 = vld [vmem:[%s1 + $0x138] sm:$0xff]
  %v62 = vld [vmem:[%s1 + $0x140] sm:$0xff]
  %v63 = vld [vmem:[%s1 + $0x148] sm:$0xff]
  %v64 = vld [vmem:[%s1 + $0x150] sm:$0xff]
  %v65 = vld [vmem:[%s1 + $0x158] sm:$0xff]
  %v66 = vld [vmem:[%s1 + $0x160] sm:$0xff]
  %v67 = vld [vmem:[%s1 + $0x168] sm:$0xff]
  %v68 = vld [vmem:[%s1 + $0x170] sm:$0xff]
  %v69 = vld [vmem:[%s1 + $0x178] sm:$0xff]
  %v70 = vld [vmem:[%s1 + $0x180] sm:$0xff]
  %v71 = vld [vmem:[%s1 + $0x188] sm:$0xff]
  %v72 = vld [vmem:[%s1 + $0x190] sm:$0xff]
  %v73 = vld [vmem:[%s1 + $0x198] sm:$0xff]
  %v74 = vld [vmem:[%s1 + $0x1a0] sm:$0xff]
  %v75 = vld [vmem:[%s1 + $0x1a8] sm:$0xff]
  %v76 = vld [vmem:[%s1 + $0x1b0] sm:$0xff]
  %v77 = vld [vmem:[%s1 + $0x1b8] sm:$0xff]
  %v78 = vld [vmem:[%s1 + $0x1c0] sm:$0xff]
  %v79 = vld [vmem:[%s1 + $0x1c8] sm:$0xff]
  %v80 = vld [vmem:[%s1 + $0x1d0] sm:$0xff]
  %v81 = vld [vmem:[%s1 + $0x1d8] sm:$0xff]
  %v82 = vld [vmem:[%s1 + $0x1e0] sm:$0xff]
  %v83 = vld [vmem:[%s1 + $0x1e8] sm:$0xff]
  %v84 = vld [vmem:[%s1 + $0x1f0] sm:$0xff]
  %v85 = vld [vmem:[%s1 + $0x1f8] sm:$0xff]
  %v86 = vld [vmem:[%s1 + $0x200] sm:$0xff]
  %v87 = vld [vmem:[%s1 + $0x208] sm:$0xff]
  %v88 = vld [vmem:[%s1 + $0x210] sm:$0xff]
  %v89 = vld [vmem:[%s1 + $0x218] sm:$0xff]
  %v90 = vld [vmem:[%s1 + $0x220] sm:$0xff]
  %v91 = vld [vmem:[%s1 + $0x228] sm:$0xff]
  %v92 = vld [vmem:[%s1 + $0x230] sm:$0xff]
  %v93 = vld [vmem:[%s1 + $0x238] sm:$0xff]
  %v94 = vld [vmem:[%s1 + $0x240] sm:$0xff]
  %v95 = vld [vmem:[%s1 + $0x248] sm:$0xff]
  %v96 = vld [vmem:[%s1 + $0x250] sm:$0xff]
  %v97 = vld [vmem:[%s1 + $0x258] sm:$0xff]
  %v98 = vld [vmem:[%s1 + $0x260] sm:$0xff]
  %v99 = vld [vmem:[%s1 + $0x268] sm:$0xff]
  %v100 = vld [vmem:[%s1 + $0x270] sm:$0xff]
  %v101 = vld [vmem:[%s1 + $0x278] sm:$0xff]
  %v102 = vld [vmem:[%s1 + $0x280] sm:$0xff]
  %v103 = vld [vmem:[%s1 + $0x288] sm:$0xff]
  %v104 = vld [vmem:[%s1 + $0x290] sm:$0xff]
  %v105 = vld [vmem:[%s1 + $0x298] sm:$0xff]
  %v106 = vld [vmem:[%s1 + $0x2a0] sm:$0xff]
  %v107 = vld [vmem:[%s1 + $0x2a8] sm:$0xff]
  %v108 = vld [vmem:[%s1 + $0x2b0] sm:$0xff]
  %v109 = vld [vmem:[%s1 + $0x2b8] sm:$0xff]
  %v110 = vld [vmem:[%s1 + $0x2c0] sm:$0xff]
  %v111 = vld [vmem:[%s1 + $0x2c8] sm:$0xff]
  %v112 = vld [vmem:[%s1 + $0x2d0] sm:$0xff]
  %v113 = vld [vmem:[%s1 + $0x2d8] sm:$0xff]
  %v114 = vld [vmem:[%s1 + $0x2e0] sm:$0xff]
  %v115 = vld [vmem:[%s1 + $0x2e8] sm:$0xff]
  %v116 = vld [vmem:[%s1 + $0x2f0] sm:$0xff]
  %v117 = vld [vmem:[%s1 + $0x2f8] sm:$0xff]
  %v118 = vld [vmem:[%s1 + $0x300] sm:$0xff]
  %v119 = vld [vmem:[%s1 + $0x308] sm:$0xff]
  %v120 = vld [vmem:[%s1 + $0x310] sm:$0xff]
  %v121 = vld [vmem:[%s1 + $0x318] sm:$0xff]
  %v122 = vld [vmem:[%s1 + $0x320] sm:$0xff]
  %v123 = vld [vmem:[%s1 + $0x328] sm:$0xff]
  %v124 = vld [vmem:[%s1 + $0x330] sm:$0xff]
  %v125 = vld [vmem:[%s1 + $0x338] sm:$0xff]
  %v126 = vld [vmem:[%s1 + $0x340] sm:$0xff]
  %v127 = vld [vmem:[%s1 + $0x348] sm:$0xff]
  %v128 = vld [vmem:[%s1 + $0x350] sm:$0xff]
  %v129 = vld [vmem:[%s1 + $0x358] sm:$0xff]
  %v130 = vld [vmem:[%s1 + $0x360] sm:$0xff]
  %v131 = vld [vmem:[%s1 + $0x368] sm:$0xff]
  %v132 = vld [vmem:[%s1 + $0x370] sm:$0xff]
  %v133 = vld [vmem:[%s1 + $0x378] sm:$0xff]
  %v134 = vld [vmem:[%s1 + $0x380] sm:$0xff]
  %v135 = vld [vmem:[%s1 + $0x388] sm:$0xff]
  %v136 = vld [vmem:[%s1 + $0x390] sm:$0xff]
  %v137 = vld [vmem:[%s1 + $0x398] sm:$0xff]
  %v138 = vld [vmem:[%s1 + $0x3a0] sm:$0xff]
  %v139 = vld [vmem:[%s1 + $0x3a8] sm:$0xff]
  %v140 = vld [vmem:[%s1 + $0x3b0] sm:$0xff]
  %v141 = vld [vmem:[%s1 + $0x3b8] sm:$0xff]
  %v142 = vld [vmem:[%s1 + $0x3c0] sm:$0xff]
  %v143 = vld [vmem:[%s1 + $0x3c8] sm:$0xff]
  %v144 = vld [vmem:[%s1 + $0x3d0] sm:$0xff]
  %v145 = vld [vmem:[%s1 + $0x3d8] sm:$0xff]
  %v146 = vld [vmem:[%s1 + $0x3e0] sm:$0xff]
  %v147 = vld [vmem:[%s1 + $0x3e8] sm:$0xff]
  %v148 = vld [vmem:[%s1 + $0x3f0] sm:$0xff]
  %v149 = vld [vmem:[%s1 + $0x3f8] sm:$0xff]
  %v150 = vld [vmem:[%s1 + $0x400] sm:$0xff]
  %v151 = vld [vmem:[%s1 + $0x408] sm:$0xff]
  %v152 = vld [vmem:[%s1 + $0x410] sm:$0xff]
  %v153 = vld [vmem:[%s1 + $0x418] sm:$0xff]
  %v154 = vld [vmem:[%s1 + $0x420] sm:$0xff]
  %v155 = vld [vmem:[%s1 + $0x428] sm:$0xff]
  %v156 = vld [vmem:[%s1 + $0x430] sm:$0xff]
  %v157 = vld [vmem:[%s1 + $0x438] sm:$0xff]
  %v158 = vld [vmem:[%s1 + $0x440] sm:$0xff]
  %v159 = vld [vmem:[%s1 + $0x448] sm:$0xff]
  %v160 = vld [vmem:[%s1 + $0x450] sm:$0xff]
  %v161 = vld [vmem:[%s1 + $0x458] sm:$0xff]
  %v162 = vld [vmem:[%s1 + $0x460] sm:$0xff]
  %v163 = vld [vmem:[%s1 + $0x468] sm:$0xff]
  %v164 = vld [vmem:[%s1 + $0x470] sm:$0xff]
  %v165 = vld [vmem:[%s1 + $0x478] sm:$0xff]
  %v166 = vld [vmem:[%s1 + $0x480] sm:$0xff]
  %v167 = vld [vmem:[%s1 + $0x488] sm:$0xff]
  %v168 = vld [vmem:[%s1 + $0x490] sm:$0xff]
  %v169 = vld [vmem:[%s1 + $0x498] sm:$0xff]
  %v170 = vld [vmem:[%s1 + $0x4a0] sm:$0xff]
  %v171 = vld [vmem:[%s1 + $0x4a8] sm:$0xff]
  %v172 = vld [vmem:[%s1 + $0x4b0] sm:$0xff]
  %v173 = vld [vmem:[%s1 + $0x4b8] sm:$0xff]
  %v174 = vld [vmem:[%s1 + $0x4c0] sm:$0xff]
  %v175 = vld [vmem:[%s1 + $0x4c8] sm:$0xff]
  %v176 = vld [vmem:[%s1 + $0x4d0] sm:$0xff]
  %v177 = vld [vmem:[%s1 + $0x4d8] sm:$0xff]
  %v178 = vld [vmem:[%s1 + $0x4e0] sm:$0xff]
  %v179 = vld [vmem:[%s1 + $0x4e8] sm:$0xff]
  %v180 = vld [vmem:[%s1 + $0x4f0] sm:$0xff]
  %v181 = vld [vmem:[%s1 + $0x4f8] sm:$0xff]
  %v182 = vld [vmem:[%s1 + $0x500] sm:$0xff]
  %v183 = vld [vmem:[%s1 + $0x508] sm:$0xff]
  %v184 = vld [vmem:[%s1 + $0x510] sm:$0xff]
  %v185 = vld [vmem:[%s1 + $0x518] sm:$0xff]
  %v186 = vld [vmem:[%s1 + $0x520] sm:$0xff]
  %v187 = vld [vmem:[%s1 + $0x528] sm:$0xff]
  %v188 = vld [vmem:[%s1 + $0x530] sm:$0xff]
  %v189 = vld [vmem:[%s1 + $0x538] sm:$0xff]
  %v190 = vld [vmem:[%s1 + $0x540] sm:$0xff]
  %v191 = vld [vmem:[%s1 + $0x548] sm:$0xff]
  %v192 = vld [vmem:[%s1 + $0x550] sm:$0xff]
  %v193 = vld [vmem:[%s1 + $0x558] sm:$0xff]
  %v194 = vld [vmem:[%s1 + $0x560] sm:$0xff]
  %v195 = vld [vmem:[%s1 + $0x568] sm:$0xff]
  %v196 = vld [vmem:[%s1 + $0x570] sm:$0xff]
  %v197 = vld [vmem:[%s1 + $0x578] sm:$0xff]
  %v198 = vld [vmem:[%s1 + $0x580] sm:$0xff]
  %v199 = vld [vmem:[%s1 + $0x588] sm:$0xff]
  %v200 = vld [vmem:[%s1 + $0x590] sm:$0xff]
  %v201 = vld [vmem:[%s1 + $0x598] sm:$0xff]
  %v202 = vld [vmem:[%s1 + $0x5a0] sm:$0xff]
  %v203 = vld [vmem:[%s1 + $0x5a8] sm:$0xff]
  %v204 = vld [vmem:[%s1 + $0x5b0] sm:$0xff]
  %v205 = vld [vmem:[%s1 + $0x5b8] sm:$0xff]
  %v206 = vld [vmem:[%s1 + $0x5c0] sm:$0xff]
  %v207 = vld [vmem:[%s1 + $0x5c8] sm:$0xff]
  %v208 = vld [vmem:[%s1 + $0x5d0] sm:$0xff]
  %v209 = vld [vmem:[%s1 + $0x5d8] sm:$0xff]
  %v210 = vld [vmem:[%s1 + $0x5e0] sm:$0xff]
  %v211 = vld [vmem:[%s1 + $0x5e8] sm:$0xff]
  %v212 = vld [vmem:[%s1 + $0x5f0] sm:$0xff]
  %v213 = vld [vmem:[%s1 + $0x5f8] sm:$0xff]
  %v214 = vld [vmem:[%s1 + $0x600] sm:$0xff]
  %v215 = vld [vmem:[%s1 + $0x608] sm:$0xff]
  %v216 = vld [vmem:[%s1 + $0x610] sm:$0xff]
  %v217 = vld [vmem:[%s1 + $0x618] sm:$0xff]
  %v218 = vld [vmem:[%s1 + $0x620] sm:$0xff]
  %v219 = vld [vmem:[%s1 + $0x628] sm:$0xff]
  %v220 = vld [vmem:[%s1 + $0x630] sm:$0xff]
  %v221 = vld [vmem:[%s1 + $0x638] sm:$0xff]
  %v222 = vld [vmem:[%s1 + $0x640] sm:$0xff]
  %v223 = vld [vmem:[%s1 + $0x648] sm:$0xff]
  %v224 = vld [vmem:[%s1 + $0x650] sm:$0xff]
  %v225 = vld [vmem:[%s1 + $0x658] sm:$0xff]
  %v226 = vld [vmem:[%s1 + $0x660] sm:$0xff]
  %v227 = vld [vmem:[%s1 + $0x668] sm:$0xff]
  %v228 = vld [vmem:[%s1 + $0x670] sm:$0xff]
  %v229 = vld [vmem:[%s1 + $0x678] sm:$0xff]
  %v230 = vld [vmem:[%s1 + $0x680] sm:$0xff]
  %v231 = vld [vmem:[%s1 + $0x688] sm:$0xff]
  %v232 = vld [vmem:[%s1 + $0x690] sm:$0xff]
  %v233 = vld [vmem:[%s1 + $0x698] sm:$0xff]
  %v234 = vld [vmem:[%s1 + $0x6a0] sm:$0xff]
  %v235 = vld [vmem:[%s1 + $0x6a8] sm:$0xff]
  %v236 = vld [vmem:[%s1 + $0x6b0] sm:$0xff]
  %v237 = vld [vmem:[%s1 + $0x6b8] sm:$0xff]
  %v238 = vld [vmem:[%s1 + $0x6c0] sm:$0xff]
  %v239 = vld [vmem:[%s1 + $0x6c8] sm:$0xff]
  %v240 = vld [vmem:[%s1 + $0x6d0] sm:$0xff]
  %v241 = vld [vmem:[%s1 + $0x6d8] sm:$0xff]
  %v242 = vld [vmem:[%s1 + $0x6e0] sm:$0xff]
  %v243 = vld [vmem:[%s1 + $0x6e8] sm:$0xff]
  %v244 = vld [vmem:[%s1 + $0x6f0] sm:$0xff]
  %v245 = vld [vmem:[%s1 + $0x6f8] sm:$0xff]
  %v246 = vld [vmem:[%s1 + $0x700] sm:$0xff]
  %v247 = vld [vmem:[%s1 + $0x708] sm:$0xff]
  %v248 = vld [vmem:[%s1 + $0x710] sm:$0xff]
  %v249 = vld [vmem:[%s1 + $0x718] sm:$0xff]
  %v250 = vld [vmem:[%s1 + $0x720] sm:$0xff]
  %v251 = vld [vmem:[%s1 + $0x728] sm:$0xff]
  %v252 = vld [vmem:[%s1 + $0x730] sm:$0xff]
  %v253 = vld [vmem:[%s1 + $0x738] sm:$0xff]
  %v254 = vld [vmem:[%s1 + $0x740] sm:$0xff]
  %v255 = vld [vmem:[%s1 + $0x748] sm:$0xff]
  %v256 = vld [vmem:[%s1 + $0x750] sm:$0xff]
  %v257 = vld [vmem:[%s1 + $0x758] sm:$0xff]
  %v258 = vld [vmem:[%s1 + $0x760] sm:$0xff]
  %v259 = vld [vmem:[%s1 + $0x768] sm:$0xff]
  %v260 = vld [vmem:[%s1 + $0x770] sm:$0xff]
  %v261 = vld [vmem:[%s1 + $0x778] sm:$0xff]
  %v262 = vld [vmem:[%s1 + $0x780] sm:$0xff]
  %v263 = vld [vmem:[%s1 + $0x788] sm:$0xff]
  %v264 = vld [vmem:[%s1 + $0x790] sm:$0xff]
  %v265 = vld [vmem:[%s1 + $0x798] sm:$0xff]
  %v266 = vld [vmem:[%s1 + $0x7a0] sm:$0xff]
  %v267 = vld [vmem:[%s1 + $0x7a8] sm:$0xff]
  %v268 = vld [vmem:[%s1 + $0x7b0] sm:$0xff]
  %v269 = vld [vmem:[%s1 + $0x7b8] sm:$0xff]
  %v270 = vld [vmem:[%s1 + $0x7c0] sm:$0xff]
  %v271 = vld [vmem:[%s1 + $0x7c8] sm:$0xff]
  %v272 = vld [vmem:[%s1 + $0x7d0] sm:$0xff]
  %v273 = vld [vmem:[%s1 + $0x7d8] sm:$0xff]
  %v274 = vld [vmem:[%s1 + $0x7e0] sm:$0xff]
  %v275 = vld [vmem:[%s1 + $0x7e8] sm:$0xff]
  %v276 = vld [vmem:[%s1 + $0x7f0] sm:$0xff]
  %v277 = vld [vmem:[%s1 + $0x7f8] sm:$0xff]
  %v278 = vld [vmem:[%s2] sm:$0xf]
  %v280 = vlaneseq
  %v281 = vshrl.u32 %v280, 7
  %v282 = vsub.s32 0, %v281
  %v283 = vrot.slane %v278, %v282
  %v284 = vlaneseq
  %v285 = vshrl.u32 %v284, 7
  %v286 = vsub.s32 1, %v285
  %v287 = vrot.slane %v278, %v286
  %v288 = vlaneseq
  %v289 = vshrl.u32 %v288, 7
  %v290 = vsub.s32 2, %v289
  %v291 = vrot.slane %v278, %v290
  %v292 = vlaneseq
  %v293 = vshrl.u32 %v292, 7
  %v294 = vsub.s32 3, %v293
  %v295 = vrot.slane %v278, %v294
  %v301 = vcombine.high %v21, %v21
  %v303 = vunpack.c.l.s4 1966171168
  %v304 = vunpack.c.0.s8 %v303
  %v305 = vlaneseq
  %v306 = vshrl.u32 %v305, 7
  %v307 = vsub.s32 %v304, %v306
  %v308 = vrot.slane %v21, %v307
  %v310 = vunpack.c.l.s4 1966171168
  %v311 = vunpack.c.0.s8 %v310
  %v312 = vlaneseq
  %v313 = vshrl.u32 %v312, 7
  %v314 = vsub.s32 %v311, %v313
  %v315 = vrot.slane %v301, %v314
  %v316 = vcombine.high %v308, %v308
  %v317 = vcombine.high %v315, %v315
  %v319 = vunpack.c.l.s4 1966171168
  %v320 = vunpack.c.0.s8 %v319
  %v321 = vlaneseq
  %v322 = vshrl.u32 %v321, 7
  %v323 = vsub.s32 %v320, %v322
  %v324 = vrot.slane %v308, %v323
  %v326 = vunpack.c.l.s4 1966171168
  %v327 = vunpack.c.0.s8 %v326
  %v328 = vlaneseq
  %v329 = vshrl.u32 %v328, 7
  %v330 = vsub.s32 %v327, %v329
  %v331 = vrot.slane %v315, %v330
  %v333 = vunpack.c.l.s4 1966171168
  %v334 = vunpack.c.0.s8 %v333
  %v335 = vlaneseq
  %v336 = vshrl.u32 %v335, 7
  %v337 = vsub.s32 %v334, %v336
  %v338 = vrot.slane %v316, %v337
  %v340 = vunpack.c.l.s4 1966171168
  %v341 = vunpack.c.0.s8 %v340
  %v342 = vlaneseq
  %v343 = vshrl.u32 %v342, 7
  %v344 = vsub.s32 %v341, %v343
  %v345 = vrot.slane %v317, %v344
  %v346 = vcombine.high %v324, %v324
  %v347 = vcombine.high %v331, %v331
  %v348 = vcombine.high %v338, %v338
  %v349 = vcombine.high %v345, %v345
  %v614 = vunpack.c.l.b16 %v22
  %v615 = vunpack.c.h.b16 %v22
  %v616 = vunpack.c.l.b16 %v23
  %v617 = vunpack.c.h.b16 %v23
  %v618 = vunpack.c.l.b16 %v24
  %v619 = vunpack.c.h.b16 %v24
  %v620 = vunpack.c.l.b16 %v25
  %v621 = vunpack.c.h.b16 %v25
  %v622 = vunpack.c.l.b16 %v26
  %v623 = vunpack.c.h.b16 %v26
  %v624 = vunpack.c.l.b16 %v27
  %v625 = vunpack.c.h.b16 %v27
  %v626 = vunpack.c.l.b16 %v28
  %v627 = vunpack.c.h.b16 %v28
  %v628 = vunpack.c.l.b16 %v29
  %v629 = vunpack.c.h.b16 %v29
  %v630 = vunpack.c.l.b16 %v30
  %v631 = vunpack.c.h.b16 %v30
  %v632 = vunpack.c.l.b16 %v31
  %v633 = vunpack.c.h.b16 %v31
  %v634 = vunpack.c.l.b16 %v32
  %v635 = vunpack.c.h.b16 %v32
  %v636 = vunpack.c.l.b16 %v33
  %v637 = vunpack.c.h.b16 %v33
  %v638 = vunpack.c.l.b16 %v34
  %v639 = vunpack.c.h.b16 %v34
  %v640 = vunpack.c.l.b16 %v35
  %v641 = vunpack.c.h.b16 %v35
  %v642 = vunpack.c.l.b16 %v36
  %v643 = vunpack.c.h.b16 %v36
  %v644 = vunpack.c.l.b16 %v37
  %v645 = vunpack.c.h.b16 %v37
  %v646 = vunpack.c.l.b16 %v38
  %v647 = vunpack.c.h.b16 %v38
  %v648 = vunpack.c.l.b16 %v39
  %v649 = vunpack.c.h.b16 %v39
  %v650 = vunpack.c.l.b16 %v40
  %v651 = vunpack.c.h.b16 %v40
  %v652 = vunpack.c.l.b16 %v41
  %v653 = vunpack.c.h.b16 %v41
  %v654 = vunpack.c.l.b16 %v42
  %v655 = vunpack.c.h.b16 %v42
  %v656 = vunpack.c.l.b16 %v43
  %v657 = vunpack.c.h.b16 %v43
  %v658 = vunpack.c.l.b16 %v44
  %v659 = vunpack.c.h.b16 %v44
  %v660 = vunpack.c.l.b16 %v45
  %v661 = vunpack.c.h.b16 %v45
  %v662 = vunpack.c.l.b16 %v46
  %v663 = vunpack.c.h.b16 %v46
  %v664 = vunpack.c.l.b16 %v47
  %v665 = vunpack.c.h.b16 %v47
  %v666 = vunpack.c.l.b16 %v48
  %v667 = vunpack.c.h.b16 %v48
  %v668 = vunpack.c.l.b16 %v49
  %v669 = vunpack.c.h.b16 %v49
  %v670 = vunpack.c.l.b16 %v50
  %v671 = vunpack.c.h.b16 %v50
  %v672 = vunpack.c.l.b16 %v51
  %v673 = vunpack.c.h.b16 %v51
  %v674 = vunpack.c.l.b16 %v52
  %v675 = vunpack.c.h.b16 %v52
  %v676 = vunpack.c.l.b16 %v53
  %v677 = vunpack.c.h.b16 %v53
  %v678 = vunpack.c.l.b16 %v54
  %v679 = vunpack.c.h.b16 %v54
  %v680 = vunpack.c.l.b16 %v55
  %v681 = vunpack.c.h.b16 %v55
  %v682 = vunpack.c.l.b16 %v56
  %v683 = vunpack.c.h.b16 %v56
  %v684 = vunpack.c.l.b16 %v57
  %v685 = vunpack.c.h.b16 %v57
  %v686 = vunpack.c.l.b16 %v58
  %v687 = vunpack.c.h.b16 %v58
  %v688 = vunpack.c.l.b16 %v59
  %v689 = vunpack.c.h.b16 %v59
  %v690 = vunpack.c.l.b16 %v60
  %v691 = vunpack.c.h.b16 %v60
  %v692 = vunpack.c.l.b16 %v61
  %v693 = vunpack.c.h.b16 %v61
  %v694 = vunpack.c.l.b16 %v62
  %v695 = vunpack.c.h.b16 %v62
  %v696 = vunpack.c.l.b16 %v63
  %v697 = vunpack.c.h.b16 %v63
  %v698 = vunpack.c.l.b16 %v64
  %v699 = vunpack.c.h.b16 %v64
  %v700 = vunpack.c.l.b16 %v65
  %v701 = vunpack.c.h.b16 %v65
  %v702 = vunpack.c.l.b16 %v66
  %v703 = vunpack.c.h.b16 %v66
  %v704 = vunpack.c.l.b16 %v67
  %v705 = vunpack.c.h.b16 %v67
  %v706 = vunpack.c.l.b16 %v68
  %v707 = vunpack.c.h.b16 %v68
  %v708 = vunpack.c.l.b16 %v69
  %v709 = vunpack.c.h.b16 %v69
  %v710 = vunpack.c.l.b16 %v70
  %v711 = vunpack.c.h.b16 %v70
  %v712 = vunpack.c.l.b16 %v71
  %v713 = vunpack.c.h.b16 %v71
  %v714 = vunpack.c.l.b16 %v72
  %v715 = vunpack.c.h.b16 %v72
  %v716 = vunpack.c.l.b16 %v73
  %v717 = vunpack.c.h.b16 %v73
  %v718 = vunpack.c.l.b16 %v74
  %v719 = vunpack.c.h.b16 %v74
  %v720 = vunpack.c.l.b16 %v75
  %v721 = vunpack.c.h.b16 %v75
  %v722 = vunpack.c.l.b16 %v76
  %v723 = vunpack.c.h.b16 %v76
  %v724 = vunpack.c.l.b16 %v77
  %v725 = vunpack.c.h.b16 %v77
  %v726 = vunpack.c.l.b16 %v78
  %v727 = vunpack.c.h.b16 %v78
  %v728 = vunpack.c.l.b16 %v79
  %v729 = vunpack.c.h.b16 %v79
  %v730 = vunpack.c.l.b16 %v80
  %v731 = vunpack.c.h.b16 %v80
  %v732 = vunpack.c.l.b16 %v81
  %v733 = vunpack.c.h.b16 %v81
  %v734 = vunpack.c.l.b16 %v82
  %v735 = vunpack.c.h.b16 %v82
  %v736 = vunpack.c.l.b16 %v83
  %v737 = vunpack.c.h.b16 %v83
  %v738 = vunpack.c.l.b16 %v84
  %v739 = vunpack.c.h.b16 %v84
  %v740 = vunpack.c.l.b16 %v85
  %v741 = vunpack.c.h.b16 %v85
  %v742 = vunpack.c.l.b16 %v86
  %v743 = vunpack.c.h.b16 %v86
  %v744 = vunpack.c.l.b16 %v87
  %v745 = vunpack.c.h.b16 %v87
  %v746 = vunpack.c.l.b16 %v88
  %v747 = vunpack.c.h.b16 %v88
  %v748 = vunpack.c.l.b16 %v89
  %v749 = vunpack.c.h.b16 %v89
  %v750 = vunpack.c.l.b16 %v90
  %v751 = vunpack.c.h.b16 %v90
  %v752 = vunpack.c.l.b16 %v91
  %v753 = vunpack.c.h.b16 %v91
  %v754 = vunpack.c.l.b16 %v92
  %v755 = vunpack.c.h.b16 %v92
  %v756 = vunpack.c.l.b16 %v93
  %v757 = vunpack.c.h.b16 %v93
  %v758 = vunpack.c.l.b16 %v94
  %v759 = vunpack.c.h.b16 %v94
  %v760 = vunpack.c.l.b16 %v95
  %v761 = vunpack.c.h.b16 %v95
  %v762 = vunpack.c.l.b16 %v96
  %v763 = vunpack.c.h.b16 %v96
  %v764 = vunpack.c.l.b16 %v97
  %v765 = vunpack.c.h.b16 %v97
  %v766 = vunpack.c.l.b16 %v98
  %v767 = vunpack.c.h.b16 %v98
  %v768 = vunpack.c.l.b16 %v99
  %v769 = vunpack.c.h.b16 %v99
  %v770 = vunpack.c.l.b16 %v100
  %v771 = vunpack.c.h.b16 %v100
  %v772 = vunpack.c.l.b16 %v101
  %v773 = vunpack.c.h.b16 %v101
  %v774 = vunpack.c.l.b16 %v102
  %v775 = vunpack.c.h.b16 %v102
  %v776 = vunpack.c.l.b16 %v103
  %v777 = vunpack.c.h.b16 %v103
  %v778 = vunpack.c.l.b16 %v104
  %v779 = vunpack.c.h.b16 %v104
  %v780 = vunpack.c.l.b16 %v105
  %v781 = vunpack.c.h.b16 %v105
  %v782 = vunpack.c.l.b16 %v106
  %v783 = vunpack.c.h.b16 %v106
  %v784 = vunpack.c.l.b16 %v107
  %v785 = vunpack.c.h.b16 %v107
  %v786 = vunpack.c.l.b16 %v108
  %v787 = vunpack.c.h.b16 %v108
  %v788 = vunpack.c.l.b16 %v109
  %v789 = vunpack.c.h.b16 %v109
  %v790 = vunpack.c.l.b16 %v110
  %v791 = vunpack.c.h.b16 %v110
  %v792 = vunpack.c.l.b16 %v111
  %v793 = vunpack.c.h.b16 %v111
  %v794 = vunpack.c.l.b16 %v112
  %v795 = vunpack.c.h.b16 %v112
  %v796 = vunpack.c.l.b16 %v113
  %v797 = vunpack.c.h.b16 %v113
  %v798 = vunpack.c.l.b16 %v114
  %v799 = vunpack.c.h.b16 %v114
  %v800 = vunpack.c.l.b16 %v115
  %v801 = vunpack.c.h.b16 %v115
  %v802 = vunpack.c.l.b16 %v116
  %v803 = vunpack.c.h.b16 %v116
  %v804 = vunpack.c.l.b16 %v117
  %v805 = vunpack.c.h.b16 %v117
  %v806 = vunpack.c.l.b16 %v118
  %v807 = vunpack.c.h.b16 %v118
  %v808 = vunpack.c.l.b16 %v119
  %v809 = vunpack.c.h.b16 %v119
  %v810 = vunpack.c.l.b16 %v120
  %v811 = vunpack.c.h.b16 %v120
  %v812 = vunpack.c.l.b16 %v121
  %v813 = vunpack.c.h.b16 %v121
  %v814 = vunpack.c.l.b16 %v122
  %v815 = vunpack.c.h.b16 %v122
  %v816 = vunpack.c.l.b16 %v123
  %v817 = vunpack.c.h.b16 %v123
  %v818 = vunpack.c.l.b16 %v124
  %v819 = vunpack.c.h.b16 %v124
  %v820 = vunpack.c.l.b16 %v125
  %v821 = vunpack.c.h.b16 %v125
  %v822 = vunpack.c.l.b16 %v126
  %v823 = vunpack.c.h.b16 %v126
  %v824 = vunpack.c.l.b16 %v127
  %v825 = vunpack.c.h.b16 %v127
  %v826 = vunpack.c.l.b16 %v128
  %v827 = vunpack.c.h.b16 %v128
  %v828 = vunpack.c.l.b16 %v129
  %v829 = vunpack.c.h.b16 %v129
  %v830 = vunpack.c.l.b16 %v130
  %v831 = vunpack.c.h.b16 %v130
  %v832 = vunpack.c.l.b16 %v131
  %v833 = vunpack.c.h.b16 %v131
  %v834 = vunpack.c.l.b16 %v132
  %v835 = vunpack.c.h.b16 %v132
  %v836 = vunpack.c.l.b16 %v133
  %v837 = vunpack.c.h.b16 %v133
  %v838 = vunpack.c.l.b16 %v134
  %v839 = vunpack.c.h.b16 %v134
  %v840 = vunpack.c.l.b16 %v135
  %v841 = vunpack.c.h.b16 %v135
  %v842 = vunpack.c.l.b16 %v136
  %v843 = vunpack.c.h.b16 %v136
  %v844 = vunpack.c.l.b16 %v137
  %v845 = vunpack.c.h.b16 %v137
  %v846 = vunpack.c.l.b16 %v138
  %v847 = vunpack.c.h.b16 %v138
  %v848 = vunpack.c.l.b16 %v139
  %v849 = vunpack.c.h.b16 %v139
  %v850 = vunpack.c.l.b16 %v140
  %v851 = vunpack.c.h.b16 %v140
  %v852 = vunpack.c.l.b16 %v141
  %v853 = vunpack.c.h.b16 %v141
  %v854 = vunpack.c.l.b16 %v142
  %v855 = vunpack.c.h.b16 %v142
  %v856 = vunpack.c.l.b16 %v143
  %v857 = vunpack.c.h.b16 %v143
  %v858 = vunpack.c.l.b16 %v144
  %v859 = vunpack.c.h.b16 %v144
  %v860 = vunpack.c.l.b16 %v145
  %v861 = vunpack.c.h.b16 %v145
  %v862 = vunpack.c.l.b16 %v146
  %v863 = vunpack.c.h.b16 %v146
  %v864 = vunpack.c.l.b16 %v147
  %v865 = vunpack.c.h.b16 %v147
  %v866 = vunpack.c.l.b16 %v148
  %v867 = vunpack.c.h.b16 %v148
  %v868 = vunpack.c.l.b16 %v149
  %v869 = vunpack.c.h.b16 %v149
  %v870 = vunpack.c.l.b16 %v150
  %v871 = vunpack.c.h.b16 %v150
  %v872 = vunpack.c.l.b16 %v151
  %v873 = vunpack.c.h.b16 %v151
  %v874 = vunpack.c.l.b16 %v152
  %v875 = vunpack.c.h.b16 %v152
  %v876 = vunpack.c.l.b16 %v153
  %v877 = vunpack.c.h.b16 %v153
  %v878 = vunpack.c.l.b16 %v154
  %v879 = vunpack.c.h.b16 %v154
  %v880 = vunpack.c.l.b16 %v155
  %v881 = vunpack.c.h.b16 %v155
  %v882 = vunpack.c.l.b16 %v156
  %v883 = vunpack.c.h.b16 %v156
  %v884 = vunpack.c.l.b16 %v157
  %v885 = vunpack.c.h.b16 %v157
  %v886 = vunpack.c.l.b16 %v158
  %v887 = vunpack.c.h.b16 %v158
  %v888 = vunpack.c.l.b16 %v159
  %v889 = vunpack.c.h.b16 %v159
  %v890 = vunpack.c.l.b16 %v160
  %v891 = vunpack.c.h.b16 %v160
  %v892 = vunpack.c.l.b16 %v161
  %v893 = vunpack.c.h.b16 %v161
  %v894 = vunpack.c.l.b16 %v162
  %v895 = vunpack.c.h.b16 %v162
  %v896 = vunpack.c.l.b16 %v163
  %v897 = vunpack.c.h.b16 %v163
  %v898 = vunpack.c.l.b16 %v164
  %v899 = vunpack.c.h.b16 %v164
  %v900 = vunpack.c.l.b16 %v165
  %v901 = vunpack.c.h.b16 %v165
  %v902 = vunpack.c.l.b16 %v166
  %v903 = vunpack.c.h.b16 %v166
  %v904 = vunpack.c.l.b16 %v167
  %v905 = vunpack.c.h.b16 %v167
  %v906 = vunpack.c.l.b16 %v168
  %v907 = vunpack.c.h.b16 %v168
  %v908 = vunpack.c.l.b16 %v169
  %v909 = vunpack.c.h.b16 %v169
  %v910 = vunpack.c.l.b16 %v170
  %v911 = vunpack.c.h.b16 %v170
  %v912 = vunpack.c.l.b16 %v171
  %v913 = vunpack.c.h.b16 %v171
  %v914 = vunpack.c.l.b16 %v172
  %v915 = vunpack.c.h.b16 %v172
  %v916 = vunpack.c.l.b16 %v173
  %v917 = vunpack.c.h.b16 %v173
  %v918 = vunpack.c.l.b16 %v174
  %v919 = vunpack.c.h.b16 %v174
  %v920 = vunpack.c.l.b16 %v175
  %v921 = vunpack.c.h.b16 %v175
  %v922 = vunpack.c.l.b16 %v176
  %v923 = vunpack.c.h.b16 %v176
  %v924 = vunpack.c.l.b16 %v177
  %v925 = vunpack.c.h.b16 %v177
  %v926 = vunpack.c.l.b16 %v178
  %v927 = vunpack.c.h.b16 %v178
  %v928 = vunpack.c.l.b16 %v179
  %v929 = vunpack.c.h.b16 %v179
  %v930 = vunpack.c.l.b16 %v180
  %v931 = vunpack.c.h.b16 %v180
  %v932 = vunpack.c.l.b16 %v181
  %v933 = vunpack.c.h.b16 %v181
  %v934 = vunpack.c.l.b16 %v182
  %v935 = vunpack.c.h.b16 %v182
  %v936 = vunpack.c.l.b16 %v183
  %v937 = vunpack.c.h.b16 %v183
  %v938 = vunpack.c.l.b16 %v184
  %v939 = vunpack.c.h.b16 %v184
  %v940 = vunpack.c.l.b16 %v185
  %v941 = vunpack.c.h.b16 %v185
  %v942 = vunpack.c.l.b16 %v186
  %v943 = vunpack.c.h.b16 %v186
  %v944 = vunpack.c.l.b16 %v187
  %v945 = vunpack.c.h.b16 %v187
  %v946 = vunpack.c.l.b16 %v188
  %v947 = vunpack.c.h.b16 %v188
  %v948 = vunpack.c.l.b16 %v189
  %v949 = vunpack.c.h.b16 %v189
  %v950 = vunpack.c.l.b16 %v190
  %v951 = vunpack.c.h.b16 %v190
  %v952 = vunpack.c.l.b16 %v191
  %v953 = vunpack.c.h.b16 %v191
  %v954 = vunpack.c.l.b16 %v192
  %v955 = vunpack.c.h.b16 %v192
  %v956 = vunpack.c.l.b16 %v193
  %v957 = vunpack.c.h.b16 %v193
  %v958 = vunpack.c.l.b16 %v194
  %v959 = vunpack.c.h.b16 %v194
  %v960 = vunpack.c.l.b16 %v195
  %v961 = vunpack.c.h.b16 %v195
  %v962 = vunpack.c.l.b16 %v196
  %v963 = vunpack.c.h.b16 %v196
  %v964 = vunpack.c.l.b16 %v197
  %v965 = vunpack.c.h.b16 %v197
  %v966 = vunpack.c.l.b16 %v198
  %v967 = vunpack.c.h.b16 %v198
  %v968 = vunpack.c.l.b16 %v199
  %v969 = vunpack.c.h.b16 %v199
  %v970 = vunpack.c.l.b16 %v200
  %v971 = vunpack.c.h.b16 %v200
  %v972 = vunpack.c.l.b16 %v201
  %v973 = vunpack.c.h.b16 %v201
  %v974 = vunpack.c.l.b16 %v202
  %v975 = vunpack.c.h.b16 %v202
  %v976 = vunpack.c.l.b16 %v203
  %v977 = vunpack.c.h.b16 %v203
  %v978 = vunpack.c.l.b16 %v204
  %v979 = vunpack.c.h.b16 %v204
  %v980 = vunpack.c.l.b16 %v205
  %v981 = vunpack.c.h.b16 %v205
  %v982 = vunpack.c.l.b16 %v206
  %v983 = vunpack.c.h.b16 %v206
  %v984 = vunpack.c.l.b16 %v207
  %v985 = vunpack.c.h.b16 %v207
  %v986 = vunpack.c.l.b16 %v208
  %v987 = vunpack.c.h.b16 %v208
  %v988 = vunpack.c.l.b16 %v209
  %v989 = vunpack.c.h.b16 %v209
  %v990 = vunpack.c.l.b16 %v210
  %v991 = vunpack.c.h.b16 %v210
  %v992 = vunpack.c.l.b16 %v211
  %v993 = vunpack.c.h.b16 %v211
  %v994 = vunpack.c.l.b16 %v212
  %v995 = vunpack.c.h.b16 %v212
  %v996 = vunpack.c.l.b16 %v213
  %v997 = vunpack.c.h.b16 %v213
  %v998 = vunpack.c.l.b16 %v214
  %v999 = vunpack.c.h.b16 %v214
  %v1000 = vunpack.c.l.b16 %v215
  %v1001 = vunpack.c.h.b16 %v215
  %v1002 = vunpack.c.l.b16 %v216
  %v1003 = vunpack.c.h.b16 %v216
  %v1004 = vunpack.c.l.b16 %v217
  %v1005 = vunpack.c.h.b16 %v217
  %v1006 = vunpack.c.l.b16 %v218
  %v1007 = vunpack.c.h.b16 %v218
  %v1008 = vunpack.c.l.b16 %v219
  %v1009 = vunpack.c.h.b16 %v219
  %v1010 = vunpack.c.l.b16 %v220
  %v1011 = vunpack.c.h.b16 %v220
  %v1012 = vunpack.c.l.b16 %v221
  %v1013 = vunpack.c.h.b16 %v221
  %v1014 = vunpack.c.l.b16 %v222
  %v1015 = vunpack.c.h.b16 %v222
  %v1016 = vunpack.c.l.b16 %v223
  %v1017 = vunpack.c.h.b16 %v223
  %v1018 = vunpack.c.l.b16 %v224
  %v1019 = vunpack.c.h.b16 %v224
  %v1020 = vunpack.c.l.b16 %v225
  %v1021 = vunpack.c.h.b16 %v225
  %v1022 = vunpack.c.l.b16 %v226
  %v1023 = vunpack.c.h.b16 %v226
  %v1024 = vunpack.c.l.b16 %v227
  %v1025 = vunpack.c.h.b16 %v227
  %v1026 = vunpack.c.l.b16 %v228
  %v1027 = vunpack.c.h.b16 %v228
  %v1028 = vunpack.c.l.b16 %v229
  %v1029 = vunpack.c.h.b16 %v229
  %v1030 = vunpack.c.l.b16 %v230
  %v1031 = vunpack.c.h.b16 %v230
  %v1032 = vunpack.c.l.b16 %v231
  %v1033 = vunpack.c.h.b16 %v231
  %v1034 = vunpack.c.l.b16 %v232
  %v1035 = vunpack.c.h.b16 %v232
  %v1036 = vunpack.c.l.b16 %v233
  %v1037 = vunpack.c.h.b16 %v233
  %v1038 = vunpack.c.l.b16 %v234
  %v1039 = vunpack.c.h.b16 %v234
  %v1040 = vunpack.c.l.b16 %v235
  %v1041 = vunpack.c.h.b16 %v235
  %v1042 = vunpack.c.l.b16 %v236
  %v1043 = vunpack.c.h.b16 %v236
  %v1044 = vunpack.c.l.b16 %v237
  %v1045 = vunpack.c.h.b16 %v237
  %v1046 = vunpack.c.l.b16 %v238
  %v1047 = vunpack.c.h.b16 %v238
  %v1048 = vunpack.c.l.b16 %v239
  %v1049 = vunpack.c.h.b16 %v239
  %v1050 = vunpack.c.l.b16 %v240
  %v1051 = vunpack.c.h.b16 %v240
  %v1052 = vunpack.c.l.b16 %v241
  %v1053 = vunpack.c.h.b16 %v241
  %v1054 = vunpack.c.l.b16 %v242
  %v1055 = vunpack.c.h.b16 %v242
  %v1056 = vunpack.c.l.b16 %v243
  %v1057 = vunpack.c.h.b16 %v243
  %v1058 = vunpack.c.l.b16 %v244
  %v1059 = vunpack.c.h.b16 %v244
  %v1060 = vunpack.c.l.b16 %v245
  %v1061 = vunpack.c.h.b16 %v245
  %v1062 = vunpack.c.l.b16 %v246
  %v1063 = vunpack.c.h.b16 %v246
  %v1064 = vunpack.c.l.b16 %v247
  %v1065 = vunpack.c.h.b16 %v247
  %v1066 = vunpack.c.l.b16 %v248
  %v1067 = vunpack.c.h.b16 %v248
  %v1068 = vunpack.c.l.b16 %v249
  %v1069 = vunpack.c.h.b16 %v249
  %v1070 = vunpack.c.l.b16 %v250
  %v1071 = vunpack.c.h.b16 %v250
  %v1072 = vunpack.c.l.b16 %v251
  %v1073 = vunpack.c.h.b16 %v251
  %v1074 = vunpack.c.l.b16 %v252
  %v1075 = vunpack.c.h.b16 %v252
  %v1076 = vunpack.c.l.b16 %v253
  %v1077 = vunpack.c.h.b16 %v253
  %v1078 = vunpack.c.l.b16 %v254
  %v1079 = vunpack.c.h.b16 %v254
  %v1080 = vunpack.c.l.b16 %v255
  %v1081 = vunpack.c.h.b16 %v255
  %v1082 = vunpack.c.l.b16 %v256
  %v1083 = vunpack.c.h.b16 %v256
  %v1084 = vunpack.c.l.b16 %v257
  %v1085 = vunpack.c.h.b16 %v257
  %v1086 = vunpack.c.l.b16 %v258
  %v1087 = vunpack.c.h.b16 %v258
  %v1088 = vunpack.c.l.b16 %v259
  %v1089 = vunpack.c.h.b16 %v259
  %v1090 = vunpack.c.l.b16 %v260
  %v1091 = vunpack.c.h.b16 %v260
  %v1092 = vunpack.c.l.b16 %v261
  %v1093 = vunpack.c.h.b16 %v261
  %v1094 = vunpack.c.l.b16 %v262
  %v1095 = vunpack.c.h.b16 %v262
  %v1096 = vunpack.c.l.b16 %v263
  %v1097 = vunpack.c.h.b16 %v263
  %v1098 = vunpack.c.l.b16 %v264
  %v1099 = vunpack.c.h.b16 %v264
  %v1100 = vunpack.c.l.b16 %v265
  %v1101 = vunpack.c.h.b16 %v265
  %v1102 = vunpack.c.l.b16 %v266
  %v1103 = vunpack.c.h.b16 %v266
  %v1104 = vunpack.c.l.b16 %v267
  %v1105 = vunpack.c.h.b16 %v267
  %v1106 = vunpack.c.l.b16 %v268
  %v1107 = vunpack.c.h.b16 %v268
  %v1108 = vunpack.c.l.b16 %v269
  %v1109 = vunpack.c.h.b16 %v269
  %v1110 = vunpack.c.l.b16 %v270
  %v1111 = vunpack.c.h.b16 %v270
  %v1112 = vunpack.c.l.b16 %v271
  %v1113 = vunpack.c.h.b16 %v271
  %v1114 = vunpack.c.l.b16 %v272
  %v1115 = vunpack.c.h.b16 %v272
  %v1116 = vunpack.c.l.b16 %v273
  %v1117 = vunpack.c.h.b16 %v273
  %v1118 = vunpack.c.l.b16 %v274
  %v1119 = vunpack.c.h.b16 %v274
  %v1120 = vunpack.c.l.b16 %v275
  %v1121 = vunpack.c.h.b16 %v275
  %v1122 = vunpack.c.l.b16 %v276
  %v1123 = vunpack.c.h.b16 %v276
  %v1124 = vunpack.c.l.b16 %v277
  %v1125 = vunpack.c.h.b16 %v277
  %v1126 = vpack.c.b16 %v618, %v614
  %v1127 = vpack.c.b16 %v619, %v615
  %v1128 = vpack.c.b16 %v620, %v616
  %v1129 = vpack.c.b16 %v621, %v617
  %v1130 = vpack.c.b16 %v626, %v622
  %v1131 = vpack.c.b16 %v627, %v623
  %v1132 = vpack.c.b16 %v628, %v624
  %v1133 = vpack.c.b16 %v629, %v625
  %v1134 = vpack.c.b16 %v634, %v630
  %v1135 = vpack.c.b16 %v635, %v631
  %v1136 = vpack.c.b16 %v636, %v632
  %v1137 = vpack.c.b16 %v637, %v633
  %v1138 = vpack.c.b16 %v642, %v638
  %v1139 = vpack.c.b16 %v643, %v639
  %v1140 = vpack.c.b16 %v644, %v640
  %v1141 = vpack.c.b16 %v645, %v641
  %v1142 = vpack.c.b16 %v650, %v646
  %v1143 = vpack.c.b16 %v651, %v647
  %v1144 = vpack.c.b16 %v652, %v648
  %v1145 = vpack.c.b16 %v653, %v649
  %v1146 = vpack.c.b16 %v658, %v654
  %v1147 = vpack.c.b16 %v659, %v655
  %v1148 = vpack.c.b16 %v660, %v656
  %v1149 = vpack.c.b16 %v661, %v657
  %v1150 = vpack.c.b16 %v666, %v662
  %v1151 = vpack.c.b16 %v667, %v663
  %v1152 = vpack.c.b16 %v668, %v664
  %v1153 = vpack.c.b16 %v669, %v665
  %v1154 = vpack.c.b16 %v674, %v670
  %v1155 = vpack.c.b16 %v675, %v671
  %v1156 = vpack.c.b16 %v676, %v672
  %v1157 = vpack.c.b16 %v677, %v673
  %v1158 = vpack.c.b16 %v682, %v678
  %v1159 = vpack.c.b16 %v683, %v679
  %v1160 = vpack.c.b16 %v684, %v680
  %v1161 = vpack.c.b16 %v685, %v681
  %v1162 = vpack.c.b16 %v690, %v686
  %v1163 = vpack.c.b16 %v691, %v687
  %v1164 = vpack.c.b16 %v692, %v688
  %v1165 = vpack.c.b16 %v693, %v689
  %v1166 = vpack.c.b16 %v698, %v694
  %v1167 = vpack.c.b16 %v699, %v695
  %v1168 = vpack.c.b16 %v700, %v696
  %v1169 = vpack.c.b16 %v701, %v697
  %v1170 = vpack.c.b16 %v706, %v702
  %v1171 = vpack.c.b16 %v707, %v703
  %v1172 = vpack.c.b16 %v708, %v704
  %v1173 = vpack.c.b16 %v709, %v705
  %v1174 = vpack.c.b16 %v714, %v710
  %v1175 = vpack.c.b16 %v715, %v711
  %v1176 = vpack.c.b16 %v716, %v712
  %v1177 = vpack.c.b16 %v717, %v713
  %v1178 = vpack.c.b16 %v722, %v718
  %v1179 = vpack.c.b16 %v723, %v719
  %v1180 = vpack.c.b16 %v724, %v720
  %v1181 = vpack.c.b16 %v725, %v721
  %v1182 = vpack.c.b16 %v730, %v726
  %v1183 = vpack.c.b16 %v731, %v727
  %v1184 = vpack.c.b16 %v732, %v728
  %v1185 = vpack.c.b16 %v733, %v729
  %v1186 = vpack.c.b16 %v738, %v734
  %v1187 = vpack.c.b16 %v739, %v735
  %v1188 = vpack.c.b16 %v740, %v736
  %v1189 = vpack.c.b16 %v741, %v737
  %v1190 = vpack.c.b16 %v746, %v742
  %v1191 = vpack.c.b16 %v747, %v743
  %v1192 = vpack.c.b16 %v748, %v744
  %v1193 = vpack.c.b16 %v749, %v745
  %v1194 = vpack.c.b16 %v754, %v750
  %v1195 = vpack.c.b16 %v755, %v751
  %v1196 = vpack.c.b16 %v756, %v752
  %v1197 = vpack.c.b16 %v757, %v753
  %v1198 = vpack.c.b16 %v762, %v758
  %v1199 = vpack.c.b16 %v763, %v759
  %v1200 = vpack.c.b16 %v764, %v760
  %v1201 = vpack.c.b16 %v765, %v761
  %v1202 = vpack.c.b16 %v770, %v766
  %v1203 = vpack.c.b16 %v771, %v767
  %v1204 = vpack.c.b16 %v772, %v768
  %v1205 = vpack.c.b16 %v773, %v769
  %v1206 = vpack.c.b16 %v778, %v774
  %v1207 = vpack.c.b16 %v779, %v775
  %v1208 = vpack.c.b16 %v780, %v776
  %v1209 = vpack.c.b16 %v781, %v777
  %v1210 = vpack.c.b16 %v786, %v782
  %v1211 = vpack.c.b16 %v787, %v783
  %v1212 = vpack.c.b16 %v788, %v784
  %v1213 = vpack.c.b16 %v789, %v785
  %v1214 = vpack.c.b16 %v794, %v790
  %v1215 = vpack.c.b16 %v795, %v791
  %v1216 = vpack.c.b16 %v796, %v792
  %v1217 = vpack.c.b16 %v797, %v793
  %v1218 = vpack.c.b16 %v802, %v798
  %v1219 = vpack.c.b16 %v803, %v799
  %v1220 = vpack.c.b16 %v804, %v800
  %v1221 = vpack.c.b16 %v805, %v801
  %v1222 = vpack.c.b16 %v810, %v806
  %v1223 = vpack.c.b16 %v811, %v807
  %v1224 = vpack.c.b16 %v812, %v808
  %v1225 = vpack.c.b16 %v813, %v809
  %v1226 = vpack.c.b16 %v818, %v814
  %v1227 = vpack.c.b16 %v819, %v815
  %v1228 = vpack.c.b16 %v820, %v816
  %v1229 = vpack.c.b16 %v821, %v817
  %v1230 = vpack.c.b16 %v826, %v822
  %v1231 = vpack.c.b16 %v827, %v823
  %v1232 = vpack.c.b16 %v828, %v824
  %v1233 = vpack.c.b16 %v829, %v825
  %v1234 = vpack.c.b16 %v834, %v830
  %v1235 = vpack.c.b16 %v835, %v831
  %v1236 = vpack.c.b16 %v836, %v832
  %v1237 = vpack.c.b16 %v837, %v833
  %v1238 = vpack.c.b16 %v842, %v838
  %v1239 = vpack.c.b16 %v843, %v839
  %v1240 = vpack.c.b16 %v844, %v840
  %v1241 = vpack.c.b16 %v845, %v841
  %v1242 = vpack.c.b16 %v850, %v846
  %v1243 = vpack.c.b16 %v851, %v847
  %v1244 = vpack.c.b16 %v852, %v848
  %v1245 = vpack.c.b16 %v853, %v849
  %v1246 = vpack.c.b16 %v858, %v854
  %v1247 = vpack.c.b16 %v859, %v855
  %v1248 = vpack.c.b16 %v860, %v856
  %v1249 = vpack.c.b16 %v861, %v857
  %v1250 = vpack.c.b16 %v866, %v862
  %v1251 = vpack.c.b16 %v867, %v863
  %v1252 = vpack.c.b16 %v868, %v864
  %v1253 = vpack.c.b16 %v869, %v865
  %v1254 = vpack.c.b16 %v874, %v870
  %v1255 = vpack.c.b16 %v875, %v871
  %v1256 = vpack.c.b16 %v876, %v872
  %v1257 = vpack.c.b16 %v877, %v873
  %v1258 = vpack.c.b16 %v882, %v878
  %v1259 = vpack.c.b16 %v883, %v879
  %v1260 = vpack.c.b16 %v884, %v880
  %v1261 = vpack.c.b16 %v885, %v881
  %v1262 = vpack.c.b16 %v890, %v886
  %v1263 = vpack.c.b16 %v891, %v887
  %v1264 = vpack.c.b16 %v892, %v888
  %v1265 = vpack.c.b16 %v893, %v889
  %v1266 = vpack.c.b16 %v898, %v894
  %v1267 = vpack.c.b16 %v899, %v895
  %v1268 = vpack.c.b16 %v900, %v896
  %v1269 = vpack.c.b16 %v901, %v897
  %v1270 = vpack.c.b16 %v906, %v902
  %v1271 = vpack.c.b16 %v907, %v903
  %v1272 = vpack.c.b16 %v908, %v904
  %v1273 = vpack.c.b16 %v909, %v905
  %v1274 = vpack.c.b16 %v914, %v910
  %v1275 = vpack.c.b16 %v915, %v911
  %v1276 = vpack.c.b16 %v916, %v912
  %v1277 = vpack.c.b16 %v917, %v913
  %v1278 = vpack.c.b16 %v922, %v918
  %v1279 = vpack.c.b16 %v923, %v919
  %v1280 = vpack.c.b16 %v924, %v920
  %v1281 = vpack.c.b16 %v925, %v921
  %v1282 = vpack.c.b16 %v930, %v926
  %v1283 = vpack.c.b16 %v931, %v927
  %v1284 = vpack.c.b16 %v932, %v928
  %v1285 = vpack.c.b16 %v933, %v929
  %v1286 = vpack.c.b16 %v938, %v934
  %v1287 = vpack.c.b16 %v939, %v935
  %v1288 = vpack.c.b16 %v940, %v936
  %v1289 = vpack.c.b16 %v941, %v937
  %v1290 = vpack.c.b16 %v946, %v942
  %v1291 = vpack.c.b16 %v947, %v943
  %v1292 = vpack.c.b16 %v948, %v944
  %v1293 = vpack.c.b16 %v949, %v945
  %v1294 = vpack.c.b16 %v954, %v950
  %v1295 = vpack.c.b16 %v955, %v951
  %v1296 = vpack.c.b16 %v956, %v952
  %v1297 = vpack.c.b16 %v957, %v953
  %v1298 = vpack.c.b16 %v962, %v958
  %v1299 = vpack.c.b16 %v963, %v959
  %v1300 = vpack.c.b16 %v964, %v960
  %v1301 = vpack.c.b16 %v965, %v961
  %v1302 = vpack.c.b16 %v970, %v966
  %v1303 = vpack.c.b16 %v971, %v967
  %v1304 = vpack.c.b16 %v972, %v968
  %v1305 = vpack.c.b16 %v973, %v969
  %v1306 = vpack.c.b16 %v978, %v974
  %v1307 = vpack.c.b16 %v979, %v975
  %v1308 = vpack.c.b16 %v980, %v976
  %v1309 = vpack.c.b16 %v981, %v977
  %v1310 = vpack.c.b16 %v986, %v982
  %v1311 = vpack.c.b16 %v987, %v983
  %v1312 = vpack.c.b16 %v988, %v984
  %v1313 = vpack.c.b16 %v989, %v985
  %v1314 = vpack.c.b16 %v994, %v990
  %v1315 = vpack.c.b16 %v995, %v991
  %v1316 = vpack.c.b16 %v996, %v992
  %v1317 = vpack.c.b16 %v997, %v993
  %v1318 = vpack.c.b16 %v1002, %v998
  %v1319 = vpack.c.b16 %v1003, %v999
  %v1320 = vpack.c.b16 %v1004, %v1000
  %v1321 = vpack.c.b16 %v1005, %v1001
  %v1322 = vpack.c.b16 %v1010, %v1006
  %v1323 = vpack.c.b16 %v1011, %v1007
  %v1324 = vpack.c.b16 %v1012, %v1008
  %v1325 = vpack.c.b16 %v1013, %v1009
  %v1326 = vpack.c.b16 %v1018, %v1014
  %v1327 = vpack.c.b16 %v1019, %v1015
  %v1328 = vpack.c.b16 %v1020, %v1016
  %v1329 = vpack.c.b16 %v1021, %v1017
  %v1330 = vpack.c.b16 %v1026, %v1022
  %v1331 = vpack.c.b16 %v1027, %v1023
  %v1332 = vpack.c.b16 %v1028, %v1024
  %v1333 = vpack.c.b16 %v1029, %v1025
  %v1334 = vpack.c.b16 %v1034, %v1030
  %v1335 = vpack.c.b16 %v1035, %v1031
  %v1336 = vpack.c.b16 %v1036, %v1032
  %v1337 = vpack.c.b16 %v1037, %v1033
  %v1338 = vpack.c.b16 %v1042, %v1038
  %v1339 = vpack.c.b16 %v1043, %v1039
  %v1340 = vpack.c.b16 %v1044, %v1040
  %v1341 = vpack.c.b16 %v1045, %v1041
  %v1342 = vpack.c.b16 %v1050, %v1046
  %v1343 = vpack.c.b16 %v1051, %v1047
  %v1344 = vpack.c.b16 %v1052, %v1048
  %v1345 = vpack.c.b16 %v1053, %v1049
  %v1346 = vpack.c.b16 %v1058, %v1054
  %v1347 = vpack.c.b16 %v1059, %v1055
  %v1348 = vpack.c.b16 %v1060, %v1056
  %v1349 = vpack.c.b16 %v1061, %v1057
  %v1350 = vpack.c.b16 %v1066, %v1062
  %v1351 = vpack.c.b16 %v1067, %v1063
  %v1352 = vpack.c.b16 %v1068, %v1064
  %v1353 = vpack.c.b16 %v1069, %v1065
  %v1354 = vpack.c.b16 %v1074, %v1070
  %v1355 = vpack.c.b16 %v1075, %v1071
  %v1356 = vpack.c.b16 %v1076, %v1072
  %v1357 = vpack.c.b16 %v1077, %v1073
  %v1358 = vpack.c.b16 %v1082, %v1078
  %v1359 = vpack.c.b16 %v1083, %v1079
  %v1360 = vpack.c.b16 %v1084, %v1080
  %v1361 = vpack.c.b16 %v1085, %v1081
  %v1362 = vpack.c.b16 %v1090, %v1086
  %v1363 = vpack.c.b16 %v1091, %v1087
  %v1364 = vpack.c.b16 %v1092, %v1088
  %v1365 = vpack.c.b16 %v1093, %v1089
  %v1366 = vpack.c.b16 %v1098, %v1094
  %v1367 = vpack.c.b16 %v1099, %v1095
  %v1368 = vpack.c.b16 %v1100, %v1096
  %v1369 = vpack.c.b16 %v1101, %v1097
  %v1370 = vpack.c.b16 %v1106, %v1102
  %v1371 = vpack.c.b16 %v1107, %v1103
  %v1372 = vpack.c.b16 %v1108, %v1104
  %v1373 = vpack.c.b16 %v1109, %v1105
  %v1374 = vpack.c.b16 %v1114, %v1110
  %v1375 = vpack.c.b16 %v1115, %v1111
  %v1376 = vpack.c.b16 %v1116, %v1112
  %v1377 = vpack.c.b16 %v1117, %v1113
  %v1378 = vpack.c.b16 %v1122, %v1118
  %v1379 = vpack.c.b16 %v1123, %v1119
  %v1380 = vpack.c.b16 %v1124, %v1120
  %v1381 = vpack.c.b16 %v1125, %v1121
  %1638 = vmatprep.subr.bf16.mxu0 %v1155
  %1639 = vmatpush1.bf16.msra.mxu0 %v1154
  %1640 = vmatprep.subr.bf16.mxu0 %v1151
  %1641 = vmatpush1.bf16.msra.mxu0 %v1150
  %1642 = vmatprep.subr.bf16.mxu0 %v1147
  %1643 = vmatpush1.bf16.msra.mxu0 %v1146
  %1644 = vmatprep.subr.bf16.mxu0 %v1143
  %1645 = vmatpush1.bf16.msra.mxu0 %v1142
  %1646 = vmatprep.subr.bf16.mxu0 %v1139
  %1647 = vmatpush1.bf16.msra.mxu0 %v1138
  %1648 = vmatprep.subr.bf16.mxu0 %v1135
  %1649 = vmatpush1.bf16.msra.mxu0 %v1134
  %1650 = vmatprep.subr.bf16.mxu0 %v1131
  %1651 = vmatpush1.bf16.msra.mxu0 %v1130
  %1652 = vmatprep.subr.bf16.mxu0 %v1127
  %1653 = vmatpush1.bf16.msra.mxu0 %v1126
  %1654 = vmatprep.subr.bf16.mxu0 %v1187
  %1655 = vmatpush2.bf16.msra.mxu0 %v1186
  %1656 = vmatprep.subr.bf16.mxu0 %v1183
  %1657 = vmatpush2.bf16.msra.mxu0 %v1182
  %1658 = vmatprep.subr.bf16.mxu0 %v1179
  %1659 = vmatpush2.bf16.msra.mxu0 %v1178
  %1660 = vmatprep.subr.bf16.mxu0 %v1175
  %1661 = vmatpush2.bf16.msra.mxu0 %v1174
  %1662 = vmatprep.subr.bf16.mxu0 %v1171
  %1663 = vmatpush2.bf16.msra.mxu0 %v1170
  %1664 = vmatprep.subr.bf16.mxu0 %v1167
  %1665 = vmatpush2.bf16.msra.mxu0 %v1166
  %1666 = vmatprep.subr.bf16.mxu0 %v1163
  %1667 = vmatpush2.bf16.msra.mxu0 %v1162
  %1668 = vmatprep.subr.bf16.mxu0 %v1159
  %1669 = vmatpush2.bf16.msra.mxu0 %v1158
  %1670 = vmatprep.mubr.bf16.mxu0 %v338
  %1671 = vmatmul.mubr.bf16.gmra.mxu0 %v324
  %v1672 = vpop.f32.mrf.mxu0
  %v1673 = vadd.f32 %v283, %v1672
  %v1674 = vpop.f32.mrf.mxu0
  %v1675 = vadd.f32 %v287, %v1674
  %v1676 = vpop.f32.mrf.mxu0
  %v1677 = vpop.f32.mrf.mxu0
  %1678 = vdwg.mxu0
  %1679 = vmatprep.subr.bf16.mxu0 %v1219
  %1680 = vmatpush1.bf16.msra.mxu0 %v1218
  %1681 = vmatprep.subr.bf16.mxu0 %v1215
  %1682 = vmatpush1.bf16.msra.mxu0 %v1214
  %1683 = vmatprep.subr.bf16.mxu0 %v1211
  %1684 = vmatpush1.bf16.msra.mxu0 %v1210
  %1685 = vmatprep.subr.bf16.mxu0 %v1207
  %1686 = vmatpush1.bf16.msra.mxu0 %v1206
  %1687 = vmatprep.subr.bf16.mxu0 %v1203
  %1688 = vmatpush1.bf16.msra.mxu0 %v1202
  %1689 = vmatprep.subr.bf16.mxu0 %v1199
  %1690 = vmatpush1.bf16.msra.mxu0 %v1198
  %1691 = vmatprep.subr.bf16.mxu0 %v1195
  %1692 = vmatpush1.bf16.msra.mxu0 %v1194
  %1693 = vmatprep.subr.bf16.mxu0 %v1191
  %1694 = vmatpush1.bf16.msra.mxu0 %v1190
  %1695 = vmatprep.subr.bf16.mxu0 %v1251
  %1696 = vmatpush2.bf16.msra.mxu0 %v1250
  %1697 = vmatprep.subr.bf16.mxu0 %v1247
  %1698 = vmatpush2.bf16.msra.mxu0 %v1246
  %1699 = vmatprep.subr.bf16.mxu0 %v1243
  %1700 = vmatpush2.bf16.msra.mxu0 %v1242
  %1701 = vmatprep.subr.bf16.mxu0 %v1239
  %1702 = vmatpush2.bf16.msra.mxu0 %v1238
  %1703 = vmatprep.subr.bf16.mxu0 %v1235
  %1704 = vmatpush2.bf16.msra.mxu0 %v1234
  %1705 = vmatprep.subr.bf16.mxu0 %v1231
  %1706 = vmatpush2.bf16.msra.mxu0 %v1230
  %1707 = vmatprep.subr.bf16.mxu0 %v1227
  %1708 = vmatpush2.bf16.msra.mxu0 %v1226
  %1709 = vmatprep.subr.bf16.mxu0 %v1223
  %1710 = vmatpush2.bf16.msra.mxu0 %v1222
  %1711 = vmatprep.mubr.bf16.mxu0 %v348
  %1712 = vmatmul.mubr.bf16.gmra.mxu0 %v346
  %v1713 = vpop.f32.mrf.mxu0
  %v1714 = vadd.f32 %v1673, %v1713
  %v1715 = vpop.f32.mrf.mxu0
  %v1716 = vadd.f32 %v1675, %v1715
  %v1717 = vpop.f32.mrf.mxu0
  %v1718 = vpop.f32.mrf.mxu0
  %1719 = vdwg.mxu0
  %1720 = vmatprep.subr.bf16.mxu0 %v1283
  %1721 = vmatpush1.bf16.msra.mxu0 %v1282
  %1722 = vmatprep.subr.bf16.mxu0 %v1279
  %1723 = vmatpush1.bf16.msra.mxu0 %v1278
  %1724 = vmatprep.subr.bf16.mxu0 %v1275
  %1725 = vmatpush1.bf16.msra.mxu0 %v1274
  %1726 = vmatprep.subr.bf16.mxu0 %v1271
  %1727 = vmatpush1.bf16.msra.mxu0 %v1270
  %1728 = vmatprep.subr.bf16.mxu0 %v1267
  %1729 = vmatpush1.bf16.msra.mxu0 %v1266
  %1730 = vmatprep.subr.bf16.mxu0 %v1263
  %1731 = vmatpush1.bf16.msra.mxu0 %v1262
  %1732 = vmatprep.subr.bf16.mxu0 %v1259
  %1733 = vmatpush1.bf16.msra.mxu0 %v1258
  %1734 = vmatprep.subr.bf16.mxu0 %v1255
  %1735 = vmatpush1.bf16.msra.mxu0 %v1254
  %1736 = vmatprep.subr.bf16.mxu0 %v1315
  %1737 = vmatpush2.bf16.msra.mxu0 %v1314
  %1738 = vmatprep.subr.bf16.mxu0 %v1311
  %1739 = vmatpush2.bf16.msra.mxu0 %v1310
  %1740 = vmatprep.subr.bf16.mxu0 %v1307
  %1741 = vmatpush2.bf16.msra.mxu0 %v1306
  %1742 = vmatprep.subr.bf16.mxu0 %v1303
  %1743 = vmatpush2.bf16.msra.mxu0 %v1302
  %1744 = vmatprep.subr.bf16.mxu0 %v1299
  %1745 = vmatpush2.bf16.msra.mxu0 %v1298
  %1746 = vmatprep.subr.bf16.mxu0 %v1295
  %1747 = vmatpush2.bf16.msra.mxu0 %v1294
  %1748 = vmatprep.subr.bf16.mxu0 %v1291
  %1749 = vmatpush2.bf16.msra.mxu0 %v1290
  %1750 = vmatprep.subr.bf16.mxu0 %v1287
  %1751 = vmatpush2.bf16.msra.mxu0 %v1286
  %1752 = vmatprep.mubr.bf16.mxu0 %v345
  %1753 = vmatmul.mubr.bf16.gmra.mxu0 %v331
  %v1754 = vpop.f32.mrf.mxu0
  %v1755 = vadd.f32 %v1714, %v1754
  %v1756 = vpop.f32.mrf.mxu0
  %v1757 = vadd.f32 %v1716, %v1756
  %v1758 = vpop.f32.mrf.mxu0
  %v1759 = vpop.f32.mrf.mxu0
  %1760 = vdwg.mxu0
  %1761 = vmatprep.subr.bf16.mxu0 %v1347
  %1762 = vmatpush1.bf16.msra.mxu0 %v1346
  %1763 = vmatprep.subr.bf16.mxu0 %v1343
  %1764 = vmatpush1.bf16.msra.mxu0 %v1342
  %1765 = vmatprep.subr.bf16.mxu0 %v1339
  %1766 = vmatpush1.bf16.msra.mxu0 %v1338
  %1767 = vmatprep.subr.bf16.mxu0 %v1335
  %1768 = vmatpush1.bf16.msra.mxu0 %v1334
  %1769 = vmatprep.subr.bf16.mxu0 %v1331
  %1770 = vmatpush1.bf16.msra.mxu0 %v1330
  %1771 = vmatprep.subr.bf16.mxu0 %v1327
  %1772 = vmatpush1.bf16.msra.mxu0 %v1326
  %1773 = vmatprep.subr.bf16.mxu0 %v1323
  %1774 = vmatpush1.bf16.msra.mxu0 %v1322
  %1775 = vmatprep.subr.bf16.mxu0 %v1319
  %1776 = vmatpush1.bf16.msra.mxu0 %v1318
  %1777 = vmatprep.subr.bf16.mxu0 %v1379
  %1778 = vmatpush2.bf16.msra.mxu0 %v1378
  %1779 = vmatprep.subr.bf16.mxu0 %v1375
  %1780 = vmatpush2.bf16.msra.mxu0 %v1374
  %1781 = vmatprep.subr.bf16.mxu0 %v1371
  %1782 = vmatpush2.bf16.msra.mxu0 %v1370
  %1783 = vmatprep.subr.bf16.mxu0 %v1367
  %1784 = vmatpush2.bf16.msra.mxu0 %v1366
  %1785 = vmatprep.subr.bf16.mxu0 %v1363
  %1786 = vmatpush2.bf16.msra.mxu0 %v1362
  %1787 = vmatprep.subr.bf16.mxu0 %v1359
  %1788 = vmatpush2.bf16.msra.mxu0 %v1358
  %1789 = vmatprep.subr.bf16.mxu0 %v1355
  %1790 = vmatpush2.bf16.msra.mxu0 %v1354
  %1791 = vmatprep.subr.bf16.mxu0 %v1351
  %1792 = vmatpush2.bf16.msra.mxu0 %v1350
  %1793 = vmatprep.mubr.bf16.mxu0 %v349
  %1794 = vmatmul.mubr.bf16.gmra.mxu0 %v347
  %v1795 = vpop.f32.mrf.mxu0
  %v1796 = vadd.f32 %v1755, %v1795
  %v1797 = vpop.f32.mrf.mxu0
  %v1798 = vadd.f32 %v1757, %v1797
  %v1799 = vpop.f32.mrf.mxu0
  %v1800 = vpop.f32.mrf.mxu0
  %1801 = vdwg.mxu0
  %1802 = vmatprep.subr.bf16.mxu0 %v1157
  %1803 = vmatpush1.bf16.msra.mxu0 %v1156
  %1804 = vmatprep.subr.bf16.mxu0 %v1153
  %1805 = vmatpush1.bf16.msra.mxu0 %v1152
  %1806 = vmatprep.subr.bf16.mxu0 %v1149
  %1807 = vmatpush1.bf16.msra.mxu0 %v1148
  %1808 = vmatprep.subr.bf16.mxu0 %v1145
  %1809 = vmatpush1.bf16.msra.mxu0 %v1144
  %1810 = vmatprep.subr.bf16.mxu0 %v1141
  %1811 = vmatpush1.bf16.msra.mxu0 %v1140
  %1812 = vmatprep.subr.bf16.mxu0 %v1137
  %1813 = vmatpush1.bf16.msra.mxu0 %v1136
  %1814 = vmatprep.subr.bf16.mxu0 %v1133
  %1815 = vmatpush1.bf16.msra.mxu0 %v1132
  %1816 = vmatprep.subr.bf16.mxu0 %v1129
  %1817 = vmatpush1.bf16.msra.mxu0 %v1128
  %1818 = vmatprep.subr.bf16.mxu0 %v1189
  %1819 = vmatpush2.bf16.msra.mxu0 %v1188
  %1820 = vmatprep.subr.bf16.mxu0 %v1185
  %1821 = vmatpush2.bf16.msra.mxu0 %v1184
  %1822 = vmatprep.subr.bf16.mxu0 %v1181
  %1823 = vmatpush2.bf16.msra.mxu0 %v1180
  %1824 = vmatprep.subr.bf16.mxu0 %v1177
  %1825 = vmatpush2.bf16.msra.mxu0 %v1176
  %1826 = vmatprep.subr.bf16.mxu0 %v1173
  %1827 = vmatpush2.bf16.msra.mxu0 %v1172
  %1828 = vmatprep.subr.bf16.mxu0 %v1169
  %1829 = vmatpush2.bf16.msra.mxu0 %v1168
  %1830 = vmatprep.subr.bf16.mxu0 %v1165
  %1831 = vmatpush2.bf16.msra.mxu0 %v1164
  %1832 = vmatprep.subr.bf16.mxu0 %v1161
  %1833 = vmatpush2.bf16.msra.mxu0 %v1160
  %1834 = vmatprep.mubr.bf16.mxu0 %v338
  %1835 = vmatmul.mubr.bf16.gmra.mxu0 %v324
  %v1836 = vpop.f32.mrf.mxu0
  %v1837 = vadd.f32 %v291, %v1836
  %v1838 = vpop.f32.mrf.mxu0
  %v1839 = vadd.f32 %v295, %v1838
  %v1840 = vpop.f32.mrf.mxu0
  %v1841 = vpop.f32.mrf.mxu0
  %1842 = vdwg.mxu0
  %1843 = vmatprep.subr.bf16.mxu0 %v1221
  %1844 = vmatpush1.bf16.msra.mxu0 %v1220
  %1845 = vmatprep.subr.bf16.mxu0 %v1217
  %1846 = vmatpush1.bf16.msra.mxu0 %v1216
  %1847 = vmatprep.subr.bf16.mxu0 %v1213
  %1848 = vmatpush1.bf16.msra.mxu0 %v1212
  %1849 = vmatprep.subr.bf16.mxu0 %v1209
  %1850 = vmatpush1.bf16.msra.mxu0 %v1208
  %1851 = vmatprep.subr.bf16.mxu0 %v1205
  %1852 = vmatpush1.bf16.msra.mxu0 %v1204
  %1853 = vmatprep.subr.bf16.mxu0 %v1201
  %1854 = vmatpush1.bf16.msra.mxu0 %v1200
  %1855 = vmatprep.subr.bf16.mxu0 %v1197
  %1856 = vmatpush1.bf16.msra.mxu0 %v1196
  %1857 = vmatprep.subr.bf16.mxu0 %v1193
  %1858 = vmatpush1.bf16.msra.mxu0 %v1192
  %1859 = vmatprep.subr.bf16.mxu0 %v1253
  %1860 = vmatpush2.bf16.msra.mxu0 %v1252
  %1861 = vmatprep.subr.bf16.mxu0 %v1249
  %1862 = vmatpush2.bf16.msra.mxu0 %v1248
  %1863 = vmatprep.subr.bf16.mxu0 %v1245
  %1864 = vmatpush2.bf16.msra.mxu0 %v1244
  %1865 = vmatprep.subr.bf16.mxu0 %v1241
  %1866 = vmatpush2.bf16.msra.mxu0 %v1240
  %1867 = vmatprep.subr.bf16.mxu0 %v1237
  %1868 = vmatpush2.bf16.msra.mxu0 %v1236
  %1869 = vmatprep.subr.bf16.mxu0 %v1233
  %1870 = vmatpush2.bf16.msra.mxu0 %v1232
  %1871 = vmatprep.subr.bf16.mxu0 %v1229
  %1872 = vmatpush2.bf16.msra.mxu0 %v1228
  %1873 = vmatprep.subr.bf16.mxu0 %v1225
  %1874 = vmatpush2.bf16.msra.mxu0 %v1224
  %1875 = vmatprep.mubr.bf16.mxu0 %v348
  %1876 = vmatmul.mubr.bf16.gmra.mxu0 %v346
  %v1877 = vpop.f32.mrf.mxu0
  %v1878 = vadd.f32 %v1837, %v1877
  %v1879 = vpop.f32.mrf.mxu0
  %v1880 = vadd.f32 %v1839, %v1879
  %v1881 = vpop.f32.mrf.mxu0
  %v1882 = vpop.f32.mrf.mxu0
  %1883 = vdwg.mxu0
  %1884 = vmatprep.subr.bf16.mxu0 %v1285
  %1885 = vmatpush1.bf16.msra.mxu0 %v1284
  %1886 = vmatprep.subr.bf16.mxu0 %v1281
  %1887 = vmatpush1.bf16.msra.mxu0 %v1280
  %1888 = vmatprep.subr.bf16.mxu0 %v1277
  %1889 = vmatpush1.bf16.msra.mxu0 %v1276
  %1890 = vmatprep.subr.bf16.mxu0 %v1273
  %1891 = vmatpush1.bf16.msra.mxu0 %v1272
  %1892 = vmatprep.subr.bf16.mxu0 %v1269
  %1893 = vmatpush1.bf16.msra.mxu0 %v1268
  %1894 = vmatprep.subr.bf16.mxu0 %v1265
  %1895 = vmatpush1.bf16.msra.mxu0 %v1264
  %1896 = vmatprep.subr.bf16.mxu0 %v1261
  %1897 = vmatpush1.bf16.msra.mxu0 %v1260
  %1898 = vmatprep.subr.bf16.mxu0 %v1257
  %1899 = vmatpush1.bf16.msra.mxu0 %v1256
  %1900 = vmatprep.subr.bf16.mxu0 %v1317
  %1901 = vmatpush2.bf16.msra.mxu0 %v1316
  %1902 = vmatprep.subr.bf16.mxu0 %v1313
  %1903 = vmatpush2.bf16.msra.mxu0 %v1312
  %1904 = vmatprep.subr.bf16.mxu0 %v1309
  %1905 = vmatpush2.bf16.msra.mxu0 %v1308
  %1906 = vmatprep.subr.bf16.mxu0 %v1305
  %1907 = vmatpush2.bf16.msra.mxu0 %v1304
  %1908 = vmatprep.subr.bf16.mxu0 %v1301
  %1909 = vmatpush2.bf16.msra.mxu0 %v1300
  %1910 = vmatprep.subr.bf16.mxu0 %v1297
  %1911 = vmatpush2.bf16.msra.mxu0 %v1296
  %1912 = vmatprep.subr.bf16.mxu0 %v1293
  %1913 = vmatpush2.bf16.msra.mxu0 %v1292
  %1914 = vmatprep.subr.bf16.mxu0 %v1289
  %1915 = vmatpush2.bf16.msra.mxu0 %v1288
  %1916 = vmatprep.mubr.bf16.mxu0 %v345
  %1917 = vmatmul.mubr.bf16.gmra.mxu0 %v331
  %v1918 = vpop.f32.mrf.mxu0
  %v1919 = vadd.f32 %v1878, %v1918
  %v1920 = vpop.f32.mrf.mxu0
  %v1921 = vadd.f32 %v1880, %v1920
  %v1922 = vpop.f32.mrf.mxu0
  %v1923 = vpop.f32.mrf.mxu0
  %1924 = vdwg.mxu0
  %1925 = vmatprep.subr.bf16.mxu0 %v1349
  %1926 = vmatpush1.bf16.msra.mxu0 %v1348
  %1927 = vmatprep.subr.bf16.mxu0 %v1345
  %1928 = vmatpush1.bf16.msra.mxu0 %v1344
  %1929 = vmatprep.subr.bf16.mxu0 %v1341
  %1930 = vmatpush1.bf16.msra.mxu0 %v1340
  %1931 = vmatprep.subr.bf16.mxu0 %v1337
  %1932 = vmatpush1.bf16.msra.mxu0 %v1336
  %1933 = vmatprep.subr.bf16.mxu0 %v1333
  %1934 = vmatpush1.bf16.msra.mxu0 %v1332
  %1935 = vmatprep.subr.bf16.mxu0 %v1329
  %1936 = vmatpush1.bf16.msra.mxu0 %v1328
  %1937 = vmatprep.subr.bf16.mxu0 %v1325
  %1938 = vmatpush1.bf16.msra.mxu0 %v1324
  %1939 = vmatprep.subr.bf16.mxu0 %v1321
  %1940 = vmatpush1.bf16.msra.mxu0 %v1320
  %1941 = vmatprep.subr.bf16.mxu0 %v1381
  %1942 = vmatpush2.bf16.msra.mxu0 %v1380
  %1943 = vmatprep.subr.bf16.mxu0 %v1377
  %1944 = vmatpush2.bf16.msra.mxu0 %v1376
  %1945 = vmatprep.subr.bf16.mxu0 %v1373
  %1946 = vmatpush2.bf16.msra.mxu0 %v1372
  %1947 = vmatprep.subr.bf16.mxu0 %v1369
  %1948 = vmatpush2.bf16.msra.mxu0 %v1368
  %1949 = vmatprep.subr.bf16.mxu0 %v1365
  %1950 = vmatpush2.bf16.msra.mxu0 %v1364
  %1951 = vmatprep.subr.bf16.mxu0 %v1361
  %1952 = vmatpush2.bf16.msra.mxu0 %v1360
  %1953 = vmatprep.subr.bf16.mxu0 %v1357
  %1954 = vmatpush2.bf16.msra.mxu0 %v1356
  %1955 = vmatprep.subr.bf16.mxu0 %v1353
  %1956 = vmatpush2.bf16.msra.mxu0 %v1352
  %1957 = vmatprep.mubr.bf16.mxu0 %v349
  %1958 = vmatmul.mubr.bf16.gmra.mxu0 %v347
  %v1959 = vpop.f32.mrf.mxu0
  %v1960 = vadd.f32 %v1919, %v1959
  %v1961 = vpop.f32.mrf.mxu0
  %v1962 = vadd.f32 %v1921, %v1961
  %v1963 = vpop.f32.mrf.mxu0
  %v1964 = vpop.f32.mrf.mxu0
  %1965 = vdwg.mxu0
  %vm1966 = vcmp.gt.f32.partialorder %v1796, 0.0
  %vm1967 = vcmp.gt.f32.partialorder %v1798, 0.0
  %vm1968 = vcmp.gt.f32.partialorder %v1960, 0.0
  %vm1969 = vcmp.gt.f32.partialorder %v1962, 0.0
  %v1970 = vmul.f32 %v1796, 0.01
  %v1971 = vmul.f32 %v1798, 0.01
  %v1972 = vmul.f32 %v1960, 0.01
  %v1973 = vmul.f32 %v1962, 0.01
  %v1974 = vsel %vm1966, %v1796, %v1970
  %v1975 = vsel %vm1967, %v1798, %v1971
  %v1976 = vsel %vm1968, %v1960, %v1972
  %v1977 = vsel %vm1969, %v1962, %v1973
  %v1978 = vpack.c.bf16 %v1974, %v1974
  %v1979 = vpack.c.bf16 %v1975, %v1975
  %v1980 = vpack.c.bf16 %v1976, %v1976
  %v1981 = vpack.c.bf16 %v1977, %v1977
  %v1982 = vld [vmem:[%s3] sm:$0xf]
  %v1983 = vld [vmem:[%s3 + $0x4] sm:$0xf]
  %v1984 = vld [vmem:[%s3 + $0x8] sm:$0xf]
  %v1985 = vld [vmem:[%s3 + $0xc] sm:$0xf]
  %v1986 = vld [vmem:[%s3 + $0x10] sm:$0xf]
  %v1987 = vld [vmem:[%s3 + $0x14] sm:$0xf]
  %v1988 = vld [vmem:[%s3 + $0x18] sm:$0xf]
  %v1989 = vld [vmem:[%s3 + $0x1c] sm:$0xf]
  %v1990 = vld [vmem:[%s3 + $0x20] sm:$0xf]
  %v1991 = vld [vmem:[%s3 + $0x24] sm:$0xf]
  %v1992 = vld [vmem:[%s3 + $0x28] sm:$0xf]
  %v1993 = vld [vmem:[%s3 + $0x2c] sm:$0xf]
  %v1994 = vld [vmem:[%s3 + $0x30] sm:$0xf]
  %v1995 = vld [vmem:[%s3 + $0x34] sm:$0xf]
  %v1996 = vld [vmem:[%s3 + $0x38] sm:$0xf]
  %v1997 = vld [vmem:[%s3 + $0x3c] sm:$0xf]
  %v1998 = vld [vmem:[%s3 + $0x40] sm:$0xf]
  %v1999 = vld [vmem:[%s3 + $0x44] sm:$0xf]
  %v2000 = vld [vmem:[%s3 + $0x48] sm:$0xf]
  %v2001 = vld [vmem:[%s3 + $0x4c] sm:$0xf]
  %v2002 = vld [vmem:[%s3 + $0x50] sm:$0xf]
  %v2003 = vld [vmem:[%s3 + $0x54] sm:$0xf]
  %v2004 = vld [vmem:[%s3 + $0x58] sm:$0xf]
  %v2005 = vld [vmem:[%s3 + $0x5c] sm:$0xf]
  %v2006 = vld [vmem:[%s3 + $0x60] sm:$0xf]
  %v2007 = vld [vmem:[%s3 + $0x64] sm:$0xf]
  %v2008 = vld [vmem:[%s3 + $0x68] sm:$0xf]
  %v2009 = vld [vmem:[%s3 + $0x6c] sm:$0xf]
  %v2010 = vld [vmem:[%s3 + $0x70] sm:$0xf]
  %v2011 = vld [vmem:[%s3 + $0x74] sm:$0xf]
  %v2012 = vld [vmem:[%s3 + $0x78] sm:$0xf]
  %v2013 = vld [vmem:[%s3 + $0x7c] sm:$0xf]
  %v2014 = vld [vmem:[%s3 + $0x80] sm:$0xf]
  %v2015 = vld [vmem:[%s3 + $0x84] sm:$0xf]
  %v2016 = vld [vmem:[%s3 + $0x88] sm:$0xf]
  %v2017 = vld [vmem:[%s3 + $0x8c] sm:$0xf]
  %v2018 = vld [vmem:[%s3 + $0x90] sm:$0xf]
  %v2019 = vld [vmem:[%s3 + $0x94] sm:$0xf]
  %v2020 = vld [vmem:[%s3 + $0x98] sm:$0xf]
  %v2021 = vld [vmem:[%s3 + $0x9c] sm:$0xf]
  %v2022 = vld [vmem:[%s3 + $0xa0] sm:$0xf]
  %v2023 = vld [vmem:[%s3 + $0xa4] sm:$0xf]
  %v2024 = vld [vmem:[%s3 + $0xa8] sm:$0xf]
  %v2025 = vld [vmem:[%s3 + $0xac] sm:$0xf]
  %v2026 = vld [vmem:[%s3 + $0xb0] sm:$0xf]
  %v2027 = vld [vmem:[%s3 + $0xb4] sm:$0xf]
  %v2028 = vld [vmem:[%s3 + $0xb8] sm:$0xf]
  %v2029 = vld [vmem:[%s3 + $0xbc] sm:$0xf]
  %v2030 = vld [vmem:[%s3 + $0xc0] sm:$0xf]
  %v2031 = vld [vmem:[%s3 + $0xc4] sm:$0xf]
  %v2032 = vld [vmem:[%s3 + $0xc8] sm:$0xf]
  %v2033 = vld [vmem:[%s3 + $0xcc] sm:$0xf]
  %v2034 = vld [vmem:[%s3 + $0xd0] sm:$0xf]
  %v2035 = vld [vmem:[%s3 + $0xd4] sm:$0xf]
  %v2036 = vld [vmem:[%s3 + $0xd8] sm:$0xf]
  %v2037 = vld [vmem:[%s3 + $0xdc] sm:$0xf]
  %v2038 = vld [vmem:[%s3 + $0xe0] sm:$0xf]
  %v2039 = vld [vmem:[%s3 + $0xe4] sm:$0xf]
  %v2040 = vld [vmem:[%s3 + $0xe8] sm:$0xf]
  %v2041 = vld [vmem:[%s3 + $0xec] sm:$0xf]
  %v2042 = vld [vmem:[%s3 + $0xf0] sm:$0xf]
  %v2043 = vld [vmem:[%s3 + $0xf4] sm:$0xf]
  %v2044 = vld [vmem:[%s3 + $0xf8] sm:$0xf]
  %v2045 = vld [vmem:[%s3 + $0xfc] sm:$0xf]
  %v2046 = vld [vmem:[%s4] sm:$0x1]
  %v2048 = vlaneseq
  %v2049 = vshrl.u32 %v2048, 7
  %v2050 = vsub.s32 0, %v2049
  %v2051 = vrot.slane %v2046, %v2050
  %v2117 = vunpack.c.l.b16 %v1982
  %v2118 = vunpack.c.l.b16 %v1983
  %v2119 = vunpack.c.l.b16 %v1984
  %v2120 = vunpack.c.l.b16 %v1985
  %v2121 = vunpack.c.l.b16 %v1986
  %v2122 = vunpack.c.l.b16 %v1987
  %v2123 = vunpack.c.l.b16 %v1988
  %v2124 = vunpack.c.l.b16 %v1989
  %v2125 = vunpack.c.l.b16 %v1990
  %v2126 = vunpack.c.l.b16 %v1991
  %v2127 = vunpack.c.l.b16 %v1992
  %v2128 = vunpack.c.l.b16 %v1993
  %v2129 = vunpack.c.l.b16 %v1994
  %v2130 = vunpack.c.l.b16 %v1995
  %v2131 = vunpack.c.l.b16 %v1996
  %v2132 = vunpack.c.l.b16 %v1997
  %v2133 = vunpack.c.l.b16 %v1998
  %v2134 = vunpack.c.l.b16 %v1999
  %v2135 = vunpack.c.l.b16 %v2000
  %v2136 = vunpack.c.l.b16 %v2001
  %v2137 = vunpack.c.l.b16 %v2002
  %v2138 = vunpack.c.l.b16 %v2003
  %v2139 = vunpack.c.l.b16 %v2004
  %v2140 = vunpack.c.l.b16 %v2005
  %v2141 = vunpack.c.l.b16 %v2006
  %v2142 = vunpack.c.l.b16 %v2007
  %v2143 = vunpack.c.l.b16 %v2008
  %v2144 = vunpack.c.l.b16 %v2009
  %v2145 = vunpack.c.l.b16 %v2010
  %v2146 = vunpack.c.l.b16 %v2011
  %v2147 = vunpack.c.l.b16 %v2012
  %v2148 = vunpack.c.l.b16 %v2013
  %v2149 = vunpack.c.l.b16 %v2014
  %v2150 = vunpack.c.l.b16 %v2015
  %v2151 = vunpack.c.l.b16 %v2016
  %v2152 = vunpack.c.l.b16 %v2017
  %v2153 = vunpack.c.l.b16 %v2018
  %v2154 = vunpack.c.l.b16 %v2019
  %v2155 = vunpack.c.l.b16 %v2020
  %v2156 = vunpack.c.l.b16 %v2021
  %v2157 = vunpack.c.l.b16 %v2022
  %v2158 = vunpack.c.l.b16 %v2023
  %v2159 = vunpack.c.l.b16 %v2024
  %v2160 = vunpack.c.l.b16 %v2025
  %v2161 = vunpack.c.l.b16 %v2026
  %v2162 = vunpack.c.l.b16 %v2027
  %v2163 = vunpack.c.l.b16 %v2028
  %v2164 = vunpack.c.l.b16 %v2029
  %v2165 = vunpack.c.l.b16 %v2030
  %v2166 = vunpack.c.l.b16 %v2031
  %v2167 = vunpack.c.l.b16 %v2032
  %v2168 = vunpack.c.l.b16 %v2033
  %v2169 = vunpack.c.l.b16 %v2034
  %v2170 = vunpack.c.l.b16 %v2035
  %v2171 = vunpack.c.l.b16 %v2036
  %v2172 = vunpack.c.l.b16 %v2037
  %v2173 = vunpack.c.l.b16 %v2038
  %v2174 = vunpack.c.l.b16 %v2039
  %v2175 = vunpack.c.l.b16 %v2040
  %v2176 = vunpack.c.l.b16 %v2041
  %v2177 = vunpack.c.l.b16 %v2042
  %v2178 = vunpack.c.l.b16 %v2043
  %v2179 = vunpack.c.l.b16 %v2044
  %v2180 = vunpack.c.l.b16 %v2045
  %v2181 = vpack.c.b16 %v2118, %v2117
  %v2182 = vpack.c.b16 %v2120, %v2119
  %v2183 = vpack.c.b16 %v2122, %v2121
  %v2184 = vpack.c.b16 %v2124, %v2123
  %v2185 = vpack.c.b16 %v2126, %v2125
  %v2186 = vpack.c.b16 %v2128, %v2127
  %v2187 = vpack.c.b16 %v2130, %v2129
  %v2188 = vpack.c.b16 %v2132, %v2131
  %v2189 = vpack.c.b16 %v2134, %v2133
  %v2190 = vpack.c.b16 %v2136, %v2135
  %v2191 = vpack.c.b16 %v2138, %v2137
  %v2192 = vpack.c.b16 %v2140, %v2139
  %v2193 = vpack.c.b16 %v2142, %v2141
  %v2194 = vpack.c.b16 %v2144, %v2143
  %v2195 = vpack.c.b16 %v2146, %v2145
  %v2196 = vpack.c.b16 %v2148, %v2147
  %v2197 = vpack.c.b16 %v2150, %v2149
  %v2198 = vpack.c.b16 %v2152, %v2151
  %v2199 = vpack.c.b16 %v2154, %v2153
  %v2200 = vpack.c.b16 %v2156, %v2155
  %v2201 = vpack.c.b16 %v2158, %v2157
  %v2202 = vpack.c.b16 %v2160, %v2159
  %v2203 = vpack.c.b16 %v2162, %v2161
  %v2204 = vpack.c.b16 %v2164, %v2163
  %v2205 = vpack.c.b16 %v2166, %v2165
  %v2206 = vpack.c.b16 %v2168, %v2167
  %v2207 = vpack.c.b16 %v2170, %v2169
  %v2208 = vpack.c.b16 %v2172, %v2171
  %v2209 = vpack.c.b16 %v2174, %v2173
  %v2210 = vpack.c.b16 %v2176, %v2175
  %v2211 = vpack.c.b16 %v2178, %v2177
  %v2212 = vpack.c.b16 %v2180, %v2179
  %2245 = vmatprep.subr.bf16.mxu0 0
  %2246 = vmatpush1.bf16.msra.mxu0 %v2188
  %2247 = vmatprep.subr.bf16.mxu0 0
  %2248 = vmatpush1.bf16.msra.mxu0 %v2187
  %2249 = vmatprep.subr.bf16.mxu0 0
  %2250 = vmatpush1.bf16.msra.mxu0 %v2186
  %2251 = vmatprep.subr.bf16.mxu0 0
  %2252 = vmatpush1.bf16.msra.mxu0 %v2185
  %2253 = vmatprep.subr.bf16.mxu0 0
  %2254 = vmatpush1.bf16.msra.mxu0 %v2184
  %2255 = vmatprep.subr.bf16.mxu0 0
  %2256 = vmatpush1.bf16.msra.mxu0 %v2183
  %2257 = vmatprep.subr.bf16.mxu0 0
  %2258 = vmatpush1.bf16.msra.mxu0 %v2182
  %2259 = vmatprep.subr.bf16.mxu0 0
  %2260 = vmatpush1.bf16.msra.mxu0 %v2181
  %2261 = vmatprep.subr.bf16.mxu0 0
  %2262 = vmatpush2.bf16.msra.mxu0 %v2196
  %2263 = vmatprep.subr.bf16.mxu0 0
  %2264 = vmatpush2.bf16.msra.mxu0 %v2195
  %2265 = vmatprep.subr.bf16.mxu0 0
  %2266 = vmatpush2.bf16.msra.mxu0 %v2194
  %2267 = vmatprep.subr.bf16.mxu0 0
  %2268 = vmatpush2.bf16.msra.mxu0 %v2193
  %2269 = vmatprep.subr.bf16.mxu0 0
  %2270 = vmatpush2.bf16.msra.mxu0 %v2192
  %2271 = vmatprep.subr.bf16.mxu0 0
  %2272 = vmatpush2.bf16.msra.mxu0 %v2191
  %2273 = vmatprep.subr.bf16.mxu0 0
  %2274 = vmatpush2.bf16.msra.mxu0 %v2190
  %2275 = vmatprep.subr.bf16.mxu0 0
  %2276 = vmatpush2.bf16.msra.mxu0 %v2189
  %2277 = vmatprep.mubr.bf16.mxu0 %v1979
  %2278 = vmatmul.mubr.bf16.gmra.mxu0 %v1978
  %v2279 = vpop.f32.mrf.mxu0
  %v2280 = vadd.f32 %v2051, %v2279
  %v2281 = vpop.f32.mrf.mxu0
  %v2282 = vpop.f32.mrf.mxu0
  %v2283 = vpop.f32.mrf.mxu0
  %2284 = vdwg.mxu0
  %2285 = vmatprep.subr.bf16.mxu0 0
  %2286 = vmatpush1.bf16.msra.mxu0 %v2204
  %2287 = vmatprep.subr.bf16.mxu0 0
  %2288 = vmatpush1.bf16.msra.mxu0 %v2203
  %2289 = vmatprep.subr.bf16.mxu0 0
  %2290 = vmatpush1.bf16.msra.mxu0 %v2202
  %2291 = vmatprep.subr.bf16.mxu0 0
  %2292 = vmatpush1.bf16.msra.mxu0 %v2201
  %2293 = vmatprep.subr.bf16.mxu0 0
  %2294 = vmatpush1.bf16.msra.mxu0 %v2200
  %2295 = vmatprep.subr.bf16.mxu0 0
  %2296 = vmatpush1.bf16.msra.mxu0 %v2199
  %2297 = vmatprep.subr.bf16.mxu0 0
  %2298 = vmatpush1.bf16.msra.mxu0 %v2198
  %2299 = vmatprep.subr.bf16.mxu0 0
  %2300 = vmatpush1.bf16.msra.mxu0 %v2197
  %2301 = vmatprep.subr.bf16.mxu0 0
  %2302 = vmatpush2.bf16.msra.mxu0 %v2212
  %2303 = vmatprep.subr.bf16.mxu0 0
  %2304 = vmatpush2.bf16.msra.mxu0 %v2211
  %2305 = vmatprep.subr.bf16.mxu0 0
  %2306 = vmatpush2.bf16.msra.mxu0 %v2210
  %2307 = vmatprep.subr.bf16.mxu0 0
  %2308 = vmatpush2.bf16.msra.mxu0 %v2209
  %2309 = vmatprep.subr.bf16.mxu0 0
  %2310 = vmatpush2.bf16.msra.mxu0 %v2208
  %2311 = vmatprep.subr.bf16.mxu0 0
  %2312 = vmatpush2.bf16.msra.mxu0 %v2207
  %2313 = vmatprep.subr.bf16.mxu0 0
  %2314 = vmatpush2.bf16.msra.mxu0 %v2206
  %2315 = vmatprep.subr.bf16.mxu0 0
  %2316 = vmatpush2.bf16.msra.mxu0 %v2205
  %2317 = vmatprep.mubr.bf16.mxu0 %v1981
  %2318 = vmatmul.mubr.bf16.gmra.mxu0 %v1980
  %v2319 = vpop.f32.mrf.mxu0
  %v2320 = vadd.f32 %v2280, %v2319
  %v2321 = vpop.f32.mrf.mxu0
  %v2322 = vpop.f32.mrf.mxu0
  %v2323 = vpop.f32.mrf.mxu0
  %2324 = vdwg.mxu0
  %vm2325 = vcmask 82944
  %2326 = vst.msk [vmem:[%s5] sm:$0x3] %vm2325, %v2320
  // Predicated region
  $region22: #{dann_forward.5} parent=0 // pred_check
    _
  $region23: #{dann_forward.5} parent=0 // pred_check_branch
    %2328 = sbr.rel (0) target = $region25
  $region24: #{dann_forward.5} parent=0 // pred_region
    _
  $region25: #{dann_forward.5} parent=0 // pred_fallthru
    _
  // Predicated region
  $region26: #{dann_forward.5} parent=0 // pred_check
    _
  $region27: #{dann_forward.5} parent=0 // pred_check_branch
    %2330 = sbr.rel (0) target = $region29
  $region28: #{dann_forward.5} parent=0 // pred_region
    _
  $region29: #{dann_forward.5} parent=0 // pred_fallthru
    _

</llo_original>
